<compile_context>
chip_gen: v7x
topology: tpu7x:2x2x1
jax: 0.10.0
libtpu: 0.0.40
codegen_flags: <defaults>
</compile_context>

<pallas_src>
import functools
import math

import jax
import jax.numpy as jnp
from jax.experimental import pallas as pl
from jax.experimental.pallas import tpu as pltpu


def _round_up(x: int, m: int) -> int:
    return ((x + m - 1) // m) * m


def _attnpool_kernel(tok_ref, tok0_ref, wq_ref, bq_ref, wk_ref, bk_ref,
                     wv_ref, bv_ref, wc_ref, bc_ref, o_ref, *,
                     num_heads: int, seq_len: int):
    """One grid step = TB images.

    tok_ref : (TB * S_pad, C)  all tokens per image (mean token first, + pos emb),
                               rows >= seq_len per image are zero padding.
    tok0_ref: (TB, C)          the pooled (mean) query token per image (+ pos[0]).
    wq/wk/wv_ref: (C, C)       projection weights pre-transposed to (in, out).
    wc_ref  : (C, Cout)        output projection, pre-transposed.
    b*_ref  : (1, C)/(1, Cout) biases, f32.
    o_ref   : (TB, Cout)
    """
    tb, c = tok0_ref.shape
    s_pad = tok_ref.shape[0] // tb
    hd = c // num_heads
    scale = 1.0 / math.sqrt(hd)

    tok = tok_ref[...]                       # (TB*S_pad, C)  compute dtype
    tok0 = tok0_ref[...]                     # (TB, C)

    # ---- projections: three dense MXU matmuls, f32 accumulation ----
    k = jnp.dot(tok, wk_ref[...], preferred_element_type=jnp.float32) + bk_ref[...]
    v = jnp.dot(tok, wv_ref[...], preferred_element_type=jnp.float32) + bv_ref[...]
    q = (jnp.dot(tok0, wq_ref[...], preferred_element_type=jnp.float32)
         + bq_ref[...]) * scale                                      # (TB, C) f32

    k3 = k.reshape(tb, s_pad, c)             # tile-aligned split (S_pad % 8 == 0)
    v3 = v.reshape(tb, s_pad, c)

    # ---- all heads at once: per-head q mask, one batched score einsum ----
    ch = jax.lax.broadcasted_iota(jnp.int32, (num_heads, c), 1)
    hh = jax.lax.broadcasted_iota(jnp.int32, (num_heads, c), 0)
    head_mask = ((ch >= hh * hd) & (ch < (hh + 1) * hd)).astype(jnp.float32)  # (nh, C)

    qh = q[:, None, :] * head_mask[None, :, :]                       # (TB, nh, C)
    s = jnp.einsum("bhc,btc->bht", qh, k3,
                   preferred_element_type=jnp.float32)               # (TB, nh, S_pad)

    # mask the zero-padded token rows
    tpos = jax.lax.broadcasted_iota(jnp.int32, (tb, num_heads, s_pad), 2)
    s = jnp.where(tpos < seq_len, s, jnp.float32(-1e30))

    # ---- softmax over tokens (lane axis); statistics stay f32 (v5e-safe) ----
    m = jnp.max(s, axis=-1, keepdims=True)
    e = jnp.exp(s - m)
    denom = jnp.sum(e, axis=-1, keepdims=True)
    # exact reciprocal keeps tight parity with the f32 reference;
    # pl.reciprocal(..., approx=True) moves it onto the EUP if ~1e-3 error is OK.
    p = e * pl.reciprocal(denom, approx=False)                       # (TB, nh, S_pad)

    # ---- attention-weighted values: one batched einsum, then head-select ----
    o_all = jnp.einsum("bht,btc->bhc", p, v3,
                       preferred_element_type=jnp.float32)           # (TB, nh, C)
    o = jnp.sum(o_all * head_mask[None, :, :], axis=1)               # (TB, C)

    # ---- c_proj: one lane-dense matmul ----
    out = jnp.dot(o.astype(wc_ref.dtype), wc_ref[...],
                  preferred_element_type=jnp.float32) + bc_ref[...]  # (TB, Cout)
    o_ref[...] = out.astype(o_ref.dtype)


def attention_pool_2d(x_nchw, params, num_heads, *, block_b=8):
    """AttentionPool2d forward.  `params` comes from `prepare_params` (weights already
    transposed / in compute dtype — no per-call weight transposes)."""
    N, C, H, W = x_nchw.shape
    HW = H * W
    S = HW + 1

    pos = params["pos"]                                      # (S, C) f32
    wq_t, wk_t = params["wq_t"], params["wk_t"]
    wv_t, wc_t = params["wv_t"], params["wc_t"]
    bq, bk, bv, bc = params["bq"], params["bk"], params["bv"], params["bc"]
    Cout = wc_t.shape[1]
    compute_dtype = wq_t.dtype

    # ---- layout plumbing (tiny vs. the projections; kept outside the kernel) ----
    x_tok = jnp.transpose(x_nchw.reshape(N, C, HW), (0, 2, 1)).astype(jnp.float32)
    tok0 = jnp.mean(x_tok, axis=1) + pos[0][None, :]          # (N, C) mean/query token
    rest = x_tok + pos[1:][None, :, :]                        # (N, HW, C)
    tokens = jnp.concatenate([tok0[:, None, :], rest], axis=1)  # (N, S, C)

    TB = block_b
    S_pad = _round_up(S, 8)        # sublane-aligned token count (padding masked in-kernel)
    N_pad = _round_up(N, TB)
    tokens = jnp.pad(tokens, ((0, N_pad - N), (0, S_pad - S), (0, 0)))
    tok0 = jnp.pad(tok0, ((0, N_pad - N), (0, 0)))

    tok_flat = tokens.reshape(N_pad * S_pad, C).astype(compute_dtype)
    tok0 = tok0.astype(compute_dtype)

    kernel = functools.partial(_attnpool_kernel, num_heads=num_heads, seq_len=S)
    const = lambda shape: pl.BlockSpec(shape, lambda n: (0, 0))
    # NOTE(v7x): at CLIP-scale widths (C >= 2048) additionally single-buffer the
    # constant weight specs (pipeline_mode=pl.Buffered(1)) and/or tile the C
    # contraction with an extra 'arbitrary' grid axis so the weights fit 64 MiB VMEM.

    out = pl.pallas_call(
        kernel,
        out_shape=jax.ShapeDtypeStruct((N_pad, Cout), jnp.float32),
        grid_spec=pltpu.PrefetchScalarGridSpec(
            num_scalar_prefetch=0,
            grid=(N_pad // TB,),
            in_specs=[
                pl.BlockSpec((TB * S_pad, C), lambda n: (n, 0)),   # tokens
                pl.BlockSpec((TB, C), lambda n: (n, 0)),           # query tokens
                const((C, C)), const((1, C)),                      # Wq^T, bq
                const((C, C)), const((1, C)),                      # Wk^T, bk
                const((C, C)), const((1, C)),                      # Wv^T, bv
                const((C, Cout)), const((1, Cout)),                # Wc^T, bc
            ],
            out_specs=pl.BlockSpec((TB, Cout), lambda n: (n, 0)),
        ),
        compiler_params=pltpu.CompilerParams(
            dimension_semantics=("parallel",),
            vmem_limit_bytes=48 * 1024 * 1024,
        ),
    )(tok_flat, tok0, wq_t, bq, wk_t, bk, wv_t, bv, wc_t, bc)
    return out[:N]


def prepare_params(raw, compute_dtype=jnp.float32):
    """One-time parameter prep (hoisted out of the per-call path): pre-transpose the
    nn.Linear weights to (in, out) layout, pick the MXU compute dtype, 2-D biases."""
    return {
        "pos": raw["pos"].astype(jnp.float32),
        "wq_t": raw["wq"].T.astype(compute_dtype),
        "wk_t": raw["wk"].T.astype(compute_dtype),
        "wv_t": raw["wv"].T.astype(compute_dtype),
        "wc_t": raw["wc"].T.astype(compute_dtype),
        "bq": raw["bq"].reshape(1, -1).astype(jnp.float32),
        "bk": raw["bk"].reshape(1, -1).astype(jnp.float32),
        "bv": raw["bv"].reshape(1, -1).astype(jnp.float32),
        "bc": raw["bc"].reshape(1, -1).astype(jnp.float32),
    }


def reference_jax(x_nchw, params, num_heads):
    """Pure-JAX replica of the PyTorch forward (F.multi_head_attention_forward)."""
    N, C, H, W = x_nchw.shape
    HW = H * W
    S = HW + 1
    hd = C // num_heads
    x = jnp.transpose(x_nchw.reshape(N, C, HW), (2, 0, 1))               # (HW, N, C)
    x = jnp.concatenate([x.mean(axis=0, keepdims=True), x], axis=0)       # (S, N, C)
    x = x + params["pos"][:, None, :]
    q = x @ params["wq"].T + params["bq"]
    k = x @ params["wk"].T + params["bk"]
    v = x @ params["wv"].T + params["bv"]
    q = q * (hd ** -0.5)
    split = lambda t: t.reshape(S, N, num_heads, hd).transpose(1, 2, 0, 3)
    qh, kh, vh = split(q), split(k), split(v)
    attn = jax.nn.softmax(qh @ kh.transpose(0, 1, 3, 2), axis=-1)
    o = (attn @ vh).transpose(2, 0, 1, 3).reshape(S, N, C)
    o = o @ params["wc"].T + params["bc"]
    return o[0]


def init_params(key, spacial_dim, embed_dim, output_dim):
    S = spacial_dim ** 2 + 1
    ks = jax.random.split(key, 9)
    return {
        "pos": jax.random.normal(ks[0], (S, embed_dim), jnp.float32) / embed_dim ** 0.5,
        "wq": jax.random.normal(ks[1], (embed_dim, embed_dim), jnp.float32) * 0.1,
        "bq": jax.random.normal(ks[2], (embed_dim,), jnp.float32) * 0.1,
        "wk": jax.random.normal(ks[3], (embed_dim, embed_dim), jnp.float32) * 0.1,
        "bk": jax.random.normal(ks[4], (embed_dim,), jnp.float32) * 0.1,
        "wv": jax.random.normal(ks[5], (embed_dim, embed_dim), jnp.float32) * 0.1,
        "bv": jax.random.normal(ks[6], (embed_dim,), jnp.float32) * 0.1,
        "wc": jax.random.normal(ks[7], (output_dim, embed_dim), jnp.float32) * 0.1,
        "bc": jax.random.normal(ks[8], (output_dim,), jnp.float32) * 0.1,
    }


if __name__ == "__main__":
    # Shapes mirror the ModifiedResNet attnpool structure (7x7 final feature map) at a
    # small width.  C / Cout are lane-aligned (multiples of 128); batch=12 exercises
    # multiple grid steps plus batch padding (-> 2 blocks of 8).
    spacial_dim = 7            # HW = 49, S = 50 -> padded to 56 tokens in the wrapper
    embed_dim = 128
    num_heads = 4
    output_dim = 256
    batch = 12

    key = jax.random.PRNGKey(0)
    k_x, k_p = jax.random.split(key)
    x = jax.random.normal(k_x, (batch, embed_dim, spacial_dim, spacial_dim), jnp.float32)
    raw = init_params(k_p, spacial_dim, embed_dim, output_dim)
    ref = reference_jax(x, raw, num_heads)

    fwd = jax.jit(functools.partial(attention_pool_2d, num_heads=num_heads))

    # f32 path: near-exact parity with the unfused reference (tolerance covers MXU
    # accumulation-order / pass-count differences only).
    out = jax.block_until_ready(fwd(x, prepare_params(raw, jnp.float32)))
    assert out.shape == (batch, output_dim)
    err = float(jnp.max(jnp.abs(out - ref)))
    assert jnp.allclose(out, ref, atol=1e-3, rtol=1e-3), f"f32 max abs err {err}"

    # bf16 weights/activations (MXU fast path; softmax stats stay f32 in-kernel).
    out_bf16 = jax.block_until_ready(fwd(x, prepare_params(raw, jnp.bfloat16)))
    err_bf16 = float(jnp.max(jnp.abs(out_bf16 - ref)))
    assert jnp.allclose(out_bf16, ref, atol=2e-1, rtol=2e-1), f"bf16 max abs err {err_bf16}"

    print("KERNEL_OK")
</pallas_src>

<mosaic_0001>
module attributes {stable_mosaic.version = 11 : i64} {
  func.func @_attnpool_kernel(%arg0: i32, %arg1: memref<448x128xf32, #tpu.memory_space<vmem>>, %arg2: memref<8x128xf32, #tpu.memory_space<vmem>>, %arg3: memref<128x128xf32, #tpu.memory_space<vmem>>, %arg4: memref<1x128xf32, #tpu.memory_space<vmem>>, %arg5: memref<128x128xf32, #tpu.memory_space<vmem>>, %arg6: memref<1x128xf32, #tpu.memory_space<vmem>>, %arg7: memref<128x128xf32, #tpu.memory_space<vmem>>, %arg8: memref<1x128xf32, #tpu.memory_space<vmem>>, %arg9: memref<128x256xf32, #tpu.memory_space<vmem>>, %arg10: memref<1x256xf32, #tpu.memory_space<vmem>>, %arg11: memref<8x256xf32, #tpu.memory_space<vmem>>) attributes {dimension_semantics = [#tpu.dimension_semantics<parallel>], iteration_bounds = array<i64: 2>, scalar_prefetch = 0 : i64, scratch_operands = 0 : i64, tpu.core_type = #tpu.core_type<tc>, window_params = [{transform_indices = @transform_0, window_bounds = array<i64: 448, 128>}, {transform_indices = @transform_1, window_bounds = array<i64: 8, 128>}, {pipeline_mode = #tpu.pipeline_mode<synchronous>, transform_indices = @transform_2, window_bounds = array<i64: 128, 128>}, {pipeline_mode = #tpu.pipeline_mode<synchronous>, transform_indices = @transform_3, window_bounds = array<i64: 1, 128>}, {pipeline_mode = #tpu.pipeline_mode<synchronous>, transform_indices = @transform_4, window_bounds = array<i64: 128, 128>}, {pipeline_mode = #tpu.pipeline_mode<synchronous>, transform_indices = @transform_5, window_bounds = array<i64: 1, 128>}, {pipeline_mode = #tpu.pipeline_mode<synchronous>, transform_indices = @transform_6, window_bounds = array<i64: 128, 128>}, {pipeline_mode = #tpu.pipeline_mode<synchronous>, transform_indices = @transform_7, window_bounds = array<i64: 1, 128>}, {pipeline_mode = #tpu.pipeline_mode<synchronous>, transform_indices = @transform_8, window_bounds = array<i64: 128, 256>}, {pipeline_mode = #tpu.pipeline_mode<synchronous>, transform_indices = @transform_9, window_bounds = array<i64: 1, 256>}, {transform_indices = @transform_10, window_bounds = array<i64: 8, 256>}]} {
    %c0 = arith.constant 0 : index
    %c0_0 = arith.constant 0 : index
    %0 = vector.load %arg1[%c0, %c0_0] : memref<448x128xf32, #tpu.memory_space<vmem>>, vector<448x128xf32>
    %c0_1 = arith.constant 0 : index
    %c0_2 = arith.constant 0 : index
    %1 = vector.load %arg2[%c0_1, %c0_2] : memref<8x128xf32, #tpu.memory_space<vmem>>, vector<8x128xf32>
    %c0_3 = arith.constant 0 : index
    %c0_4 = arith.constant 0 : index
    %2 = vector.load %arg5[%c0_3, %c0_4] : memref<128x128xf32, #tpu.memory_space<vmem>>, vector<128x128xf32>
    %cst = arith.constant dense<0.000000e+00> : vector<448x128xf32>
    %3 = tpu.matmul %0, %2, %cst {dimension_numbers = #tpu.dot_dimension_numbers<[1], [0], [0], [1], [0, 0, 1, 1], [], []>} : vector<448x128xf32>, vector<128x128xf32>, vector<448x128xf32> -> vector<448x128xf32>
    %c0_5 = arith.constant 0 : index
    %c0_6 = arith.constant 0 : index
    %4 = vector.load %arg6[%c0_5, %c0_6] : memref<1x128xf32, #tpu.memory_space<vmem>>, vector<1x128xf32>
    %5 = vector.broadcast %4 : vector<1x128xf32> to vector<448x128xf32>
    %6 = arith.addf %3, %5 : vector<448x128xf32>
    %c0_7 = arith.constant 0 : index
    %c0_8 = arith.constant 0 : index
    %7 = vector.load %arg7[%c0_7, %c0_8] : memref<128x128xf32, #tpu.memory_space<vmem>>, vector<128x128xf32>
    %cst_9 = arith.constant dense<0.000000e+00> : vector<448x128xf32>
    %8 = tpu.matmul %0, %7, %cst_9 {dimension_numbers = #tpu.dot_dimension_numbers<[1], [0], [0], [1], [0, 0, 1, 1], [], []>} : vector<448x128xf32>, vector<128x128xf32>, vector<448x128xf32> -> vector<448x128xf32>
    %c0_10 = arith.constant 0 : index
    %c0_11 = arith.constant 0 : index
    %9 = vector.load %arg8[%c0_10, %c0_11] : memref<1x128xf32, #tpu.memory_space<vmem>>, vector<1x128xf32>
    %10 = vector.broadcast %9 : vector<1x128xf32> to vector<448x128xf32>
    %11 = arith.addf %8, %10 : vector<448x128xf32>
    %c0_12 = arith.constant 0 : index
    %c0_13 = arith.constant 0 : index
    %12 = vector.load %arg3[%c0_12, %c0_13] : memref<128x128xf32, #tpu.memory_space<vmem>>, vector<128x128xf32>
    %cst_14 = arith.constant dense<0.000000e+00> : vector<8x128xf32>
    %13 = tpu.matmul %1, %12, %cst_14 {dimension_numbers = #tpu.dot_dimension_numbers<[1], [0], [0], [1], [0, 0, 1, 1], [], []>} : vector<8x128xf32>, vector<128x128xf32>, vector<8x128xf32> -> vector<8x128xf32>
    %c0_15 = arith.constant 0 : index
    %c0_16 = arith.constant 0 : index
    %14 = vector.load %arg4[%c0_15, %c0_16] : memref<1x128xf32, #tpu.memory_space<vmem>>, vector<1x128xf32>
    %15 = vector.broadcast %14 : vector<1x128xf32> to vector<8x128xf32>
    %16 = arith.addf %13, %15 : vector<8x128xf32>
    %cst_17 = arith.constant 0.176776692 : f32
    %17 = vector.broadcast %cst_17 : f32 to vector<8x128xf32>
    %18 = arith.mulf %16, %17 : vector<8x128xf32>
    %19 = vector.shape_cast %6 : vector<448x128xf32> to vector<8x56x128xf32>
    %20 = vector.shape_cast %11 : vector<448x128xf32> to vector<8x56x128xf32>
    %21 = tpu.iota {dimensions = array<i32: 1>} : vector<4x128xi32>
    %22 = tpu.iota {dimensions = array<i32: 0>} : vector<4x128xi32>
    %c32_i32 = arith.constant 32 : i32
    %23 = vector.broadcast %c32_i32 : i32 to vector<4x128xi32>
    %24 = arith.muli %22, %23 : vector<4x128xi32>
    %25 = arith.cmpi sge, %21, %24 : vector<4x128xi32>
    %c1_i32 = arith.constant 1 : i32
    %26 = vector.broadcast %c1_i32 : i32 to vector<4x128xi32>
    %27 = arith.addi %22, %26 : vector<4x128xi32>
    %c32_i32_18 = arith.constant 32 : i32
    %28 = vector.broadcast %c32_i32_18 : i32 to vector<4x128xi32>
    %29 = arith.muli %27, %28 : vector<4x128xi32>
    %30 = arith.cmpi slt, %21, %29 : vector<4x128xi32>
    %31 = arith.andi %25, %30 : vector<4x128xi1>
    %32 = arith.extui %31 : vector<4x128xi1> to vector<4x128xi32>
    %33 = arith.sitofp %32 : vector<4x128xi32> to vector<4x128xf32>
    %34 = vector.shape_cast %18 : vector<8x128xf32> to vector<8x1x128xf32>
    %35 = vector.shape_cast %33 : vector<4x128xf32> to vector<1x4x128xf32>
    %36 = vector.broadcast %34 : vector<8x1x128xf32> to vector<8x4x128xf32>
    %37 = vector.broadcast %35 : vector<1x4x128xf32> to vector<8x4x128xf32>
    %38 = arith.mulf %36, %37 : vector<8x4x128xf32>
    "tpu.trace_start"() <{level = 10 : i32, message = "bhc,btc->bht"}> : () -> ()
    %cst_19 = arith.constant dense<0.000000e+00> : vector<8x4x56xf32>
    %39 = tpu.matmul %38, %19, %cst_19 {dimension_numbers = #tpu.dot_dimension_numbers<[2], [2], [1], [1], [0, 0, 0, 1, 1, 1], [0], [0]>} : vector<8x4x128xf32>, vector<8x56x128xf32>, vector<8x4x56xf32> -> vector<8x4x56xf32>
    "tpu.trace_stop"() : () -> ()
    %40 = tpu.iota {dimensions = array<i32: 2>} : vector<8x4x56xi32>
    %c50_i32 = arith.constant 50 : i32
    %41 = vector.broadcast %c50_i32 : i32 to vector<8x4x56xi32>
    %42 = arith.cmpi slt, %40, %41 : vector<8x4x56xi32>
    %cst_20 = arith.constant -1.000000e+30 : f32
    %43 = vector.broadcast %cst_20 : f32 to vector<8x4x56xf32>
    %44 = arith.select %42, %39, %43 : vector<8x4x56xi1>, vector<8x4x56xf32>
    %cst_21 = arith.constant dense<0xFF800000> : vector<8x4xf32>
    %45 = vector.multi_reduction <maximumf>, %44, %cst_21 [2] : vector<8x4x56xf32> to vector<8x4xf32>
    %46 = vector.shape_cast %45 : vector<8x4xf32> to vector<8x4x1xf32>
    %47 = vector.broadcast %46 : vector<8x4x1xf32> to vector<8x4x56xf32>
    %48 = arith.subf %44, %47 : vector<8x4x56xf32>
    %49 = math.exp %48 : vector<8x4x56xf32>
    %cst_22 = arith.constant dense<0.000000e+00> : vector<8x4xf32>
    %50 = vector.multi_reduction <add>, %49, %cst_22 [2] : vector<8x4x56xf32> to vector<8x4xf32>
    %51 = vector.shape_cast %50 : vector<8x4xf32> to vector<8x4x1xf32>
    %52 = tpu.reciprocal %51 : vector<8x4x1xf32> -> vector<8x4x1xf32>
    %53 = vector.broadcast %52 : vector<8x4x1xf32> to vector<8x4x56xf32>
    %54 = arith.mulf %49, %53 : vector<8x4x56xf32>
    "tpu.trace_start"() <{level = 10 : i32, message = "bht,btc->bhc"}> : () -> ()
    %cst_23 = arith.constant dense<0.000000e+00> : vector<8x4x128xf32>
    %55 = tpu.matmul %54, %20, %cst_23 {dimension_numbers = #tpu.dot_dimension_numbers<[2], [1], [1], [2], [0, 0, 0, 1, 1, 2], [0], [0]>} : vector<8x4x56xf32>, vector<8x56x128xf32>, vector<8x4x128xf32> -> vector<8x4x128xf32>
    "tpu.trace_stop"() : () -> ()
    %56 = vector.shape_cast %33 : vector<4x128xf32> to vector<1x4x128xf32>
    %57 = vector.broadcast %56 : vector<1x4x128xf32> to vector<8x4x128xf32>
    %58 = arith.mulf %55, %57 : vector<8x4x128xf32>
    %cst_24 = arith.constant dense<0.000000e+00> : vector<8x128xf32>
    %59 = vector.multi_reduction <add>, %58, %cst_24 [1] : vector<8x4x128xf32> to vector<8x128xf32>
    %c0_25 = arith.constant 0 : index
    %c0_26 = arith.constant 0 : index
    %60 = vector.load %arg9[%c0_25, %c0_26] : memref<128x256xf32, #tpu.memory_space<vmem>>, vector<128x256xf32>
    %cst_27 = arith.constant dense<0.000000e+00> : vector<8x256xf32>
    %61 = tpu.matmul %59, %60, %cst_27 {dimension_numbers = #tpu.dot_dimension_numbers<[1], [0], [0], [1], [0, 0, 1, 1], [], []>} : vector<8x128xf32>, vector<128x256xf32>, vector<8x256xf32> -> vector<8x256xf32>
    %c0_28 = arith.constant 0 : index
    %c0_29 = arith.constant 0 : index
    %62 = vector.load %arg10[%c0_28, %c0_29] : memref<1x256xf32, #tpu.memory_space<vmem>>, vector<1x256xf32>
    %63 = vector.broadcast %62 : vector<1x256xf32> to vector<8x256xf32>
    %64 = arith.addf %61, %63 : vector<8x256xf32>
    %c0_30 = arith.constant 0 : index
    %c0_31 = arith.constant 0 : index
    %65 = vector.load %arg11[%c0_30, %c0_31] : memref<8x256xf32, #tpu.memory_space<vmem>>, vector<8x256xf32>
    tpu.vector_store %arg11[%c0_30, %c0_31], %64 {strides = array<i32>} : memref<8x256xf32, #tpu.memory_space<vmem>>, vector<8x256xf32>,
    return
  }
  func.func @transform_0(%arg0: i32) -> (i32, i32) {
    %c0_i32 = arith.constant 0 : i32
    %c0_i32_0 = arith.constant 0 : i32
    return %arg0, %c0_i32 : i32, i32
  }
  func.func @transform_1(%arg0: i32) -> (i32, i32) {
    %c0_i32 = arith.constant 0 : i32
    %c0_i32_0 = arith.constant 0 : i32
    return %arg0, %c0_i32 : i32, i32
  }
  func.func @transform_2(%arg0: i32) -> (i32, i32) {
    %c0_i32 = arith.constant 0 : i32
    %c0_i32_0 = arith.constant 0 : i32
    %c0_i32_1 = arith.constant 0 : i32
    return %c0_i32, %c0_i32_0 : i32, i32
  }
  func.func @transform_3(%arg0: i32) -> (i32, i32) {
    %c0_i32 = arith.constant 0 : i32
    %c0_i32_0 = arith.constant 0 : i32
    %c0_i32_1 = arith.constant 0 : i32
    return %c0_i32, %c0_i32_0 : i32, i32
  }
  func.func @transform_4(%arg0: i32) -> (i32, i32) {
    %c0_i32 = arith.constant 0 : i32
    %c0_i32_0 = arith.constant 0 : i32
    %c0_i32_1 = arith.constant 0 : i32
    return %c0_i32, %c0_i32_0 : i32, i32
  }
  func.func @transform_5(%arg0: i32) -> (i32, i32) {
    %c0_i32 = arith.constant 0 : i32
    %c0_i32_0 = arith.constant 0 : i32
    %c0_i32_1 = arith.constant 0 : i32
    return %c0_i32, %c0_i32_0 : i32, i32
  }
  func.func @transform_6(%arg0: i32) -> (i32, i32) {
    %c0_i32 = arith.constant 0 : i32
    %c0_i32_0 = arith.constant 0 : i32
    %c0_i32_1 = arith.constant 0 : i32
    return %c0_i32, %c0_i32_0 : i32, i32
  }
  func.func @transform_7(%arg0: i32) -> (i32, i32) {
    %c0_i32 = arith.constant 0 : i32
    %c0_i32_0 = arith.constant 0 : i32
    %c0_i32_1 = arith.constant 0 : i32
    return %c0_i32, %c0_i32_0 : i32, i32
  }
  func.func @transform_8(%arg0: i32) -> (i32, i32) {
    %c0_i32 = arith.constant 0 : i32
    %c0_i32_0 = arith.constant 0 : i32
    %c0_i32_1 = arith.constant 0 : i32
    return %c0_i32, %c0_i32_0 : i32, i32
  }
  func.func @transform_9(%arg0: i32) -> (i32, i32) {
    %c0_i32 = arith.constant 0 : i32
    %c0_i32_0 = arith.constant 0 : i32
    %c0_i32_1 = arith.constant 0 : i32
    return %c0_i32, %c0_i32_0 : i32, i32
  }
  func.func @transform_10(%arg0: i32) -> (i32, i32) {
    %c0_i32 = arith.constant 0 : i32
    %c0_i32_0 = arith.constant 0 : i32
    return %arg0, %c0_i32 : i32, i32
  }
}

</mosaic_0001>

<llo_original>
// kernel: attention_pool_2d.1
$region0: #{attention_pool_2d.1}
  #allocation0 [shape = 'u32[]', space=smem, size = 0x4, offset = 0x4, fixed_abs, tag = 'smem constant byte address 0x4 - core index']
  #allocation1 [shape = 'u32[144,128]{1,0:T(1,128)}', space=vmem, size = 0x12000, scoped, tag = 'internal scratch']
  %s0 = inlined_call_operand.vmem [shape: f32[896,128], index: 0, kind: input, shape index: {}]
  %s1 = inlined_call_operand.vmem [shape: f32[16,128], index: 1, kind: input, shape index: {}]
  %s2 = inlined_call_operand.vmem [shape: f32[128,128], index: 2, kind: input, shape index: {}]
  %s3 = inlined_call_operand.vmem [shape: f32[1,128], index: 3, kind: input, shape index: {}]
  %s4 = inlined_call_operand.vmem [shape: f32[128,128], index: 4, kind: input, shape index: {}]
  %s5 = inlined_call_operand.vmem [shape: f32[1,128], index: 5, kind: input, shape index: {}]
  %s6 = inlined_call_operand.vmem [shape: f32[128,128], index: 6, kind: input, shape index: {}]
  %s7 = inlined_call_operand.vmem [shape: f32[1,128], index: 7, kind: input, shape index: {}]
  %s8 = inlined_call_operand.vmem [shape: f32[128,256], index: 8, kind: input, shape index: {}]
  %s9 = inlined_call_operand.vmem [shape: f32[1,256], index: 9, kind: input, shape index: {}]
  %s10 = inlined_call_operand.hbm [shape: f32[16,256], index: 10, kind: output, shape index: {}]
  %s11 = sld [smem:[#allocation0]]
  $region73: #{attention_pool_2d.1} parent=0
    _
  %s13 = ssub.s32 1, %s11
  %s14 = scalar_select 0, %s13, %s11
  $region1: #{attention_pool_2d.1} parent=0
    #allocation2 [shape = 'u8[16384]{0}', space=vmem, size = 0x4000, scoped, tag = 'output window, operand 0']
    #allocation3 [shape = 's32[2]{0}', space=sflag, size = 0x8, scoped, tag = 'scoped memory for attention_pool_2d.1']
    %15 = vsyncpa [#allocation3], 0
    %s16 = scalar_lea.sflag [#allocation3], 1
    %17 = vsyncpa %s16, 0
    loop: start=0, step=1, limit=4
    $region2: #{attention_pool_2d.1} parent=1 // loop_pre_header
      _
    $region3: #{attention_pool_2d.1} parent=1 // loop_header
      %s19 = sphi 0, %s23
      %p20 = scmp.ge.s32.totalorder %s19, 4
      %s29 = sphi 0, %s31
      %s32 = sphi 0, %s29
      %s33 = sphi 0, %s32
      %s49 = sphi 0, %s33
      %s55 = sphi 0, %s57
      %s58 = sphi 0, %s55
      %s59 = sphi 0, %s58
      %s75 = sphi 0, %s59
      %s79 = sphi 0, %s79
      %s81 = sphi 0, %s79
      %s82 = sphi 0, %s81
      %s96 = sphi 0, %s82
      %s100 = sphi 0, %s100
      %s102 = sphi 0, %s100
      %s103 = sphi 0, %s102
      %s117 = sphi 0, %s103
      %s121 = sphi 0, %s121
      %s123 = sphi 0, %s121
      %s124 = sphi 0, %s123
      %s138 = sphi 0, %s124
      %s142 = sphi 0, %s142
      %s144 = sphi 0, %s142
      %s145 = sphi 0, %s144
      %s159 = sphi 0, %s145
      %s163 = sphi 0, %s163
      %s165 = sphi 0, %s163
      %s166 = sphi 0, %s165
      %s180 = sphi 0, %s166
      %s184 = sphi 0, %s184
      %s186 = sphi 0, %s184
      %s187 = sphi 0, %s186
      %s201 = sphi 0, %s187
      %s205 = sphi 0, %s205
      %s207 = sphi 0, %s205
      %s208 = sphi 0, %s207
      %s222 = sphi 0, %s208
      %s226 = sphi 0, %s226
      %s228 = sphi 0, %s226
      %s229 = sphi 0, %s228
      %s243 = sphi 0, %s229
      %s249 = sphi 0, %s251
      %s252 = sphi 0, %s249
      %s253 = sphi 0, %s252
      %s269 = sphi 0, %s253
    $region4: #{attention_pool_2d.1} parent=1 // loop_header_branch
      %22 = sbr.rel (%p20) target = $region8
    $region5: #{attention_pool_2d.1} parent=1 // loop_body
      %s24 = ssub.s32 %s19, 1
      %s25 = ssub.s32 %s19, 2
      %s26 = sadd.s32 %s19, 1
      %s27 = ssub.s32 %s19, %s26
      %p28 = scmp.eq.s32.totalorder %s27, 0
      %s30 = sadd.s32 %s29, 1
      %s31 = scalar_select %p28, %s29, %s30
      %p34 = pneg %p28
      %p35 = scmp.eq.s32.totalorder %s19, 1
      %p36 = por %p34, %p35
      %p37 = scmp.ne.s32.totalorder %s29, %s32
      %p38 = scmp.eq.s32.totalorder %s19, 0
      %p39 = por %p37, %p38
      %p40 = scmp.ne.s32.totalorder %s29, %s32
      %p41 = scmp.eq.s32.totalorder %s24, 1
      %p42 = por %p40, %p41
      %p43 = scmp.ne.s32.totalorder %s32, %s33
      %p44 = scmp.eq.s32.totalorder %s24, 0
      %p45 = por %p43, %p44
      %p46 = scmp.ne.s32.totalorder %s32, %s33
      %p47 = scmp.eq.s32.totalorder %s25, 1
      %p48 = por %p46, %p47
      %p50 = scmp.ne.s32.totalorder %s33, %s49
      %p51 = scmp.eq.s32.totalorder %s25, 0
      %p52 = por %p50, %p51
      %s53 = ssub.s32 %s19, %s26
      %p54 = scmp.eq.s32.totalorder %s53, 0
      %s56 = sadd.s32 %s55, 1
      %s57 = scalar_select %p54, %s55, %s56
      %p60 = pneg %p54
      %p61 = scmp.eq.s32.totalorder %s19, 1
      %p62 = por %p60, %p61
      %p63 = scmp.ne.s32.totalorder %s55, %s58
      %p64 = scmp.eq.s32.totalorder %s19, 0
      %p65 = por %p63, %p64
      %p66 = scmp.ne.s32.totalorder %s55, %s58
      %p67 = scmp.eq.s32.totalorder %s24, 1
      %p68 = por %p66, %p67
      %p69 = scmp.ne.s32.totalorder %s58, %s59
      %p70 = scmp.eq.s32.totalorder %s24, 0
      %p71 = por %p69, %p70
      %p72 = scmp.ne.s32.totalorder %s58, %s59
      %p73 = scmp.eq.s32.totalorder %s25, 1
      %p74 = por %p72, %p73
      %p76 = scmp.ne.s32.totalorder %s59, %s75
      %p77 = scmp.eq.s32.totalorder %s25, 0
      %p78 = por %p76, %p77
      %s80 = sadd.s32 %s79, 1
      %p83 = scmp.eq.s32.totalorder %s19, 1
      %p84 = scmp.ne.s32.totalorder %s79, %s81
      %p85 = scmp.eq.s32.totalorder %s19, 0
      %p86 = por %p84, %p85
      %p87 = scmp.ne.s32.totalorder %s79, %s81
      %p88 = scmp.eq.s32.totalorder %s24, 1
      %p89 = por %p87, %p88
      %p90 = scmp.ne.s32.totalorder %s81, %s82
      %p91 = scmp.eq.s32.totalorder %s24, 0
      %p92 = por %p90, %p91
      %p93 = scmp.ne.s32.totalorder %s81, %s82
      %p94 = scmp.eq.s32.totalorder %s25, 1
      %p95 = por %p93, %p94
      %p97 = scmp.ne.s32.totalorder %s82, %s96
      %p98 = scmp.eq.s32.totalorder %s25, 0
      %p99 = por %p97, %p98
      %s101 = sadd.s32 %s100, 1
      %p104 = scmp.eq.s32.totalorder %s19, 1
      %p105 = scmp.ne.s32.totalorder %s100, %s102
      %p106 = scmp.eq.s32.totalorder %s19, 0
      %p107 = por %p105, %p106
      %p108 = scmp.ne.s32.totalorder %s100, %s102
      %p109 = scmp.eq.s32.totalorder %s24, 1
      %p110 = por %p108, %p109
      %p111 = scmp.ne.s32.totalorder %s102, %s103
      %p112 = scmp.eq.s32.totalorder %s24, 0
      %p113 = por %p111, %p112
      %p114 = scmp.ne.s32.totalorder %s102, %s103
      %p115 = scmp.eq.s32.totalorder %s25, 1
      %p116 = por %p114, %p115
      %p118 = scmp.ne.s32.totalorder %s103, %s117
      %p119 = scmp.eq.s32.totalorder %s25, 0
      %p120 = por %p118, %p119
      %s122 = sadd.s32 %s121, 1
      %p125 = scmp.eq.s32.totalorder %s19, 1
      %p126 = scmp.ne.s32.totalorder %s121, %s123
      %p127 = scmp.eq.s32.totalorder %s19, 0
      %p128 = por %p126, %p127
      %p129 = scmp.ne.s32.totalorder %s121, %s123
      %p130 = scmp.eq.s32.totalorder %s24, 1
      %p131 = por %p129, %p130
      %p132 = scmp.ne.s32.totalorder %s123, %s124
      %p133 = scmp.eq.s32.totalorder %s24, 0
      %p134 = por %p132, %p133
      %p135 = scmp.ne.s32.totalorder %s123, %s124
      %p136 = scmp.eq.s32.totalorder %s25, 1
      %p137 = por %p135, %p136
      %p139 = scmp.ne.s32.totalorder %s124, %s138
      %p140 = scmp.eq.s32.totalorder %s25, 0
      %p141 = por %p139, %p140
      %s143 = sadd.s32 %s142, 1
      %p146 = scmp.eq.s32.totalorder %s19, 1
      %p147 = scmp.ne.s32.totalorder %s142, %s144
      %p148 = scmp.eq.s32.totalorder %s19, 0
      %p149 = por %p147, %p148
      %p150 = scmp.ne.s32.totalorder %s142, %s144
      %p151 = scmp.eq.s32.totalorder %s24, 1
      %p152 = por %p150, %p151
      %p153 = scmp.ne.s32.totalorder %s144, %s145
      %p154 = scmp.eq.s32.totalorder %s24, 0
      %p155 = por %p153, %p154
      %p156 = scmp.ne.s32.totalorder %s144, %s145
      %p157 = scmp.eq.s32.totalorder %s25, 1
      %p158 = por %p156, %p157
      %p160 = scmp.ne.s32.totalorder %s145, %s159
      %p161 = scmp.eq.s32.totalorder %s25, 0
      %p162 = por %p160, %p161
      %s164 = sadd.s32 %s163, 1
      %p167 = scmp.eq.s32.totalorder %s19, 1
      %p168 = scmp.ne.s32.totalorder %s163, %s165
      %p169 = scmp.eq.s32.totalorder %s19, 0
      %p170 = por %p168, %p169
      %p171 = scmp.ne.s32.totalorder %s163, %s165
      %p172 = scmp.eq.s32.totalorder %s24, 1
      %p173 = por %p171, %p172
      %p174 = scmp.ne.s32.totalorder %s165, %s166
      %p175 = scmp.eq.s32.totalorder %s24, 0
      %p176 = por %p174, %p175
      %p177 = scmp.ne.s32.totalorder %s165, %s166
      %p178 = scmp.eq.s32.totalorder %s25, 1
      %p179 = por %p177, %p178
      %p181 = scmp.ne.s32.totalorder %s166, %s180
      %p182 = scmp.eq.s32.totalorder %s25, 0
      %p183 = por %p181, %p182
      %s185 = sadd.s32 %s184, 1
      %p188 = scmp.eq.s32.totalorder %s19, 1
      %p189 = scmp.ne.s32.totalorder %s184, %s186
      %p190 = scmp.eq.s32.totalorder %s19, 0
      %p191 = por %p189, %p190
      %p192 = scmp.ne.s32.totalorder %s184, %s186
      %p193 = scmp.eq.s32.totalorder %s24, 1
      %p194 = por %p192, %p193
      %p195 = scmp.ne.s32.totalorder %s186, %s187
      %p196 = scmp.eq.s32.totalorder %s24, 0
      %p197 = por %p195, %p196
      %p198 = scmp.ne.s32.totalorder %s186, %s187
      %p199 = scmp.eq.s32.totalorder %s25, 1
      %p200 = por %p198, %p199
      %p202 = scmp.ne.s32.totalorder %s187, %s201
      %p203 = scmp.eq.s32.totalorder %s25, 0
      %p204 = por %p202, %p203
      %s206 = sadd.s32 %s205, 1
      %p209 = scmp.eq.s32.totalorder %s19, 1
      %p210 = scmp.ne.s32.totalorder %s205, %s207
      %p211 = scmp.eq.s32.totalorder %s19, 0
      %p212 = por %p210, %p211
      %p213 = scmp.ne.s32.totalorder %s205, %s207
      %p214 = scmp.eq.s32.totalorder %s24, 1
      %p215 = por %p213, %p214
      %p216 = scmp.ne.s32.totalorder %s207, %s208
      %p217 = scmp.eq.s32.totalorder %s24, 0
      %p218 = por %p216, %p217
      %p219 = scmp.ne.s32.totalorder %s207, %s208
      %p220 = scmp.eq.s32.totalorder %s25, 1
      %p221 = por %p219, %p220
      %p223 = scmp.ne.s32.totalorder %s208, %s222
      %p224 = scmp.eq.s32.totalorder %s25, 0
      %p225 = por %p223, %p224
      %s227 = sadd.s32 %s226, 1
      %p230 = scmp.eq.s32.totalorder %s19, 1
      %p231 = scmp.ne.s32.totalorder %s226, %s228
      %p232 = scmp.eq.s32.totalorder %s19, 0
      %p233 = por %p231, %p232
      %p234 = scmp.ne.s32.totalorder %s226, %s228
      %p235 = scmp.eq.s32.totalorder %s24, 1
      %p236 = por %p234, %p235
      %p237 = scmp.ne.s32.totalorder %s228, %s229
      %p238 = scmp.eq.s32.totalorder %s24, 0
      %p239 = por %p237, %p238
      %p240 = scmp.ne.s32.totalorder %s228, %s229
      %p241 = scmp.eq.s32.totalorder %s25, 1
      %p242 = por %p240, %p241
      %p244 = scmp.ne.s32.totalorder %s229, %s243
      %p245 = scmp.eq.s32.totalorder %s25, 0
      %p246 = por %p244, %p245
      %s247 = ssub.s32 %s19, %s26
      %p248 = scmp.eq.s32.totalorder %s247, 0
      %s250 = sadd.s32 %s249, 1
      %s251 = scalar_select %p248, %s249, %s250
      %p254 = pneg %p248
      %p255 = scmp.eq.s32.totalorder %s19, 1
      %p256 = por %p254, %p255
      %p257 = scmp.ne.s32.totalorder %s249, %s252
      %p258 = scmp.eq.s32.totalorder %s19, 0
      %p259 = por %p257, %p258
      %p260 = scmp.ne.s32.totalorder %s249, %s252
      %p261 = scmp.eq.s32.totalorder %s24, 1
      %p262 = por %p260, %p261
      %p263 = scmp.ne.s32.totalorder %s252, %s253
      %p264 = scmp.eq.s32.totalorder %s24, 0
      %p265 = por %p263, %p264
      %p266 = scmp.ne.s32.totalorder %s252, %s253
      %p267 = scmp.eq.s32.totalorder %s25, 1
      %p268 = por %p266, %p267
      %p270 = scmp.ne.s32.totalorder %s253, %s269
      %p271 = scmp.eq.s32.totalorder %s25, 0
      %p272 = por %p270, %p271
      %p273 = scmp.le.s32.totalorder 1, %s19
      %p274 = scmp.lt.s32.totalorder %s19, 3
      %p275 = pnand %p273, %p274
      %p276 = pneg %p275
      // Predicated region
      $region9: #{attention_pool_2d.1} parent=5 // pred_check
        _
      $region10: #{attention_pool_2d.1} parent=5 // pred_check_branch
        %278 = sbr.rel (%p275) target = $region12
      $region11: #{attention_pool_2d.1} parent=5 // pred_region
        %s279 = ssub.s32 %s19, 1
        // Predicated region
        $region13: #{attention_pool_2d.1} parent=11 // pred_check
          %p280 = pneg %p92
        $region14: #{attention_pool_2d.1} parent=11 // pred_check_branch
          %282 = sbr.rel (%p280) target = $region16
        $region15: #{attention_pool_2d.1} parent=11 // pred_region
          _
        $region16: #{attention_pool_2d.1} parent=11 // pred_fallthru
          _
        // Predicated region
        $region17: #{attention_pool_2d.1} parent=11 // pred_check
          %p283 = pneg %p113
        $region18: #{attention_pool_2d.1} parent=11 // pred_check_branch
          %285 = sbr.rel (%p283) target = $region20
        $region19: #{attention_pool_2d.1} parent=11 // pred_region
          _
        $region20: #{attention_pool_2d.1} parent=11 // pred_fallthru
          _
        // Predicated region
        $region21: #{attention_pool_2d.1} parent=11 // pred_check
          %p286 = pneg %p134
        $region22: #{attention_pool_2d.1} parent=11 // pred_check_branch
          %288 = sbr.rel (%p286) target = $region24
        $region23: #{attention_pool_2d.1} parent=11 // pred_region
          _
        $region24: #{attention_pool_2d.1} parent=11 // pred_fallthru
          _
        // Predicated region
        $region25: #{attention_pool_2d.1} parent=11 // pred_check
          %p289 = pneg %p155
        $region26: #{attention_pool_2d.1} parent=11 // pred_check_branch
          %291 = sbr.rel (%p289) target = $region28
        $region27: #{attention_pool_2d.1} parent=11 // pred_region
          _
        $region28: #{attention_pool_2d.1} parent=11 // pred_fallthru
          _
        // Predicated region
        $region29: #{attention_pool_2d.1} parent=11 // pred_check
          %p292 = pneg %p176
        $region30: #{attention_pool_2d.1} parent=11 // pred_check_branch
          %294 = sbr.rel (%p292) target = $region32
        $region31: #{attention_pool_2d.1} parent=11 // pred_region
          _
        $region32: #{attention_pool_2d.1} parent=11 // pred_fallthru
          _
        // Predicated region
        $region33: #{attention_pool_2d.1} parent=11 // pred_check
          %p295 = pneg %p197
        $region34: #{attention_pool_2d.1} parent=11 // pred_check_branch
          %297 = sbr.rel (%p295) target = $region36
        $region35: #{attention_pool_2d.1} parent=11 // pred_region
          _
        $region36: #{attention_pool_2d.1} parent=11 // pred_fallthru
          _
        // Predicated region
        $region37: #{attention_pool_2d.1} parent=11 // pred_check
          %p298 = pneg %p218
        $region38: #{attention_pool_2d.1} parent=11 // pred_check_branch
          %300 = sbr.rel (%p298) target = $region40
        $region39: #{attention_pool_2d.1} parent=11 // pred_region
          _
        $region40: #{attention_pool_2d.1} parent=11 // pred_fallthru
          _
        // Predicated region
        $region41: #{attention_pool_2d.1} parent=11 // pred_check
          %p301 = pneg %p239
        $region42: #{attention_pool_2d.1} parent=11 // pred_check_branch
          %303 = sbr.rel (%p301) target = $region44
        $region43: #{attention_pool_2d.1} parent=11 // pred_region
          _
        $region44: #{attention_pool_2d.1} parent=11 // pred_fallthru
          _
      $region12: #{attention_pool_2d.1} parent=5 // pred_fallthru
        _
      %p304 = scmp.lt.s32.totalorder %s19, 2
      // Predicated region
      $region45: #{attention_pool_2d.1} parent=5 // pred_check
        %p305 = pneg %p304
      $region46: #{attention_pool_2d.1} parent=5 // pred_check_branch
        %307 = sbr.rel (%p305) target = $region48
      $region47: #{attention_pool_2d.1} parent=5 // pred_region
        // Predicated region
        $region49: #{attention_pool_2d.1} parent=47 // pred_check
          %p308 = pneg %p39
        $region50: #{attention_pool_2d.1} parent=47 // pred_check_branch
          %310 = sbr.rel (%p308) target = $region52
        $region51: #{attention_pool_2d.1} parent=47 // pred_region
          %s311 = smul.u32 56, %s19
          %p312 = scmp.lt.s32.totalorder %s311, 111
          %s313 = scalar_select %p312, %s311, 111
          %s314 = smul.addr %s313, 8
          %s315 = scalar_lea.vmem %s0, %s314
          %s316 = smul.u32 56, %s19
        $region52: #{attention_pool_2d.1} parent=47 // pred_fallthru
          _
        // Predicated region
        $region53: #{attention_pool_2d.1} parent=47 // pred_check
          %p317 = pneg %p65
        $region54: #{attention_pool_2d.1} parent=47 // pred_check_branch
          %319 = sbr.rel (%p317) target = $region56
        $region55: #{attention_pool_2d.1} parent=47 // pred_region
          %p320 = scmp.lt.s32.totalorder %s19, 1
          %s321 = scalar_select %p320, %s19, 1
          %s322 = smul.addr %s321, 8
          %s323 = scalar_lea.vmem %s1, %s322
        $region56: #{attention_pool_2d.1} parent=47 // pred_fallthru
          _
      $region48: #{attention_pool_2d.1} parent=5 // pred_fallthru
        _
      %p324 = scmp.le.s32.totalorder 1, %s19
      %p325 = scmp.lt.s32.totalorder %s19, 3
      %p326 = pnand %p324, %p325
      %p327 = pneg %p326
      // Predicated region
      $region57: #{attention_pool_2d.1} parent=5 // pred_check
        _
      $region58: #{attention_pool_2d.1} parent=5 // pred_check_branch
        %329 = sbr.rel (%p326) target = $region60
      $region59: #{attention_pool_2d.1} parent=5 // pred_region
        %s330 = ssub.s32 %s19, 1
        %s331 = smul.u32 56, %s24
        %p332 = scmp.lt.s32.totalorder %s331, 111
        %s333 = scalar_select %p332, %s331, 111
        %s334 = smul.addr %s333, 8
        %s335 = scalar_lea.vmem %s0, %s334
        %p336 = pneg %p45
        %p337 = pneg %p42
        %p338 = scmp.lt.s32.totalorder %s24, 1
        %s339 = scalar_select %p338, %s24, 1
        %s340 = smul.addr %s339, 8
        %s341 = scalar_lea.vmem %s1, %s340
        %p342 = pneg %p71
        %p343 = pneg %p68
        %p344 = pneg %p92
        %p345 = pneg %p89
        %p346 = pneg %p113
        %p347 = pneg %p110
        %p348 = pneg %p134
        %p349 = pneg %p131
        %p350 = pneg %p155
        %p351 = pneg %p152
        %p352 = pneg %p176
        %p353 = pneg %p173
        %p354 = pneg %p197
        %p355 = pneg %p194
        %p356 = pneg %p218
        %p357 = pneg %p215
        %p358 = pneg %p239
        %p359 = pneg %p236
        %p360 = pneg %p265
        %p361 = pneg %p262
        %s362 = sand.u32 %s252, 1
        %s363 = scalar_lea.sflag [#allocation3], %s362
        %s364 = sand.u32 %s252, 1
        %s365 = smul.addr %s364, 16
        %s366 = scalar_lea.vmem [#allocation2], %s365
        %s367 = smul.u32 56, %s24
        %p368 = scmp.lt.s32.totalorder %s367, 111
        %s369 = scalar_select %p368, %s367, 111
        %s370 = smul.addr %s369, 8
        %s371 = scalar_lea.vmem %s0, %s370
        %s372 = smul.u32 56, %s24
        %p373 = scmp.lt.s32.totalorder %s24, 1
        %s374 = scalar_select %p373, %s24, 1
        %s375 = smul.addr %s374, 8
        %s376 = scalar_lea.vmem %s1, %s375
        %v377 = vld [vmem:[%s371] sm:$0xff]
        %v378 = vld [vmem:[%s371 + $0x8] sm:$0xff]
        %v379 = vld [vmem:[%s371 + $0x10] sm:$0xff]
        %v380 = vld [vmem:[%s371 + $0x18] sm:$0xff]
        %v381 = vld [vmem:[%s371 + $0x20] sm:$0xff]
        %v382 = vld [vmem:[%s371 + $0x28] sm:$0xff]
        %v383 = vld [vmem:[%s371 + $0x30] sm:$0xff]
        %v384 = vld [vmem:[%s371 + $0x38] sm:$0xff]
        %v385 = vld [vmem:[%s371 + $0x40] sm:$0xff]
        %v386 = vld [vmem:[%s371 + $0x48] sm:$0xff]
        %v387 = vld [vmem:[%s371 + $0x50] sm:$0xff]
        %v388 = vld [vmem:[%s371 + $0x58] sm:$0xff]
        %v389 = vld [vmem:[%s371 + $0x60] sm:$0xff]
        %v390 = vld [vmem:[%s371 + $0x68] sm:$0xff]
        %v391 = vld [vmem:[%s371 + $0x70] sm:$0xff]
        %v392 = vld [vmem:[%s371 + $0x78] sm:$0xff]
        %v393 = vld [vmem:[%s371 + $0x80] sm:$0xff]
        %v394 = vld [vmem:[%s371 + $0x88] sm:$0xff]
        %v395 = vld [vmem:[%s371 + $0x90] sm:$0xff]
        %v396 = vld [vmem:[%s371 + $0x98] sm:$0xff]
        %v397 = vld [vmem:[%s371 + $0xa0] sm:$0xff]
        %v398 = vld [vmem:[%s371 + $0xa8] sm:$0xff]
        %v399 = vld [vmem:[%s371 + $0xb0] sm:$0xff]
        %v400 = vld [vmem:[%s371 + $0xb8] sm:$0xff]
        %v401 = vld [vmem:[%s371 + $0xc0] sm:$0xff]
        %v402 = vld [vmem:[%s371 + $0xc8] sm:$0xff]
        %v403 = vld [vmem:[%s371 + $0xd0] sm:$0xff]
        %v404 = vld [vmem:[%s371 + $0xd8] sm:$0xff]
        %v405 = vld [vmem:[%s371 + $0xe0] sm:$0xff]
        %v406 = vld [vmem:[%s371 + $0xe8] sm:$0xff]
        %v407 = vld [vmem:[%s371 + $0xf0] sm:$0xff]
        %v408 = vld [vmem:[%s371 + $0xf8] sm:$0xff]
        %v409 = vld [vmem:[%s371 + $0x100] sm:$0xff]
        %v410 = vld [vmem:[%s371 + $0x108] sm:$0xff]
        %v411 = vld [vmem:[%s371 + $0x110] sm:$0xff]
        %v412 = vld [vmem:[%s371 + $0x118] sm:$0xff]
        %v413 = vld [vmem:[%s371 + $0x120] sm:$0xff]
        %v414 = vld [vmem:[%s371 + $0x128] sm:$0xff]
        %v415 = vld [vmem:[%s371 + $0x130] sm:$0xff]
        %v416 = vld [vmem:[%s371 + $0x138] sm:$0xff]
        %v417 = vld [vmem:[%s371 + $0x140] sm:$0xff]
        %v418 = vld [vmem:[%s371 + $0x148] sm:$0xff]
        %v419 = vld [vmem:[%s371 + $0x150] sm:$0xff]
        %v420 = vld [vmem:[%s371 + $0x158] sm:$0xff]
        %v421 = vld [vmem:[%s371 + $0x160] sm:$0xff]
        %v422 = vld [vmem:[%s371 + $0x168] sm:$0xff]
        %v423 = vld [vmem:[%s371 + $0x170] sm:$0xff]
        %v424 = vld [vmem:[%s371 + $0x178] sm:$0xff]
        %v425 = vld [vmem:[%s371 + $0x180] sm:$0xff]
        %v426 = vld [vmem:[%s371 + $0x188] sm:$0xff]
        %v427 = vld [vmem:[%s371 + $0x190] sm:$0xff]
        %v428 = vld [vmem:[%s371 + $0x198] sm:$0xff]
        %v429 = vld [vmem:[%s371 + $0x1a0] sm:$0xff]
        %v430 = vld [vmem:[%s371 + $0x1a8] sm:$0xff]
        %v431 = vld [vmem:[%s371 + $0x1b0] sm:$0xff]
        %v432 = vld [vmem:[%s371 + $0x1b8] sm:$0xff]
        %v433 = vld [vmem:[%s376] sm:$0xff]
        %v434 = vld [vmem:[%s4] sm:$0xff]
        %v435 = vld [vmem:[%s4 + $0x8] sm:$0xff]
        %v436 = vld [vmem:[%s4 + $0x10] sm:$0xff]
        %v437 = vld [vmem:[%s4 + $0x18] sm:$0xff]
        %v438 = vld [vmem:[%s4 + $0x20] sm:$0xff]
        %v439 = vld [vmem:[%s4 + $0x28] sm:$0xff]
        %v440 = vld [vmem:[%s4 + $0x30] sm:$0xff]
        %v441 = vld [vmem:[%s4 + $0x38] sm:$0xff]
        %v442 = vld [vmem:[%s4 + $0x40] sm:$0xff]
        %v443 = vld [vmem:[%s4 + $0x48] sm:$0xff]
        %v444 = vld [vmem:[%s4 + $0x50] sm:$0xff]
        %v445 = vld [vmem:[%s4 + $0x58] sm:$0xff]
        %v446 = vld [vmem:[%s4 + $0x60] sm:$0xff]
        %v447 = vld [vmem:[%s4 + $0x68] sm:$0xff]
        %v448 = vld [vmem:[%s4 + $0x70] sm:$0xff]
        %v449 = vld [vmem:[%s4 + $0x78] sm:$0xff]
        %v450 = vld [vmem:[%s5] sm:$0x1]
        %v452 = vlaneseq
        %v453 = vshrl.u32 %v452, 7
        %v454 = vsub.s32 0, %v453
        %v455 = vrot.slane %v450, %v454
        %457 = vmatprep.subr.mxu0 0.0
        %458 = vmatpush1.msra.mxu0 %v434
        %459 = vmatprep.subr.mxu0 0.0
        %460 = vmatpush1.msra.mxu0 %v435
        %461 = vmatprep.subr.mxu0 0.0
        %462 = vmatpush1.msra.mxu0 %v436
        %463 = vmatprep.subr.mxu0 0.0
        %464 = vmatpush1.msra.mxu0 %v437
        %465 = vmatprep.subr.mxu0 0.0
        %466 = vmatpush1.msra.mxu0 %v438
        %467 = vmatprep.subr.mxu0 0.0
        %468 = vmatpush1.msra.mxu0 %v439
        %469 = vmatprep.subr.mxu0 0.0
        %470 = vmatpush1.msra.mxu0 %v440
        %471 = vmatprep.subr.mxu0 0.0
        %472 = vmatpush1.msra.mxu0 %v441
        %473 = vmatprep.subr.mxu0 0.0
        %474 = vmatpush1.msra.mxu0 %v442
        %475 = vmatprep.subr.mxu0 0.0
        %476 = vmatpush1.msra.mxu0 %v443
        %477 = vmatprep.subr.mxu0 0.0
        %478 = vmatpush1.msra.mxu0 %v444
        %479 = vmatprep.subr.mxu0 0.0
        %480 = vmatpush1.msra.mxu0 %v445
        %481 = vmatprep.subr.mxu0 0.0
        %482 = vmatpush1.msra.mxu0 %v446
        %483 = vmatprep.subr.mxu0 0.0
        %484 = vmatpush1.msra.mxu0 %v447
        %485 = vmatprep.subr.mxu0 0.0
        %486 = vmatpush1.msra.mxu0 %v448
        %487 = vmatprep.subr.mxu0 0.0
        %488 = vmatpush1.msra.mxu0 %v449
        %489 = vmatprep.subr.mxu0 0.0
        %490 = vmatpush1.msra.mxu0 0.0
        %491 = vmatprep.subr.mxu0 0.0
        %492 = vmatpush1.msra.mxu0 0.0
        %493 = vmatprep.subr.mxu0 0.0
        %494 = vmatpush1.msra.mxu0 0.0
        %495 = vmatprep.subr.mxu0 0.0
        %496 = vmatpush1.msra.mxu0 0.0
        %497 = vmatprep.subr.mxu0 0.0
        %498 = vmatpush1.msra.mxu0 0.0
        %499 = vmatprep.subr.mxu0 0.0
        %500 = vmatpush1.msra.mxu0 0.0
        %501 = vmatprep.subr.mxu0 0.0
        %502 = vmatpush1.msra.mxu0 0.0
        %503 = vmatprep.subr.mxu0 0.0
        %504 = vmatpush1.msra.mxu0 0.0
        %505 = vmatprep.subr.mxu0 0.0
        %506 = vmatpush1.msra.mxu0 0.0
        %507 = vmatprep.subr.mxu0 0.0
        %508 = vmatpush1.msra.mxu0 0.0
        %509 = vmatprep.subr.mxu0 0.0
        %510 = vmatpush1.msra.mxu0 0.0
        %511 = vmatprep.subr.mxu0 0.0
        %512 = vmatpush1.msra.mxu0 0.0
        %513 = vmatprep.subr.mxu0 0.0
        %514 = vmatpush1.msra.mxu0 0.0
        %515 = vmatprep.subr.mxu0 0.0
        %516 = vmatpush1.msra.mxu0 0.0
        %517 = vmatprep.subr.mxu0 0.0
        %518 = vmatpush1.msra.mxu0 0.0
        %519 = vmatprep.subr.mxu0 0.0
        %520 = vmatpush1.msra.mxu0 0.0
        %521 = vmatprep.mubr.f32.mxu0 0.0
        %522 = vmatmul.mubr.f32.gmra.mrb[0].mxu0 %v377
        %v523 = vpop.f32.mrb[0].mxu0
        %v524 = vadd.f32 %v455, %v523
        %v525 = vpop.f32.mrb[0].mxu0
        %526 = vmatprep.mubr.f32.mxu0 0.0
        %527 = vmatmul.mubr.f32.gmra.mrb[0].mxu0 %v378
        %v528 = vpop.f32.mrb[0].mxu0
        %v529 = vadd.f32 %v455, %v528
        %v530 = vpop.f32.mrb[0].mxu0
        %531 = vmatprep.mubr.f32.mxu0 0.0
        %532 = vmatmul.mubr.f32.gmra.mrb[0].mxu0 %v379
        %v533 = vpop.f32.mrb[0].mxu0
        %v534 = vadd.f32 %v455, %v533
        %v535 = vpop.f32.mrb[0].mxu0
        %536 = vmatprep.mubr.f32.mxu0 0.0
        %537 = vmatmul.mubr.f32.gmra.mrb[0].mxu0 %v380
        %v538 = vpop.f32.mrb[0].mxu0
        %v539 = vadd.f32 %v455, %v538
        %v540 = vpop.f32.mrb[0].mxu0
        %541 = vmatprep.mubr.f32.mxu0 0.0
        %542 = vmatmul.mubr.f32.gmra.mrb[0].mxu0 %v381
        %v543 = vpop.f32.mrb[0].mxu0
        %v544 = vadd.f32 %v455, %v543
        %v545 = vpop.f32.mrb[0].mxu0
        %546 = vmatprep.mubr.f32.mxu0 0.0
        %547 = vmatmul.mubr.f32.gmra.mrb[0].mxu0 %v382
        %v548 = vpop.f32.mrb[0].mxu0
        %v549 = vadd.f32 %v455, %v548
        %v550 = vpop.f32.mrb[0].mxu0
        %551 = vmatprep.mubr.f32.mxu0 0.0
        %552 = vmatmul.mubr.f32.gmra.mrb[0].mxu0 %v383
        %v553 = vpop.f32.mrb[0].mxu0
        %v554 = vadd.f32 %v455, %v553
        %v555 = vpop.f32.mrb[0].mxu0
        %556 = vmatprep.mubr.f32.mxu0 0.0
        %557 = vmatmul.mubr.f32.gmra.mrb[0].mxu0 %v384
        %v558 = vpop.f32.mrb[0].mxu0
        %v559 = vadd.f32 %v455, %v558
        %v560 = vpop.f32.mrb[0].mxu0
        %561 = vmatprep.mubr.f32.mxu0 0.0
        %562 = vmatmul.mubr.f32.gmra.mrb[0].mxu0 %v385
        %v563 = vpop.f32.mrb[0].mxu0
        %v564 = vadd.f32 %v455, %v563
        %v565 = vpop.f32.mrb[0].mxu0
        %566 = vmatprep.mubr.f32.mxu0 0.0
        %567 = vmatmul.mubr.f32.gmra.mrb[0].mxu0 %v386
        %v568 = vpop.f32.mrb[0].mxu0
        %v569 = vadd.f32 %v455, %v568
        %v570 = vpop.f32.mrb[0].mxu0
        %571 = vmatprep.mubr.f32.mxu0 0.0
        %572 = vmatmul.mubr.f32.gmra.mrb[0].mxu0 %v387
        %v573 = vpop.f32.mrb[0].mxu0
        %v574 = vadd.f32 %v455, %v573
        %v575 = vpop.f32.mrb[0].mxu0
        %576 = vmatprep.mubr.f32.mxu0 0.0
        %577 = vmatmul.mubr.f32.gmra.mrb[0].mxu0 %v388
        %v578 = vpop.f32.mrb[0].mxu0
        %v579 = vadd.f32 %v455, %v578
        %v580 = vpop.f32.mrb[0].mxu0
        %581 = vmatprep.mubr.f32.mxu0 0.0
        %582 = vmatmul.mubr.f32.gmra.mrb[0].mxu0 %v389
        %v583 = vpop.f32.mrb[0].mxu0
        %v584 = vadd.f32 %v455, %v583
        %v585 = vpop.f32.mrb[0].mxu0
        %586 = vmatprep.mubr.f32.mxu0 0.0
        %587 = vmatmul.mubr.f32.gmra.mrb[0].mxu0 %v390
        %v588 = vpop.f32.mrb[0].mxu0
        %v589 = vadd.f32 %v455, %v588
        %v590 = vpop.f32.mrb[0].mxu0
        %591 = vmatprep.mubr.f32.mxu0 0.0
        %592 = vmatmul.mubr.f32.gmra.mrb[0].mxu0 %v391
        %v593 = vpop.f32.mrb[0].mxu0
        %v594 = vadd.f32 %v455, %v593
        %v595 = vpop.f32.mrb[0].mxu0
        %596 = vmatprep.mubr.f32.mxu0 0.0
        %597 = vmatmul.mubr.f32.gmra.mrb[0].mxu0 %v392
        %v598 = vpop.f32.mrb[0].mxu0
        %v599 = vadd.f32 %v455, %v598
        %v600 = vpop.f32.mrb[0].mxu0
        %601 = vmatprep.mubr.f32.mxu0 0.0
        %602 = vmatmul.mubr.f32.gmra.mrb[0].mxu0 %v393
        %v603 = vpop.f32.mrb[0].mxu0
        %v604 = vadd.f32 %v455, %v603
        %v605 = vpop.f32.mrb[0].mxu0
        %606 = vmatprep.mubr.f32.mxu0 0.0
        %607 = vmatmul.mubr.f32.gmra.mrb[0].mxu0 %v394
        %v608 = vpop.f32.mrb[0].mxu0
        %v609 = vadd.f32 %v455, %v608
        %v610 = vpop.f32.mrb[0].mxu0
        %611 = vmatprep.mubr.f32.mxu0 0.0
        %612 = vmatmul.mubr.f32.gmra.mrb[0].mxu0 %v395
        %v613 = vpop.f32.mrb[0].mxu0
        %v614 = vadd.f32 %v455, %v613
        %v615 = vpop.f32.mrb[0].mxu0
        %616 = vmatprep.mubr.f32.mxu0 0.0
        %617 = vmatmul.mubr.f32.gmra.mrb[0].mxu0 %v396
        %v618 = vpop.f32.mrb[0].mxu0
        %v619 = vadd.f32 %v455, %v618
        %v620 = vpop.f32.mrb[0].mxu0
        %621 = vmatprep.mubr.f32.mxu0 0.0
        %622 = vmatmul.mubr.f32.gmra.mrb[0].mxu0 %v397
        %v623 = vpop.f32.mrb[0].mxu0
        %v624 = vadd.f32 %v455, %v623
        %v625 = vpop.f32.mrb[0].mxu0
        %626 = vmatprep.mubr.f32.mxu0 0.0
        %627 = vmatmul.mubr.f32.gmra.mrb[0].mxu0 %v398
        %v628 = vpop.f32.mrb[0].mxu0
        %v629 = vadd.f32 %v455, %v628
        %v630 = vpop.f32.mrb[0].mxu0
        %631 = vmatprep.mubr.f32.mxu0 0.0
        %632 = vmatmul.mubr.f32.gmra.mrb[0].mxu0 %v399
        %v633 = vpop.f32.mrb[0].mxu0
        %v634 = vadd.f32 %v455, %v633
        %v635 = vpop.f32.mrb[0].mxu0
        %636 = vmatprep.mubr.f32.mxu0 0.0
        %637 = vmatmul.mubr.f32.gmra.mrb[0].mxu0 %v400
        %v638 = vpop.f32.mrb[0].mxu0
        %v639 = vadd.f32 %v455, %v638
        %v640 = vpop.f32.mrb[0].mxu0
        %641 = vmatprep.mubr.f32.mxu0 0.0
        %642 = vmatmul.mubr.f32.gmra.mrb[0].mxu0 %v401
        %v643 = vpop.f32.mrb[0].mxu0
        %v644 = vadd.f32 %v455, %v643
        %v645 = vpop.f32.mrb[0].mxu0
        %646 = vmatprep.mubr.f32.mxu0 0.0
        %647 = vmatmul.mubr.f32.gmra.mrb[0].mxu0 %v402
        %v648 = vpop.f32.mrb[0].mxu0
        %v649 = vadd.f32 %v455, %v648
        %v650 = vpop.f32.mrb[0].mxu0
        %651 = vmatprep.mubr.f32.mxu0 0.0
        %652 = vmatmul.mubr.f32.gmra.mrb[0].mxu0 %v403
        %v653 = vpop.f32.mrb[0].mxu0
        %v654 = vadd.f32 %v455, %v653
        %v655 = vpop.f32.mrb[0].mxu0
        %656 = vmatprep.mubr.f32.mxu0 0.0
        %657 = vmatmul.mubr.f32.gmra.mrb[0].mxu0 %v404
        %v658 = vpop.f32.mrb[0].mxu0
        %v659 = vadd.f32 %v455, %v658
        %v660 = vpop.f32.mrb[0].mxu0
        %661 = vmatprep.mubr.f32.mxu0 0.0
        %662 = vmatmul.mubr.f32.gmra.mrb[0].mxu0 %v405
        %v663 = vpop.f32.mrb[0].mxu0
        %v664 = vadd.f32 %v455, %v663
        %v665 = vpop.f32.mrb[0].mxu0
        %666 = vmatprep.mubr.f32.mxu0 0.0
        %667 = vmatmul.mubr.f32.gmra.mrb[0].mxu0 %v406
        %v668 = vpop.f32.mrb[0].mxu0
        %v669 = vadd.f32 %v455, %v668
        %v670 = vpop.f32.mrb[0].mxu0
        %671 = vmatprep.mubr.f32.mxu0 0.0
        %672 = vmatmul.mubr.f32.gmra.mrb[0].mxu0 %v407
        %v673 = vpop.f32.mrb[0].mxu0
        %v674 = vadd.f32 %v455, %v673
        %v675 = vpop.f32.mrb[0].mxu0
        %676 = vmatprep.mubr.f32.mxu0 0.0
        %677 = vmatmul.mubr.f32.gmra.mrb[0].mxu0 %v408
        %v678 = vpop.f32.mrb[0].mxu0
        %v679 = vadd.f32 %v455, %v678
        %v680 = vpop.f32.mrb[0].mxu0
        %681 = vmatprep.mubr.f32.mxu0 0.0
        %682 = vmatmul.mubr.f32.gmra.mrb[0].mxu0 %v409
        %v683 = vpop.f32.mrb[0].mxu0
        %v684 = vadd.f32 %v455, %v683
        %v685 = vpop.f32.mrb[0].mxu0
        %686 = vmatprep.mubr.f32.mxu0 0.0
        %687 = vmatmul.mubr.f32.gmra.mrb[0].mxu0 %v410
        %v688 = vpop.f32.mrb[0].mxu0
        %v689 = vadd.f32 %v455, %v688
        %v690 = vpop.f32.mrb[0].mxu0
        %691 = vmatprep.mubr.f32.mxu0 0.0
        %692 = vmatmul.mubr.f32.gmra.mrb[0].mxu0 %v411
        %v693 = vpop.f32.mrb[0].mxu0
        %v694 = vadd.f32 %v455, %v693
        %v695 = vpop.f32.mrb[0].mxu0
        %696 = vmatprep.mubr.f32.mxu0 0.0
        %697 = vmatmul.mubr.f32.gmra.mrb[0].mxu0 %v412
        %v698 = vpop.f32.mrb[0].mxu0
        %v699 = vadd.f32 %v455, %v698
        %v700 = vpop.f32.mrb[0].mxu0
        %701 = vmatprep.mubr.f32.mxu0 0.0
        %702 = vmatmul.mubr.f32.gmra.mrb[0].mxu0 %v413
        %v703 = vpop.f32.mrb[0].mxu0
        %v704 = vadd.f32 %v455, %v703
        %v705 = vpop.f32.mrb[0].mxu0
        %706 = vmatprep.mubr.f32.mxu0 0.0
        %707 = vmatmul.mubr.f32.gmra.mrb[0].mxu0 %v414
        %v708 = vpop.f32.mrb[0].mxu0
        %v709 = vadd.f32 %v455, %v708
        %v710 = vpop.f32.mrb[0].mxu0
        %711 = vmatprep.mubr.f32.mxu0 0.0
        %712 = vmatmul.mubr.f32.gmra.mrb[0].mxu0 %v415
        %v713 = vpop.f32.mrb[0].mxu0
        %v714 = vadd.f32 %v455, %v713
        %v715 = vpop.f32.mrb[0].mxu0
        %716 = vmatprep.mubr.f32.mxu0 0.0
        %717 = vmatmul.mubr.f32.gmra.mrb[0].mxu0 %v416
        %v718 = vpop.f32.mrb[0].mxu0
        %v719 = vadd.f32 %v455, %v718
        %v720 = vpop.f32.mrb[0].mxu0
        %721 = vmatprep.mubr.f32.mxu0 0.0
        %722 = vmatmul.mubr.f32.gmra.mrb[0].mxu0 %v417
        %v723 = vpop.f32.mrb[0].mxu0
        %v724 = vadd.f32 %v455, %v723
        %v725 = vpop.f32.mrb[0].mxu0
        %726 = vmatprep.mubr.f32.mxu0 0.0
        %727 = vmatmul.mubr.f32.gmra.mrb[0].mxu0 %v418
        %v728 = vpop.f32.mrb[0].mxu0
        %v729 = vadd.f32 %v455, %v728
        %v730 = vpop.f32.mrb[0].mxu0
        %731 = vmatprep.mubr.f32.mxu0 0.0
        %732 = vmatmul.mubr.f32.gmra.mrb[0].mxu0 %v419
        %v733 = vpop.f32.mrb[0].mxu0
        %v734 = vadd.f32 %v455, %v733
        %v735 = vpop.f32.mrb[0].mxu0
        %736 = vmatprep.mubr.f32.mxu0 0.0
        %737 = vmatmul.mubr.f32.gmra.mrb[0].mxu0 %v420
        %v738 = vpop.f32.mrb[0].mxu0
        %v739 = vadd.f32 %v455, %v738
        %v740 = vpop.f32.mrb[0].mxu0
        %741 = vmatprep.mubr.f32.mxu0 0.0
        %742 = vmatmul.mubr.f32.gmra.mrb[0].mxu0 %v421
        %v743 = vpop.f32.mrb[0].mxu0
        %v744 = vadd.f32 %v455, %v743
        %v745 = vpop.f32.mrb[0].mxu0
        %746 = vmatprep.mubr.f32.mxu0 0.0
        %747 = vmatmul.mubr.f32.gmra.mrb[0].mxu0 %v422
        %v748 = vpop.f32.mrb[0].mxu0
        %v749 = vadd.f32 %v455, %v748
        %v750 = vpop.f32.mrb[0].mxu0
        %751 = vmatprep.mubr.f32.mxu0 0.0
        %752 = vmatmul.mubr.f32.gmra.mrb[0].mxu0 %v423
        %v753 = vpop.f32.mrb[0].mxu0
        %v754 = vadd.f32 %v455, %v753
        %v755 = vpop.f32.mrb[0].mxu0
        %756 = vmatprep.mubr.f32.mxu0 0.0
        %757 = vmatmul.mubr.f32.gmra.mrb[0].mxu0 %v424
        %v758 = vpop.f32.mrb[0].mxu0
        %v759 = vadd.f32 %v455, %v758
        %v760 = vpop.f32.mrb[0].mxu0
        %761 = vmatprep.mubr.f32.mxu0 0.0
        %762 = vmatmul.mubr.f32.gmra.mrb[0].mxu0 %v425
        %v763 = vpop.f32.mrb[0].mxu0
        %v764 = vadd.f32 %v455, %v763
        %v765 = vpop.f32.mrb[0].mxu0
        %766 = vmatprep.mubr.f32.mxu0 0.0
        %767 = vmatmul.mubr.f32.gmra.mrb[0].mxu0 %v426
        %v768 = vpop.f32.mrb[0].mxu0
        %v769 = vadd.f32 %v455, %v768
        %v770 = vpop.f32.mrb[0].mxu0
        %771 = vmatprep.mubr.f32.mxu0 0.0
        %772 = vmatmul.mubr.f32.gmra.mrb[0].mxu0 %v427
        %v773 = vpop.f32.mrb[0].mxu0
        %v774 = vadd.f32 %v455, %v773
        %v775 = vpop.f32.mrb[0].mxu0
        %776 = vmatprep.mubr.f32.mxu0 0.0
        %777 = vmatmul.mubr.f32.gmra.mrb[0].mxu0 %v428
        %v778 = vpop.f32.mrb[0].mxu0
        %v779 = vadd.f32 %v455, %v778
        %v780 = vpop.f32.mrb[0].mxu0
        %781 = vmatprep.mubr.f32.mxu0 0.0
        %782 = vmatmul.mubr.f32.gmra.mrb[0].mxu0 %v429
        %v783 = vpop.f32.mrb[0].mxu0
        %v784 = vadd.f32 %v455, %v783
        %v785 = vpop.f32.mrb[0].mxu0
        %786 = vmatprep.mubr.f32.mxu0 0.0
        %787 = vmatmul.mubr.f32.gmra.mrb[0].mxu0 %v430
        %v788 = vpop.f32.mrb[0].mxu0
        %v789 = vadd.f32 %v455, %v788
        %v790 = vpop.f32.mrb[0].mxu0
        %791 = vmatprep.mubr.f32.mxu0 0.0
        %792 = vmatmul.mubr.f32.gmra.mrb[0].mxu0 %v431
        %v793 = vpop.f32.mrb[0].mxu0
        %v794 = vadd.f32 %v455, %v793
        %v795 = vpop.f32.mrb[0].mxu0
        %796 = vmatprep.mubr.f32.mxu0 0.0
        %797 = vmatmul.mubr.f32.gmra.mrb[0].mxu0 %v432
        %v798 = vpop.f32.mrb[0].mxu0
        %v799 = vadd.f32 %v455, %v798
        %v800 = vpop.f32.mrb[0].mxu0
        %801 = vdwg.mxu0
        %v802 = vld [vmem:[%s6] sm:$0xff]
        %v803 = vld [vmem:[%s6 + $0x8] sm:$0xff]
        %v804 = vld [vmem:[%s6 + $0x10] sm:$0xff]
        %v805 = vld [vmem:[%s6 + $0x18] sm:$0xff]
        %v806 = vld [vmem:[%s6 + $0x20] sm:$0xff]
        %v807 = vld [vmem:[%s6 + $0x28] sm:$0xff]
        %v808 = vld [vmem:[%s6 + $0x30] sm:$0xff]
        %v809 = vld [vmem:[%s6 + $0x38] sm:$0xff]
        %v810 = vld [vmem:[%s6 + $0x40] sm:$0xff]
        %v811 = vld [vmem:[%s6 + $0x48] sm:$0xff]
        %v812 = vld [vmem:[%s6 + $0x50] sm:$0xff]
        %v813 = vld [vmem:[%s6 + $0x58] sm:$0xff]
        %v814 = vld [vmem:[%s6 + $0x60] sm:$0xff]
        %v815 = vld [vmem:[%s6 + $0x68] sm:$0xff]
        %v816 = vld [vmem:[%s6 + $0x70] sm:$0xff]
        %v817 = vld [vmem:[%s6 + $0x78] sm:$0xff]
        %v818 = vld [vmem:[%s7] sm:$0x1]
        %v820 = vlaneseq
        %v821 = vshrl.u32 %v820, 7
        %v822 = vsub.s32 0, %v821
        %v823 = vrot.slane %v818, %v822
        %825 = vmatprep.subr.mxu0 0.0
        %826 = vmatpush1.msra.mxu0 %v802
        %827 = vmatprep.subr.mxu0 0.0
        %828 = vmatpush1.msra.mxu0 %v803
        %829 = vmatprep.subr.mxu0 0.0
        %830 = vmatpush1.msra.mxu0 %v804
        %831 = vmatprep.subr.mxu0 0.0
        %832 = vmatpush1.msra.mxu0 %v805
        %833 = vmatprep.subr.mxu0 0.0
        %834 = vmatpush1.msra.mxu0 %v806
        %835 = vmatprep.subr.mxu0 0.0
        %836 = vmatpush1.msra.mxu0 %v807
        %837 = vmatprep.subr.mxu0 0.0
        %838 = vmatpush1.msra.mxu0 %v808
        %839 = vmatprep.subr.mxu0 0.0
        %840 = vmatpush1.msra.mxu0 %v809
        %841 = vmatprep.subr.mxu0 0.0
        %842 = vmatpush1.msra.mxu0 %v810
        %843 = vmatprep.subr.mxu0 0.0
        %844 = vmatpush1.msra.mxu0 %v811
        %845 = vmatprep.subr.mxu0 0.0
        %846 = vmatpush1.msra.mxu0 %v812
        %847 = vmatprep.subr.mxu0 0.0
        %848 = vmatpush1.msra.mxu0 %v813
        %849 = vmatprep.subr.mxu0 0.0
        %850 = vmatpush1.msra.mxu0 %v814
        %851 = vmatprep.subr.mxu0 0.0
        %852 = vmatpush1.msra.mxu0 %v815
        %853 = vmatprep.subr.mxu0 0.0
        %854 = vmatpush1.msra.mxu0 %v816
        %855 = vmatprep.subr.mxu0 0.0
        %856 = vmatpush1.msra.mxu0 %v817
        %857 = vmatprep.subr.mxu0 0.0
        %858 = vmatpush1.msra.mxu0 0.0
        %859 = vmatprep.subr.mxu0 0.0
        %860 = vmatpush1.msra.mxu0 0.0
        %861 = vmatprep.subr.mxu0 0.0
        %862 = vmatpush1.msra.mxu0 0.0
        %863 = vmatprep.subr.mxu0 0.0
        %864 = vmatpush1.msra.mxu0 0.0
        %865 = vmatprep.subr.mxu0 0.0
        %866 = vmatpush1.msra.mxu0 0.0
        %867 = vmatprep.subr.mxu0 0.0
        %868 = vmatpush1.msra.mxu0 0.0
        %869 = vmatprep.subr.mxu0 0.0
        %870 = vmatpush1.msra.mxu0 0.0
        %871 = vmatprep.subr.mxu0 0.0
        %872 = vmatpush1.msra.mxu0 0.0
        %873 = vmatprep.subr.mxu0 0.0
        %874 = vmatpush1.msra.mxu0 0.0
        %875 = vmatprep.subr.mxu0 0.0
        %876 = vmatpush1.msra.mxu0 0.0
        %877 = vmatprep.subr.mxu0 0.0
        %878 = vmatpush1.msra.mxu0 0.0
        %879 = vmatprep.subr.mxu0 0.0
        %880 = vmatpush1.msra.mxu0 0.0
        %881 = vmatprep.subr.mxu0 0.0
        %882 = vmatpush1.msra.mxu0 0.0
        %883 = vmatprep.subr.mxu0 0.0
        %884 = vmatpush1.msra.mxu0 0.0
        %885 = vmatprep.subr.mxu0 0.0
        %886 = vmatpush1.msra.mxu0 0.0
        %887 = vmatprep.subr.mxu0 0.0
        %888 = vmatpush1.msra.mxu0 0.0
        %889 = vmatprep.mubr.f32.mxu0 0.0
        %890 = vmatmul.mubr.f32.gmra.mrb[0].mxu0 %v377
        %v891 = vpop.f32.mrb[0].mxu0
        %v892 = vadd.f32 %v823, %v891
        %v893 = vpop.f32.mrb[0].mxu0
        %894 = vmatprep.mubr.f32.mxu0 0.0
        %895 = vmatmul.mubr.f32.gmra.mrb[0].mxu0 %v378
        %v896 = vpop.f32.mrb[0].mxu0
        %v897 = vadd.f32 %v823, %v896
        %v898 = vpop.f32.mrb[0].mxu0
        %899 = vmatprep.mubr.f32.mxu0 0.0
        %900 = vmatmul.mubr.f32.gmra.mrb[0].mxu0 %v379
        %v901 = vpop.f32.mrb[0].mxu0
        %v902 = vadd.f32 %v823, %v901
        %v903 = vpop.f32.mrb[0].mxu0
        %904 = vmatprep.mubr.f32.mxu0 0.0
        %905 = vmatmul.mubr.f32.gmra.mrb[0].mxu0 %v380
        %v906 = vpop.f32.mrb[0].mxu0
        %v907 = vadd.f32 %v823, %v906
        %v908 = vpop.f32.mrb[0].mxu0
        %909 = vmatprep.mubr.f32.mxu0 0.0
        %910 = vmatmul.mubr.f32.gmra.mrb[0].mxu0 %v381
        %v911 = vpop.f32.mrb[0].mxu0
        %v912 = vadd.f32 %v823, %v911
        %v913 = vpop.f32.mrb[0].mxu0
        %914 = vmatprep.mubr.f32.mxu0 0.0
        %915 = vmatmul.mubr.f32.gmra.mrb[0].mxu0 %v382
        %v916 = vpop.f32.mrb[0].mxu0
        %v917 = vadd.f32 %v823, %v916
        %v918 = vpop.f32.mrb[0].mxu0
        %919 = vmatprep.mubr.f32.mxu0 0.0
        %920 = vmatmul.mubr.f32.gmra.mrb[0].mxu0 %v383
        %v921 = vpop.f32.mrb[0].mxu0
        %v922 = vadd.f32 %v823, %v921
        %v923 = vpop.f32.mrb[0].mxu0
        %924 = vmatprep.mubr.f32.mxu0 0.0
        %925 = vmatmul.mubr.f32.gmra.mrb[0].mxu0 %v384
        %v926 = vpop.f32.mrb[0].mxu0
        %v927 = vadd.f32 %v823, %v926
        %v928 = vpop.f32.mrb[0].mxu0
        %929 = vmatprep.mubr.f32.mxu0 0.0
        %930 = vmatmul.mubr.f32.gmra.mrb[0].mxu0 %v385
        %v931 = vpop.f32.mrb[0].mxu0
        %v932 = vadd.f32 %v823, %v931
        %v933 = vpop.f32.mrb[0].mxu0
        %934 = vmatprep.mubr.f32.mxu0 0.0
        %935 = vmatmul.mubr.f32.gmra.mrb[0].mxu0 %v386
        %v936 = vpop.f32.mrb[0].mxu0
        %v937 = vadd.f32 %v823, %v936
        %v938 = vpop.f32.mrb[0].mxu0
        %939 = vmatprep.mubr.f32.mxu0 0.0
        %940 = vmatmul.mubr.f32.gmra.mrb[0].mxu0 %v387
        %v941 = vpop.f32.mrb[0].mxu0
        %v942 = vadd.f32 %v823, %v941
        %v943 = vpop.f32.mrb[0].mxu0
        %944 = vmatprep.mubr.f32.mxu0 0.0
        %945 = vmatmul.mubr.f32.gmra.mrb[0].mxu0 %v388
        %v946 = vpop.f32.mrb[0].mxu0
        %v947 = vadd.f32 %v823, %v946
        %v948 = vpop.f32.mrb[0].mxu0
        %949 = vmatprep.mubr.f32.mxu0 0.0
        %950 = vmatmul.mubr.f32.gmra.mrb[0].mxu0 %v389
        %v951 = vpop.f32.mrb[0].mxu0
        %v952 = vadd.f32 %v823, %v951
        %v953 = vpop.f32.mrb[0].mxu0
        %954 = vmatprep.mubr.f32.mxu0 0.0
        %955 = vmatmul.mubr.f32.gmra.mrb[0].mxu0 %v390
        %v956 = vpop.f32.mrb[0].mxu0
        %v957 = vadd.f32 %v823, %v956
        %v958 = vpop.f32.mrb[0].mxu0
        %959 = vmatprep.mubr.f32.mxu0 0.0
        %960 = vmatmul.mubr.f32.gmra.mrb[0].mxu0 %v391
        %v961 = vpop.f32.mrb[0].mxu0
        %v962 = vadd.f32 %v823, %v961
        %v963 = vpop.f32.mrb[0].mxu0
        %964 = vmatprep.mubr.f32.mxu0 0.0
        %965 = vmatmul.mubr.f32.gmra.mrb[0].mxu0 %v392
        %v966 = vpop.f32.mrb[0].mxu0
        %v967 = vadd.f32 %v823, %v966
        %v968 = vpop.f32.mrb[0].mxu0
        %969 = vmatprep.mubr.f32.mxu0 0.0
        %970 = vmatmul.mubr.f32.gmra.mrb[0].mxu0 %v393
        %v971 = vpop.f32.mrb[0].mxu0
        %v972 = vadd.f32 %v823, %v971
        %v973 = vpop.f32.mrb[0].mxu0
        %974 = vmatprep.mubr.f32.mxu0 0.0
        %975 = vmatmul.mubr.f32.gmra.mrb[0].mxu0 %v394
        %v976 = vpop.f32.mrb[0].mxu0
        %v977 = vadd.f32 %v823, %v976
        %v978 = vpop.f32.mrb[0].mxu0
        %979 = vmatprep.mubr.f32.mxu0 0.0
        %980 = vmatmul.mubr.f32.gmra.mrb[0].mxu0 %v395
        %v981 = vpop.f32.mrb[0].mxu0
        %v982 = vadd.f32 %v823, %v981
        %v983 = vpop.f32.mrb[0].mxu0
        %984 = vmatprep.mubr.f32.mxu0 0.0
        %985 = vmatmul.mubr.f32.gmra.mrb[0].mxu0 %v396
        %v986 = vpop.f32.mrb[0].mxu0
        %v987 = vadd.f32 %v823, %v986
        %v988 = vpop.f32.mrb[0].mxu0
        %989 = vmatprep.mubr.f32.mxu0 0.0
        %990 = vmatmul.mubr.f32.gmra.mrb[0].mxu0 %v397
        %v991 = vpop.f32.mrb[0].mxu0
        %v992 = vadd.f32 %v823, %v991
        %v993 = vpop.f32.mrb[0].mxu0
        %994 = vmatprep.mubr.f32.mxu0 0.0
        %995 = vmatmul.mubr.f32.gmra.mrb[0].mxu0 %v398
        %v996 = vpop.f32.mrb[0].mxu0
        %v997 = vadd.f32 %v823, %v996
        %v998 = vpop.f32.mrb[0].mxu0
        %999 = vmatprep.mubr.f32.mxu0 0.0
        %1000 = vmatmul.mubr.f32.gmra.mrb[0].mxu0 %v399
        %v1001 = vpop.f32.mrb[0].mxu0
        %v1002 = vadd.f32 %v823, %v1001
        %v1003 = vpop.f32.mrb[0].mxu0
        %1004 = vmatprep.mubr.f32.mxu0 0.0
        %1005 = vmatmul.mubr.f32.gmra.mrb[0].mxu0 %v400
        %v1006 = vpop.f32.mrb[0].mxu0
        %v1007 = vadd.f32 %v823, %v1006
        %v1008 = vpop.f32.mrb[0].mxu0
        %1009 = vmatprep.mubr.f32.mxu0 0.0
        %1010 = vmatmul.mubr.f32.gmra.mrb[0].mxu0 %v401
        %v1011 = vpop.f32.mrb[0].mxu0
        %v1012 = vadd.f32 %v823, %v1011
        %v1013 = vpop.f32.mrb[0].mxu0
        %1014 = vmatprep.mubr.f32.mxu0 0.0
        %1015 = vmatmul.mubr.f32.gmra.mrb[0].mxu0 %v402
        %v1016 = vpop.f32.mrb[0].mxu0
        %v1017 = vadd.f32 %v823, %v1016
        %v1018 = vpop.f32.mrb[0].mxu0
        %1019 = vmatprep.mubr.f32.mxu0 0.0
        %1020 = vmatmul.mubr.f32.gmra.mrb[0].mxu0 %v403
        %v1021 = vpop.f32.mrb[0].mxu0
        %v1022 = vadd.f32 %v823, %v1021
        %v1023 = vpop.f32.mrb[0].mxu0
        %1024 = vmatprep.mubr.f32.mxu0 0.0
        %1025 = vmatmul.mubr.f32.gmra.mrb[0].mxu0 %v404
        %v1026 = vpop.f32.mrb[0].mxu0
        %v1027 = vadd.f32 %v823, %v1026
        %v1028 = vpop.f32.mrb[0].mxu0
        %1029 = vmatprep.mubr.f32.mxu0 0.0
        %1030 = vmatmul.mubr.f32.gmra.mrb[0].mxu0 %v405
        %v1031 = vpop.f32.mrb[0].mxu0
        %v1032 = vadd.f32 %v823, %v1031
        %v1033 = vpop.f32.mrb[0].mxu0
        %1034 = vmatprep.mubr.f32.mxu0 0.0
        %1035 = vmatmul.mubr.f32.gmra.mrb[0].mxu0 %v406
        %v1036 = vpop.f32.mrb[0].mxu0
        %v1037 = vadd.f32 %v823, %v1036
        %v1038 = vpop.f32.mrb[0].mxu0
        %1039 = vmatprep.mubr.f32.mxu0 0.0
        %1040 = vmatmul.mubr.f32.gmra.mrb[0].mxu0 %v407
        %v1041 = vpop.f32.mrb[0].mxu0
        %v1042 = vadd.f32 %v823, %v1041
        %v1043 = vpop.f32.mrb[0].mxu0
        %1044 = vmatprep.mubr.f32.mxu0 0.0
        %1045 = vmatmul.mubr.f32.gmra.mrb[0].mxu0 %v408
        %v1046 = vpop.f32.mrb[0].mxu0
        %v1047 = vadd.f32 %v823, %v1046
        %v1048 = vpop.f32.mrb[0].mxu0
        %1049 = vmatprep.mubr.f32.mxu0 0.0
        %1050 = vmatmul.mubr.f32.gmra.mrb[0].mxu0 %v409
        %v1051 = vpop.f32.mrb[0].mxu0
        %v1052 = vadd.f32 %v823, %v1051
        %v1053 = vpop.f32.mrb[0].mxu0
        %1054 = vmatprep.mubr.f32.mxu0 0.0
        %1055 = vmatmul.mubr.f32.gmra.mrb[0].mxu0 %v410
        %v1056 = vpop.f32.mrb[0].mxu0
        %v1057 = vadd.f32 %v823, %v1056
        %v1058 = vpop.f32.mrb[0].mxu0
        %1059 = vmatprep.mubr.f32.mxu0 0.0
        %1060 = vmatmul.mubr.f32.gmra.mrb[0].mxu0 %v411
        %v1061 = vpop.f32.mrb[0].mxu0
        %v1062 = vadd.f32 %v823, %v1061
        %v1063 = vpop.f32.mrb[0].mxu0
        %1064 = vmatprep.mubr.f32.mxu0 0.0
        %1065 = vmatmul.mubr.f32.gmra.mrb[0].mxu0 %v412
        %v1066 = vpop.f32.mrb[0].mxu0
        %v1067 = vadd.f32 %v823, %v1066
        %v1068 = vpop.f32.mrb[0].mxu0
        %1069 = vmatprep.mubr.f32.mxu0 0.0
        %1070 = vmatmul.mubr.f32.gmra.mrb[0].mxu0 %v413
        %v1071 = vpop.f32.mrb[0].mxu0
        %v1072 = vadd.f32 %v823, %v1071
        %v1073 = vpop.f32.mrb[0].mxu0
        %1074 = vmatprep.mubr.f32.mxu0 0.0
        %1075 = vmatmul.mubr.f32.gmra.mrb[0].mxu0 %v414
        %v1076 = vpop.f32.mrb[0].mxu0
        %v1077 = vadd.f32 %v823, %v1076
        %v1078 = vpop.f32.mrb[0].mxu0
        %1079 = vmatprep.mubr.f32.mxu0 0.0
        %1080 = vmatmul.mubr.f32.gmra.mrb[0].mxu0 %v415
        %v1081 = vpop.f32.mrb[0].mxu0
        %v1082 = vadd.f32 %v823, %v1081
        %v1083 = vpop.f32.mrb[0].mxu0
        %1084 = vmatprep.mubr.f32.mxu0 0.0
        %1085 = vmatmul.mubr.f32.gmra.mrb[0].mxu0 %v416
        %v1086 = vpop.f32.mrb[0].mxu0
        %v1087 = vadd.f32 %v823, %v1086
        %v1088 = vpop.f32.mrb[0].mxu0
        %1089 = vmatprep.mubr.f32.mxu0 0.0
        %1090 = vmatmul.mubr.f32.gmra.mrb[0].mxu0 %v417
        %v1091 = vpop.f32.mrb[0].mxu0
        %v1092 = vadd.f32 %v823, %v1091
        %v1093 = vpop.f32.mrb[0].mxu0
        %1094 = vmatprep.mubr.f32.mxu0 0.0
        %1095 = vmatmul.mubr.f32.gmra.mrb[0].mxu0 %v418
        %v1096 = vpop.f32.mrb[0].mxu0
        %v1097 = vadd.f32 %v823, %v1096
        %v1098 = vpop.f32.mrb[0].mxu0
        %1099 = vmatprep.mubr.f32.mxu0 0.0
        %1100 = vmatmul.mubr.f32.gmra.mrb[0].mxu0 %v419
        %v1101 = vpop.f32.mrb[0].mxu0
        %v1102 = vadd.f32 %v823, %v1101
        %v1103 = vpop.f32.mrb[0].mxu0
        %1104 = vmatprep.mubr.f32.mxu0 0.0
        %1105 = vmatmul.mubr.f32.gmra.mrb[0].mxu0 %v420
        %v1106 = vpop.f32.mrb[0].mxu0
        %v1107 = vadd.f32 %v823, %v1106
        %v1108 = vpop.f32.mrb[0].mxu0
        %1109 = vmatprep.mubr.f32.mxu0 0.0
        %1110 = vmatmul.mubr.f32.gmra.mrb[0].mxu0 %v421
        %v1111 = vpop.f32.mrb[0].mxu0
        %v1112 = vadd.f32 %v823, %v1111
        %v1113 = vpop.f32.mrb[0].mxu0
        %1114 = vmatprep.mubr.f32.mxu0 0.0
        %1115 = vmatmul.mubr.f32.gmra.mrb[0].mxu0 %v422
        %v1116 = vpop.f32.mrb[0].mxu0
        %v1117 = vadd.f32 %v823, %v1116
        %v1118 = vpop.f32.mrb[0].mxu0
        %1119 = vmatprep.mubr.f32.mxu0 0.0
        %1120 = vmatmul.mubr.f32.gmra.mrb[0].mxu0 %v423
        %v1121 = vpop.f32.mrb[0].mxu0
        %v1122 = vadd.f32 %v823, %v1121
        %v1123 = vpop.f32.mrb[0].mxu0
        %1124 = vmatprep.mubr.f32.mxu0 0.0
        %1125 = vmatmul.mubr.f32.gmra.mrb[0].mxu0 %v424
        %v1126 = vpop.f32.mrb[0].mxu0
        %v1127 = vadd.f32 %v823, %v1126
        %v1128 = vpop.f32.mrb[0].mxu0
        %1129 = vmatprep.mubr.f32.mxu0 0.0
        %1130 = vmatmul.mubr.f32.gmra.mrb[0].mxu0 %v425
        %v1131 = vpop.f32.mrb[0].mxu0
        %v1132 = vadd.f32 %v823, %v1131
        %v1133 = vpop.f32.mrb[0].mxu0
        %1134 = vmatprep.mubr.f32.mxu0 0.0
        %1135 = vmatmul.mubr.f32.gmra.mrb[0].mxu0 %v426
        %v1136 = vpop.f32.mrb[0].mxu0
        %v1137 = vadd.f32 %v823, %v1136
        %v1138 = vpop.f32.mrb[0].mxu0
        %1139 = vmatprep.mubr.f32.mxu0 0.0
        %1140 = vmatmul.mubr.f32.gmra.mrb[0].mxu0 %v427
        %v1141 = vpop.f32.mrb[0].mxu0
        %v1142 = vadd.f32 %v823, %v1141
        %v1143 = vpop.f32.mrb[0].mxu0
        %1144 = vmatprep.mubr.f32.mxu0 0.0
        %1145 = vmatmul.mubr.f32.gmra.mrb[0].mxu0 %v428
        %v1146 = vpop.f32.mrb[0].mxu0
        %v1147 = vadd.f32 %v823, %v1146
        %v1148 = vpop.f32.mrb[0].mxu0
        %1149 = vmatprep.mubr.f32.mxu0 0.0
        %1150 = vmatmul.mubr.f32.gmra.mrb[0].mxu0 %v429
        %v1151 = vpop.f32.mrb[0].mxu0
        %v1152 = vadd.f32 %v823, %v1151
        %v1153 = vpop.f32.mrb[0].mxu0
        %1154 = vmatprep.mubr.f32.mxu0 0.0
        %1155 = vmatmul.mubr.f32.gmra.mrb[0].mxu0 %v430
        %v1156 = vpop.f32.mrb[0].mxu0
        %v1157 = vadd.f32 %v823, %v1156
        %v1158 = vpop.f32.mrb[0].mxu0
        %1159 = vmatprep.mubr.f32.mxu0 0.0
        %1160 = vmatmul.mubr.f32.gmra.mrb[0].mxu0 %v431
        %v1161 = vpop.f32.mrb[0].mxu0
        %v1162 = vadd.f32 %v823, %v1161
        %v1163 = vpop.f32.mrb[0].mxu0
        %1164 = vmatprep.mubr.f32.mxu0 0.0
        %1165 = vmatmul.mubr.f32.gmra.mrb[0].mxu0 %v432
        %v1166 = vpop.f32.mrb[0].mxu0
        %v1167 = vadd.f32 %v823, %v1166
        %v1168 = vpop.f32.mrb[0].mxu0
        %1169 = vdwg.mxu0
        %v1170 = vld [vmem:[%s2] sm:$0xff]
        %v1171 = vld [vmem:[%s2 + $0x8] sm:$0xff]
        %v1172 = vld [vmem:[%s2 + $0x10] sm:$0xff]
        %v1173 = vld [vmem:[%s2 + $0x18] sm:$0xff]
        %v1174 = vld [vmem:[%s2 + $0x20] sm:$0xff]
        %v1175 = vld [vmem:[%s2 + $0x28] sm:$0xff]
        %v1176 = vld [vmem:[%s2 + $0x30] sm:$0xff]
        %v1177 = vld [vmem:[%s2 + $0x38] sm:$0xff]
        %v1178 = vld [vmem:[%s2 + $0x40] sm:$0xff]
        %v1179 = vld [vmem:[%s2 + $0x48] sm:$0xff]
        %v1180 = vld [vmem:[%s2 + $0x50] sm:$0xff]
        %v1181 = vld [vmem:[%s2 + $0x58] sm:$0xff]
        %v1182 = vld [vmem:[%s2 + $0x60] sm:$0xff]
        %v1183 = vld [vmem:[%s2 + $0x68] sm:$0xff]
        %v1184 = vld [vmem:[%s2 + $0x70] sm:$0xff]
        %v1185 = vld [vmem:[%s2 + $0x78] sm:$0xff]
        %v1186 = vld [vmem:[%s3] sm:$0x1]
        %v1188 = vlaneseq
        %v1189 = vshrl.u32 %v1188, 7
        %v1190 = vsub.s32 0, %v1189
        %v1191 = vrot.slane %v1186, %v1190
        %1193 = vmatprep.subr.mxu0 0.0
        %1194 = vmatpush1.msra.mxu0 %v1170
        %1195 = vmatprep.subr.mxu0 0.0
        %1196 = vmatpush1.msra.mxu0 %v1171
        %1197 = vmatprep.subr.mxu0 0.0
        %1198 = vmatpush1.msra.mxu0 %v1172
        %1199 = vmatprep.subr.mxu0 0.0
        %1200 = vmatpush1.msra.mxu0 %v1173
        %1201 = vmatprep.subr.mxu0 0.0
        %1202 = vmatpush1.msra.mxu0 %v1174
        %1203 = vmatprep.subr.mxu0 0.0
        %1204 = vmatpush1.msra.mxu0 %v1175
        %1205 = vmatprep.subr.mxu0 0.0
        %1206 = vmatpush1.msra.mxu0 %v1176
        %1207 = vmatprep.subr.mxu0 0.0
        %1208 = vmatpush1.msra.mxu0 %v1177
        %1209 = vmatprep.subr.mxu0 0.0
        %1210 = vmatpush1.msra.mxu0 %v1178
        %1211 = vmatprep.subr.mxu0 0.0
        %1212 = vmatpush1.msra.mxu0 %v1179
        %1213 = vmatprep.subr.mxu0 0.0
        %1214 = vmatpush1.msra.mxu0 %v1180
        %1215 = vmatprep.subr.mxu0 0.0
        %1216 = vmatpush1.msra.mxu0 %v1181
        %1217 = vmatprep.subr.mxu0 0.0
        %1218 = vmatpush1.msra.mxu0 %v1182
        %1219 = vmatprep.subr.mxu0 0.0
        %1220 = vmatpush1.msra.mxu0 %v1183
        %1221 = vmatprep.subr.mxu0 0.0
        %1222 = vmatpush1.msra.mxu0 %v1184
        %1223 = vmatprep.subr.mxu0 0.0
        %1224 = vmatpush1.msra.mxu0 %v1185
        %1225 = vmatprep.subr.mxu0 0.0
        %1226 = vmatpush1.msra.mxu0 0.0
        %1227 = vmatprep.subr.mxu0 0.0
        %1228 = vmatpush1.msra.mxu0 0.0
        %1229 = vmatprep.subr.mxu0 0.0
        %1230 = vmatpush1.msra.mxu0 0.0
        %1231 = vmatprep.subr.mxu0 0.0
        %1232 = vmatpush1.msra.mxu0 0.0
        %1233 = vmatprep.subr.mxu0 0.0
        %1234 = vmatpush1.msra.mxu0 0.0
        %1235 = vmatprep.subr.mxu0 0.0
        %1236 = vmatpush1.msra.mxu0 0.0
        %1237 = vmatprep.subr.mxu0 0.0
        %1238 = vmatpush1.msra.mxu0 0.0
        %1239 = vmatprep.subr.mxu0 0.0
        %1240 = vmatpush1.msra.mxu0 0.0
        %1241 = vmatprep.subr.mxu0 0.0
        %1242 = vmatpush1.msra.mxu0 0.0
        %1243 = vmatprep.subr.mxu0 0.0
        %1244 = vmatpush1.msra.mxu0 0.0
        %1245 = vmatprep.subr.mxu0 0.0
        %1246 = vmatpush1.msra.mxu0 0.0
        %1247 = vmatprep.subr.mxu0 0.0
        %1248 = vmatpush1.msra.mxu0 0.0
        %1249 = vmatprep.subr.mxu0 0.0
        %1250 = vmatpush1.msra.mxu0 0.0
        %1251 = vmatprep.subr.mxu0 0.0
        %1252 = vmatpush1.msra.mxu0 0.0
        %1253 = vmatprep.subr.mxu0 0.0
        %1254 = vmatpush1.msra.mxu0 0.0
        %1255 = vmatprep.subr.mxu0 0.0
        %1256 = vmatpush1.msra.mxu0 0.0
        %1257 = vmatprep.mubr.f32.mxu0 0.0
        %1258 = vmatmul.mubr.f32.gmra.mrb[0].mxu0 %v433
        %v1259 = vpop.f32.mrb[0].mxu0
        %v1260 = vadd.f32 %v1191, %v1259
        %v1261 = vpop.f32.mrb[0].mxu0
        %1262 = vdwg.mxu0
        %v1263 = vmul.f32 %v1260, 0.17677669
        %v1264 = vlaneseq
        %v1265 = vand.u32 %v1264, 127
        %v1266 = vlaneseq
        %v1267 = vshrl.u32 %v1266, 7
        %v1268 = vmul.u32 %v1267, 32
        %vm1269 = vcmp.ge.s32.totalorder %v1265, %v1268
        %v1270 = vadd.s32 %v1267, 1
        %v1271 = vmul.u32 %v1270, 32
        %vm1272 = vcmp.lt.s32.totalorder %v1265, %v1271
        %vm1273 = vmand %vm1269, %vm1272
        %v1274 = vsel %vm1273, 1, 0
        %v1275 = vcvt.s32.f32 %v1274
        %v1277 = vcombine.high %v1263, %v1263
        %v1279 = vunpack.c.l.s4 1966171168
        %v1280 = vunpack.c.0.s8 %v1279
        %v1281 = vlaneseq
        %v1282 = vshrl.u32 %v1281, 7
        %v1283 = vsub.s32 %v1280, %v1282
        %v1284 = vrot.slane %v1263, %v1283
        %v1286 = vunpack.c.l.s4 1966171168
        %v1287 = vunpack.c.0.s8 %v1286
        %v1288 = vlaneseq
        %v1289 = vshrl.u32 %v1288, 7
        %v1290 = vsub.s32 %v1287, %v1289
        %v1291 = vrot.slane %v1277, %v1290
        %v1292 = vcombine.high %v1284, %v1284
        %v1293 = vcombine.high %v1291, %v1291
        %v1295 = vunpack.c.l.s4 1966171168
        %v1296 = vunpack.c.0.s8 %v1295
        %v1297 = vlaneseq
        %v1298 = vshrl.u32 %v1297, 7
        %v1299 = vsub.s32 %v1296, %v1298
        %v1300 = vrot.slane %v1284, %v1299
        %v1302 = vunpack.c.l.s4 1966171168
        %v1303 = vunpack.c.0.s8 %v1302
        %v1304 = vlaneseq
        %v1305 = vshrl.u32 %v1304, 7
        %v1306 = vsub.s32 %v1303, %v1305
        %v1307 = vrot.slane %v1291, %v1306
        %v1309 = vunpack.c.l.s4 1966171168
        %v1310 = vunpack.c.0.s8 %v1309
        %v1311 = vlaneseq
        %v1312 = vshrl.u32 %v1311, 7
        %v1313 = vsub.s32 %v1310, %v1312
        %v1314 = vrot.slane %v1292, %v1313
        %v1316 = vunpack.c.l.s4 1966171168
        %v1317 = vunpack.c.0.s8 %v1316
        %v1318 = vlaneseq
        %v1319 = vshrl.u32 %v1318, 7
        %v1320 = vsub.s32 %v1317, %v1319
        %v1321 = vrot.slane %v1293, %v1320
        %v1322 = vcombine.high %v1300, %v1300
        %v1323 = vcombine.high %v1307, %v1307
        %v1324 = vcombine.high %v1314, %v1314
        %v1325 = vcombine.high %v1321, %v1321
        %v1326 = vlaneseq
        %v1327 = vshrl.u32 %v1326, 7
        %v1328 = vsub.s32 0, %v1327
        %v1329 = vrot.slane %v1300, %v1328
        %v1330 = vlaneseq
        %v1331 = vshrl.u32 %v1330, 7
        %v1332 = vsub.s32 0, %v1331
        %v1333 = vrot.slane %v1314, %v1332
        %v1334 = vlaneseq
        %v1335 = vshrl.u32 %v1334, 7
        %v1336 = vsub.s32 0, %v1335
        %v1337 = vrot.slane %v1322, %v1336
        %v1338 = vlaneseq
        %v1339 = vshrl.u32 %v1338, 7
        %v1340 = vsub.s32 0, %v1339
        %v1341 = vrot.slane %v1324, %v1340
        %v1342 = vlaneseq
        %v1343 = vshrl.u32 %v1342, 7
        %v1344 = vsub.s32 0, %v1343
        %v1345 = vrot.slane %v1307, %v1344
        %v1346 = vlaneseq
        %v1347 = vshrl.u32 %v1346, 7
        %v1348 = vsub.s32 0, %v1347
        %v1349 = vrot.slane %v1321, %v1348
        %v1350 = vlaneseq
        %v1351 = vshrl.u32 %v1350, 7
        %v1352 = vsub.s32 0, %v1351
        %v1353 = vrot.slane %v1323, %v1352
        %v1354 = vlaneseq
        %v1355 = vshrl.u32 %v1354, 7
        %v1356 = vsub.s32 0, %v1355
        %v1357 = vrot.slane %v1325, %v1356
        %v1366 = vmul.f32 %v1329, %v1275
        %v1367 = vmul.f32 %v1333, %v1275
        %v1368 = vmul.f32 %v1337, %v1275
        %v1369 = vmul.f32 %v1341, %v1275
        %v1370 = vmul.f32 %v1345, %v1275
        %v1371 = vmul.f32 %v1349, %v1275
        %v1372 = vmul.f32 %v1353, %v1275
        %v1373 = vmul.f32 %v1357, %v1275
        %1374 = vmatprep.subr.mxu0 0.0
        %1375 = vmatpush1.xpose.msra.mxu0 %v524
        %1376 = vmatprep.subr.mxu0 0.0
        %1377 = vmatpush1.xpose.msra.mxu0 %v529
        %1378 = vmatprep.subr.mxu0 0.0
        %1379 = vmatpush1.xpose.msra.mxu0 %v534
        %1380 = vmatprep.subr.mxu0 0.0
        %1381 = vmatpush1.xpose.msra.mxu0 %v539
        %1382 = vmatprep.subr.mxu0 0.0
        %1383 = vmatpush1.xpose.msra.mxu0 %v544
        %1384 = vmatprep.subr.mxu0 0.0
        %1385 = vmatpush1.xpose.msra.mxu0 %v549
        %1386 = vmatprep.subr.mxu0 0.0
        %1387 = vmatpush1.xpose.msra.mxu0 %v554
        %1388 = vmatprep.subr.mxu0 0.0
        %1389 = vmatpush1.xpose.msra.mxu0 0.0
        %1390 = vmatprep.subr.mxu0 0.0
        %1391 = vmatpush1.xpose.msra.mxu0 0.0
        %1392 = vmatprep.subr.mxu0 0.0
        %1393 = vmatpush1.xpose.msra.mxu0 0.0
        %1394 = vmatprep.subr.mxu0 0.0
        %1395 = vmatpush1.xpose.msra.mxu0 0.0
        %1396 = vmatprep.subr.mxu0 0.0
        %1397 = vmatpush1.xpose.msra.mxu0 0.0
        %1398 = vmatprep.subr.mxu0 0.0
        %1399 = vmatpush1.xpose.msra.mxu0 0.0
        %1400 = vmatprep.subr.mxu0 0.0
        %1401 = vmatpush1.xpose.msra.mxu0 0.0
        %1402 = vmatprep.subr.mxu0 0.0
        %1403 = vmatpush1.xpose.msra.mxu0 0.0
        %1404 = vmatprep.subr.mxu0 0.0
        %1405 = vmatpush1.xpose.msra.mxu0 0.0
        %1406 = vmatprep.subr.mxu0 0.0
        %1407 = vmatpush1.xpose.msra.mxu0 0.0
        %1408 = vmatprep.subr.mxu0 0.0
        %1409 = vmatpush1.xpose.msra.mxu0 0.0
        %1410 = vmatprep.subr.mxu0 0.0
        %1411 = vmatpush1.xpose.msra.mxu0 0.0
        %1412 = vmatprep.subr.mxu0 0.0
        %1413 = vmatpush1.xpose.msra.mxu0 0.0
        %1414 = vmatprep.subr.mxu0 0.0
        %1415 = vmatpush1.xpose.msra.mxu0 0.0
        %1416 = vmatprep.subr.mxu0 0.0
        %1417 = vmatpush1.xpose.msra.mxu0 0.0
        %1418 = vmatprep.subr.mxu0 0.0
        %1419 = vmatpush1.xpose.msra.mxu0 0.0
        %1420 = vmatprep.subr.mxu0 0.0
        %1421 = vmatpush1.xpose.msra.mxu0 0.0
        %1422 = vmatprep.subr.mxu0 0.0
        %1423 = vmatpush1.xpose.msra.mxu0 0.0
        %1424 = vmatprep.subr.mxu0 0.0
        %1425 = vmatpush1.xpose.msra.mxu0 0.0
        %1426 = vmatprep.subr.mxu0 0.0
        %1427 = vmatpush1.xpose.msra.mxu0 0.0
        %1428 = vmatprep.subr.mxu0 0.0
        %1429 = vmatpush1.xpose.msra.mxu0 0.0
        %1430 = vmatprep.subr.mxu0 0.0
        %1431 = vmatpush1.xpose.msra.mxu0 0.0
        %1432 = vmatprep.subr.mxu0 0.0
        %1433 = vmatpush1.xpose.msra.mxu0 0.0
        %1434 = vmatprep.subr.mxu0 0.0
        %1435 = vmatpush1.xpose.msra.mxu0 0.0
        %1436 = vmatprep.subr.mxu0 0.0
        %1437 = vmatpush1.xpose.msra.mxu0 0.0
        %1438 = vmatprep.mubr.f32.mxu0 0.0
        %1439 = vmatmul.mubr.f32.gmra.mrb[0].mxu0 %v1366
        %v1440 = vpop.f32.mrb[0].mxu0
        %v1441 = vadd.f32 0.0, %v1440
        %v1442 = vpop.f32.mrb[0].mxu0
        %1443 = vdwg.mxu0
        %1444 = vmatprep.subr.mxu0 0.0
        %1445 = vmatpush1.xpose.msra.mxu0 %v559
        %1446 = vmatprep.subr.mxu0 0.0
        %1447 = vmatpush1.xpose.msra.mxu0 %v564
        %1448 = vmatprep.subr.mxu0 0.0
        %1449 = vmatpush1.xpose.msra.mxu0 %v569
        %1450 = vmatprep.subr.mxu0 0.0
        %1451 = vmatpush1.xpose.msra.mxu0 %v574
        %1452 = vmatprep.subr.mxu0 0.0
        %1453 = vmatpush1.xpose.msra.mxu0 %v579
        %1454 = vmatprep.subr.mxu0 0.0
        %1455 = vmatpush1.xpose.msra.mxu0 %v584
        %1456 = vmatprep.subr.mxu0 0.0
        %1457 = vmatpush1.xpose.msra.mxu0 %v589
        %1458 = vmatprep.subr.mxu0 0.0
        %1459 = vmatpush1.xpose.msra.mxu0 0.0
        %1460 = vmatprep.subr.mxu0 0.0
        %1461 = vmatpush1.xpose.msra.mxu0 0.0
        %1462 = vmatprep.subr.mxu0 0.0
        %1463 = vmatpush1.xpose.msra.mxu0 0.0
        %1464 = vmatprep.subr.mxu0 0.0
        %1465 = vmatpush1.xpose.msra.mxu0 0.0
        %1466 = vmatprep.subr.mxu0 0.0
        %1467 = vmatpush1.xpose.msra.mxu0 0.0
        %1468 = vmatprep.subr.mxu0 0.0
        %1469 = vmatpush1.xpose.msra.mxu0 0.0
        %1470 = vmatprep.subr.mxu0 0.0
        %1471 = vmatpush1.xpose.msra.mxu0 0.0
        %1472 = vmatprep.subr.mxu0 0.0
        %1473 = vmatpush1.xpose.msra.mxu0 0.0
        %1474 = vmatprep.subr.mxu0 0.0
        %1475 = vmatpush1.xpose.msra.mxu0 0.0
        %1476 = vmatprep.subr.mxu0 0.0
        %1477 = vmatpush1.xpose.msra.mxu0 0.0
        %1478 = vmatprep.subr.mxu0 0.0
        %1479 = vmatpush1.xpose.msra.mxu0 0.0
        %1480 = vmatprep.subr.mxu0 0.0
        %1481 = vmatpush1.xpose.msra.mxu0 0.0
        %1482 = vmatprep.subr.mxu0 0.0
        %1483 = vmatpush1.xpose.msra.mxu0 0.0
        %1484 = vmatprep.subr.mxu0 0.0
        %1485 = vmatpush1.xpose.msra.mxu0 0.0
        %1486 = vmatprep.subr.mxu0 0.0
        %1487 = vmatpush1.xpose.msra.mxu0 0.0
        %1488 = vmatprep.subr.mxu0 0.0
        %1489 = vmatpush1.xpose.msra.mxu0 0.0
        %1490 = vmatprep.subr.mxu0 0.0
        %1491 = vmatpush1.xpose.msra.mxu0 0.0
        %1492 = vmatprep.subr.mxu0 0.0
        %1493 = vmatpush1.xpose.msra.mxu0 0.0
        %1494 = vmatprep.subr.mxu0 0.0
        %1495 = vmatpush1.xpose.msra.mxu0 0.0
        %1496 = vmatprep.subr.mxu0 0.0
        %1497 = vmatpush1.xpose.msra.mxu0 0.0
        %1498 = vmatprep.subr.mxu0 0.0
        %1499 = vmatpush1.xpose.msra.mxu0 0.0
        %1500 = vmatprep.subr.mxu0 0.0
        %1501 = vmatpush1.xpose.msra.mxu0 0.0
        %1502 = vmatprep.subr.mxu0 0.0
        %1503 = vmatpush1.xpose.msra.mxu0 0.0
        %1504 = vmatprep.subr.mxu0 0.0
        %1505 = vmatpush1.xpose.msra.mxu0 0.0
        %1506 = vmatprep.subr.mxu0 0.0
        %1507 = vmatpush1.xpose.msra.mxu0 0.0
        %1508 = vmatprep.mubr.f32.mxu0 0.0
        %1509 = vmatmul.mubr.f32.gmra.mrb[0].mxu0 %v1367
        %v1510 = vpop.f32.mrb[0].mxu0
        %v1511 = vadd.f32 0.0, %v1510
        %v1512 = vpop.f32.mrb[0].mxu0
        %1513 = vdwg.mxu0
        %1514 = vmatprep.subr.mxu0 0.0
        %1515 = vmatpush1.xpose.msra.mxu0 %v594
        %1516 = vmatprep.subr.mxu0 0.0
        %1517 = vmatpush1.xpose.msra.mxu0 %v599
        %1518 = vmatprep.subr.mxu0 0.0
        %1519 = vmatpush1.xpose.msra.mxu0 %v604
        %1520 = vmatprep.subr.mxu0 0.0
        %1521 = vmatpush1.xpose.msra.mxu0 %v609
        %1522 = vmatprep.subr.mxu0 0.0
        %1523 = vmatpush1.xpose.msra.mxu0 %v614
        %1524 = vmatprep.subr.mxu0 0.0
        %1525 = vmatpush1.xpose.msra.mxu0 %v619
        %1526 = vmatprep.subr.mxu0 0.0
        %1527 = vmatpush1.xpose.msra.mxu0 %v624
        %1528 = vmatprep.subr.mxu0 0.0
        %1529 = vmatpush1.xpose.msra.mxu0 0.0
        %1530 = vmatprep.subr.mxu0 0.0
        %1531 = vmatpush1.xpose.msra.mxu0 0.0
        %1532 = vmatprep.subr.mxu0 0.0
        %1533 = vmatpush1.xpose.msra.mxu0 0.0
        %1534 = vmatprep.subr.mxu0 0.0
        %1535 = vmatpush1.xpose.msra.mxu0 0.0
        %1536 = vmatprep.subr.mxu0 0.0
        %1537 = vmatpush1.xpose.msra.mxu0 0.0
        %1538 = vmatprep.subr.mxu0 0.0
        %1539 = vmatpush1.xpose.msra.mxu0 0.0
        %1540 = vmatprep.subr.mxu0 0.0
        %1541 = vmatpush1.xpose.msra.mxu0 0.0
        %1542 = vmatprep.subr.mxu0 0.0
        %1543 = vmatpush1.xpose.msra.mxu0 0.0
        %1544 = vmatprep.subr.mxu0 0.0
        %1545 = vmatpush1.xpose.msra.mxu0 0.0
        %1546 = vmatprep.subr.mxu0 0.0
        %1547 = vmatpush1.xpose.msra.mxu0 0.0
        %1548 = vmatprep.subr.mxu0 0.0
        %1549 = vmatpush1.xpose.msra.mxu0 0.0
        %1550 = vmatprep.subr.mxu0 0.0
        %1551 = vmatpush1.xpose.msra.mxu0 0.0
        %1552 = vmatprep.subr.mxu0 0.0
        %1553 = vmatpush1.xpose.msra.mxu0 0.0
        %1554 = vmatprep.subr.mxu0 0.0
        %1555 = vmatpush1.xpose.msra.mxu0 0.0
        %1556 = vmatprep.subr.mxu0 0.0
        %1557 = vmatpush1.xpose.msra.mxu0 0.0
        %1558 = vmatprep.subr.mxu0 0.0
        %1559 = vmatpush1.xpose.msra.mxu0 0.0
        %1560 = vmatprep.subr.mxu0 0.0
        %1561 = vmatpush1.xpose.msra.mxu0 0.0
        %1562 = vmatprep.subr.mxu0 0.0
        %1563 = vmatpush1.xpose.msra.mxu0 0.0
        %1564 = vmatprep.subr.mxu0 0.0
        %1565 = vmatpush1.xpose.msra.mxu0 0.0
        %1566 = vmatprep.subr.mxu0 0.0
        %1567 = vmatpush1.xpose.msra.mxu0 0.0
        %1568 = vmatprep.subr.mxu0 0.0
        %1569 = vmatpush1.xpose.msra.mxu0 0.0
        %1570 = vmatprep.subr.mxu0 0.0
        %1571 = vmatpush1.xpose.msra.mxu0 0.0
        %1572 = vmatprep.subr.mxu0 0.0
        %1573 = vmatpush1.xpose.msra.mxu0 0.0
        %1574 = vmatprep.subr.mxu0 0.0
        %1575 = vmatpush1.xpose.msra.mxu0 0.0
        %1576 = vmatprep.subr.mxu0 0.0
        %1577 = vmatpush1.xpose.msra.mxu0 0.0
        %1578 = vmatprep.mubr.f32.mxu0 0.0
        %1579 = vmatmul.mubr.f32.gmra.mrb[0].mxu0 %v1368
        %v1580 = vpop.f32.mrb[0].mxu0
        %v1581 = vadd.f32 0.0, %v1580
        %v1582 = vpop.f32.mrb[0].mxu0
        %1583 = vdwg.mxu0
        %1584 = vmatprep.subr.mxu0 0.0
        %1585 = vmatpush1.xpose.msra.mxu0 %v629
        %1586 = vmatprep.subr.mxu0 0.0
        %1587 = vmatpush1.xpose.msra.mxu0 %v634
        %1588 = vmatprep.subr.mxu0 0.0
        %1589 = vmatpush1.xpose.msra.mxu0 %v639
        %1590 = vmatprep.subr.mxu0 0.0
        %1591 = vmatpush1.xpose.msra.mxu0 %v644
        %1592 = vmatprep.subr.mxu0 0.0
        %1593 = vmatpush1.xpose.msra.mxu0 %v649
        %1594 = vmatprep.subr.mxu0 0.0
        %1595 = vmatpush1.xpose.msra.mxu0 %v654
        %1596 = vmatprep.subr.mxu0 0.0
        %1597 = vmatpush1.xpose.msra.mxu0 %v659
        %1598 = vmatprep.subr.mxu0 0.0
        %1599 = vmatpush1.xpose.msra.mxu0 0.0
        %1600 = vmatprep.subr.mxu0 0.0
        %1601 = vmatpush1.xpose.msra.mxu0 0.0
        %1602 = vmatprep.subr.mxu0 0.0
        %1603 = vmatpush1.xpose.msra.mxu0 0.0
        %1604 = vmatprep.subr.mxu0 0.0
        %1605 = vmatpush1.xpose.msra.mxu0 0.0
        %1606 = vmatprep.subr.mxu0 0.0
        %1607 = vmatpush1.xpose.msra.mxu0 0.0
        %1608 = vmatprep.subr.mxu0 0.0
        %1609 = vmatpush1.xpose.msra.mxu0 0.0
        %1610 = vmatprep.subr.mxu0 0.0
        %1611 = vmatpush1.xpose.msra.mxu0 0.0
        %1612 = vmatprep.subr.mxu0 0.0
        %1613 = vmatpush1.xpose.msra.mxu0 0.0
        %1614 = vmatprep.subr.mxu0 0.0
        %1615 = vmatpush1.xpose.msra.mxu0 0.0
        %1616 = vmatprep.subr.mxu0 0.0
        %1617 = vmatpush1.xpose.msra.mxu0 0.0
        %1618 = vmatprep.subr.mxu0 0.0
        %1619 = vmatpush1.xpose.msra.mxu0 0.0
        %1620 = vmatprep.subr.mxu0 0.0
        %1621 = vmatpush1.xpose.msra.mxu0 0.0
        %1622 = vmatprep.subr.mxu0 0.0
        %1623 = vmatpush1.xpose.msra.mxu0 0.0
        %1624 = vmatprep.subr.mxu0 0.0
        %1625 = vmatpush1.xpose.msra.mxu0 0.0
        %1626 = vmatprep.subr.mxu0 0.0
        %1627 = vmatpush1.xpose.msra.mxu0 0.0
        %1628 = vmatprep.subr.mxu0 0.0
        %1629 = vmatpush1.xpose.msra.mxu0 0.0
        %1630 = vmatprep.subr.mxu0 0.0
        %1631 = vmatpush1.xpose.msra.mxu0 0.0
        %1632 = vmatprep.subr.mxu0 0.0
        %1633 = vmatpush1.xpose.msra.mxu0 0.0
        %1634 = vmatprep.subr.mxu0 0.0
        %1635 = vmatpush1.xpose.msra.mxu0 0.0
        %1636 = vmatprep.subr.mxu0 0.0
        %1637 = vmatpush1.xpose.msra.mxu0 0.0
        %1638 = vmatprep.subr.mxu0 0.0
        %1639 = vmatpush1.xpose.msra.mxu0 0.0
        %1640 = vmatprep.subr.mxu0 0.0
        %1641 = vmatpush1.xpose.msra.mxu0 0.0
        %1642 = vmatprep.subr.mxu0 0.0
        %1643 = vmatpush1.xpose.msra.mxu0 0.0
        %1644 = vmatprep.subr.mxu0 0.0
        %1645 = vmatpush1.xpose.msra.mxu0 0.0
        %1646 = vmatprep.subr.mxu0 0.0
        %1647 = vmatpush1.xpose.msra.mxu0 0.0
        %1648 = vmatprep.mubr.f32.mxu0 0.0
        %1649 = vmatmul.mubr.f32.gmra.mrb[0].mxu0 %v1369
        %v1650 = vpop.f32.mrb[0].mxu0
        %v1651 = vadd.f32 0.0, %v1650
        %v1652 = vpop.f32.mrb[0].mxu0
        %1653 = vdwg.mxu0
        %1654 = vmatprep.subr.mxu0 0.0
        %1655 = vmatpush1.xpose.msra.mxu0 %v664
        %1656 = vmatprep.subr.mxu0 0.0
        %1657 = vmatpush1.xpose.msra.mxu0 %v669
        %1658 = vmatprep.subr.mxu0 0.0
        %1659 = vmatpush1.xpose.msra.mxu0 %v674
        %1660 = vmatprep.subr.mxu0 0.0
        %1661 = vmatpush1.xpose.msra.mxu0 %v679
        %1662 = vmatprep.subr.mxu0 0.0
        %1663 = vmatpush1.xpose.msra.mxu0 %v684
        %1664 = vmatprep.subr.mxu0 0.0
        %1665 = vmatpush1.xpose.msra.mxu0 %v689
        %1666 = vmatprep.subr.mxu0 0.0
        %1667 = vmatpush1.xpose.msra.mxu0 %v694
        %1668 = vmatprep.subr.mxu0 0.0
        %1669 = vmatpush1.xpose.msra.mxu0 0.0
        %1670 = vmatprep.subr.mxu0 0.0
        %1671 = vmatpush1.xpose.msra.mxu0 0.0
        %1672 = vmatprep.subr.mxu0 0.0
        %1673 = vmatpush1.xpose.msra.mxu0 0.0
        %1674 = vmatprep.subr.mxu0 0.0
        %1675 = vmatpush1.xpose.msra.mxu0 0.0
        %1676 = vmatprep.subr.mxu0 0.0
        %1677 = vmatpush1.xpose.msra.mxu0 0.0
        %1678 = vmatprep.subr.mxu0 0.0
        %1679 = vmatpush1.xpose.msra.mxu0 0.0
        %1680 = vmatprep.subr.mxu0 0.0
        %1681 = vmatpush1.xpose.msra.mxu0 0.0
        %1682 = vmatprep.subr.mxu0 0.0
        %1683 = vmatpush1.xpose.msra.mxu0 0.0
        %1684 = vmatprep.subr.mxu0 0.0
        %1685 = vmatpush1.xpose.msra.mxu0 0.0
        %1686 = vmatprep.subr.mxu0 0.0
        %1687 = vmatpush1.xpose.msra.mxu0 0.0
        %1688 = vmatprep.subr.mxu0 0.0
        %1689 = vmatpush1.xpose.msra.mxu0 0.0
        %1690 = vmatprep.subr.mxu0 0.0
        %1691 = vmatpush1.xpose.msra.mxu0 0.0
        %1692 = vmatprep.subr.mxu0 0.0
        %1693 = vmatpush1.xpose.msra.mxu0 0.0
        %1694 = vmatprep.subr.mxu0 0.0
        %1695 = vmatpush1.xpose.msra.mxu0 0.0
        %1696 = vmatprep.subr.mxu0 0.0
        %1697 = vmatpush1.xpose.msra.mxu0 0.0
        %1698 = vmatprep.subr.mxu0 0.0
        %1699 = vmatpush1.xpose.msra.mxu0 0.0
        %1700 = vmatprep.subr.mxu0 0.0
        %1701 = vmatpush1.xpose.msra.mxu0 0.0
        %1702 = vmatprep.subr.mxu0 0.0
        %1703 = vmatpush1.xpose.msra.mxu0 0.0
        %1704 = vmatprep.subr.mxu0 0.0
        %1705 = vmatpush1.xpose.msra.mxu0 0.0
        %1706 = vmatprep.subr.mxu0 0.0
        %1707 = vmatpush1.xpose.msra.mxu0 0.0
        %1708 = vmatprep.subr.mxu0 0.0
        %1709 = vmatpush1.xpose.msra.mxu0 0.0
        %1710 = vmatprep.subr.mxu0 0.0
        %1711 = vmatpush1.xpose.msra.mxu0 0.0
        %1712 = vmatprep.subr.mxu0 0.0
        %1713 = vmatpush1.xpose.msra.mxu0 0.0
        %1714 = vmatprep.subr.mxu0 0.0
        %1715 = vmatpush1.xpose.msra.mxu0 0.0
        %1716 = vmatprep.subr.mxu0 0.0
        %1717 = vmatpush1.xpose.msra.mxu0 0.0
        %1718 = vmatprep.mubr.f32.mxu0 0.0
        %1719 = vmatmul.mubr.f32.gmra.mrb[0].mxu0 %v1370
        %v1720 = vpop.f32.mrb[0].mxu0
        %v1721 = vadd.f32 0.0, %v1720
        %v1722 = vpop.f32.mrb[0].mxu0
        %1723 = vdwg.mxu0
        %1724 = vmatprep.subr.mxu0 0.0
        %1725 = vmatpush1.xpose.msra.mxu0 %v699
        %1726 = vmatprep.subr.mxu0 0.0
        %1727 = vmatpush1.xpose.msra.mxu0 %v704
        %1728 = vmatprep.subr.mxu0 0.0
        %1729 = vmatpush1.xpose.msra.mxu0 %v709
        %1730 = vmatprep.subr.mxu0 0.0
        %1731 = vmatpush1.xpose.msra.mxu0 %v714
        %1732 = vmatprep.subr.mxu0 0.0
        %1733 = vmatpush1.xpose.msra.mxu0 %v719
        %1734 = vmatprep.subr.mxu0 0.0
        %1735 = vmatpush1.xpose.msra.mxu0 %v724
        %1736 = vmatprep.subr.mxu0 0.0
        %1737 = vmatpush1.xpose.msra.mxu0 %v729
        %1738 = vmatprep.subr.mxu0 0.0
        %1739 = vmatpush1.xpose.msra.mxu0 0.0
        %1740 = vmatprep.subr.mxu0 0.0
        %1741 = vmatpush1.xpose.msra.mxu0 0.0
        %1742 = vmatprep.subr.mxu0 0.0
        %1743 = vmatpush1.xpose.msra.mxu0 0.0
        %1744 = vmatprep.subr.mxu0 0.0
        %1745 = vmatpush1.xpose.msra.mxu0 0.0
        %1746 = vmatprep.subr.mxu0 0.0
        %1747 = vmatpush1.xpose.msra.mxu0 0.0
        %1748 = vmatprep.subr.mxu0 0.0
        %1749 = vmatpush1.xpose.msra.mxu0 0.0
        %1750 = vmatprep.subr.mxu0 0.0
        %1751 = vmatpush1.xpose.msra.mxu0 0.0
        %1752 = vmatprep.subr.mxu0 0.0
        %1753 = vmatpush1.xpose.msra.mxu0 0.0
        %1754 = vmatprep.subr.mxu0 0.0
        %1755 = vmatpush1.xpose.msra.mxu0 0.0
        %1756 = vmatprep.subr.mxu0 0.0
        %1757 = vmatpush1.xpose.msra.mxu0 0.0
        %1758 = vmatprep.subr.mxu0 0.0
        %1759 = vmatpush1.xpose.msra.mxu0 0.0
        %1760 = vmatprep.subr.mxu0 0.0
        %1761 = vmatpush1.xpose.msra.mxu0 0.0
        %1762 = vmatprep.subr.mxu0 0.0
        %1763 = vmatpush1.xpose.msra.mxu0 0.0
        %1764 = vmatprep.subr.mxu0 0.0
        %1765 = vmatpush1.xpose.msra.mxu0 0.0
        %1766 = vmatprep.subr.mxu0 0.0
        %1767 = vmatpush1.xpose.msra.mxu0 0.0
        %1768 = vmatprep.subr.mxu0 0.0
        %1769 = vmatpush1.xpose.msra.mxu0 0.0
        %1770 = vmatprep.subr.mxu0 0.0
        %1771 = vmatpush1.xpose.msra.mxu0 0.0
        %1772 = vmatprep.subr.mxu0 0.0
        %1773 = vmatpush1.xpose.msra.mxu0 0.0
        %1774 = vmatprep.subr.mxu0 0.0
        %1775 = vmatpush1.xpose.msra.mxu0 0.0
        %1776 = vmatprep.subr.mxu0 0.0
        %1777 = vmatpush1.xpose.msra.mxu0 0.0
        %1778 = vmatprep.subr.mxu0 0.0
        %1779 = vmatpush1.xpose.msra.mxu0 0.0
        %1780 = vmatprep.subr.mxu0 0.0
        %1781 = vmatpush1.xpose.msra.mxu0 0.0
        %1782 = vmatprep.subr.mxu0 0.0
        %1783 = vmatpush1.xpose.msra.mxu0 0.0
        %1784 = vmatprep.subr.mxu0 0.0
        %1785 = vmatpush1.xpose.msra.mxu0 0.0
        %1786 = vmatprep.subr.mxu0 0.0
        %1787 = vmatpush1.xpose.msra.mxu0 0.0
        %1788 = vmatprep.mubr.f32.mxu0 0.0
        %1789 = vmatmul.mubr.f32.gmra.mrb[0].mxu0 %v1371
        %v1790 = vpop.f32.mrb[0].mxu0
        %v1791 = vadd.f32 0.0, %v1790
        %v1792 = vpop.f32.mrb[0].mxu0
        %1793 = vdwg.mxu0
        %1794 = vmatprep.subr.mxu0 0.0
        %1795 = vmatpush1.xpose.msra.mxu0 %v734
        %1796 = vmatprep.subr.mxu0 0.0
        %1797 = vmatpush1.xpose.msra.mxu0 %v739
        %1798 = vmatprep.subr.mxu0 0.0
        %1799 = vmatpush1.xpose.msra.mxu0 %v744
        %1800 = vmatprep.subr.mxu0 0.0
        %1801 = vmatpush1.xpose.msra.mxu0 %v749
        %1802 = vmatprep.subr.mxu0 0.0
        %1803 = vmatpush1.xpose.msra.mxu0 %v754
        %1804 = vmatprep.subr.mxu0 0.0
        %1805 = vmatpush1.xpose.msra.mxu0 %v759
        %1806 = vmatprep.subr.mxu0 0.0
        %1807 = vmatpush1.xpose.msra.mxu0 %v764
        %1808 = vmatprep.subr.mxu0 0.0
        %1809 = vmatpush1.xpose.msra.mxu0 0.0
        %1810 = vmatprep.subr.mxu0 0.0
        %1811 = vmatpush1.xpose.msra.mxu0 0.0
        %1812 = vmatprep.subr.mxu0 0.0
        %1813 = vmatpush1.xpose.msra.mxu0 0.0
        %1814 = vmatprep.subr.mxu0 0.0
        %1815 = vmatpush1.xpose.msra.mxu0 0.0
        %1816 = vmatprep.subr.mxu0 0.0
        %1817 = vmatpush1.xpose.msra.mxu0 0.0
        %1818 = vmatprep.subr.mxu0 0.0
        %1819 = vmatpush1.xpose.msra.mxu0 0.0
        %1820 = vmatprep.subr.mxu0 0.0
        %1821 = vmatpush1.xpose.msra.mxu0 0.0
        %1822 = vmatprep.subr.mxu0 0.0
        %1823 = vmatpush1.xpose.msra.mxu0 0.0
        %1824 = vmatprep.subr.mxu0 0.0
        %1825 = vmatpush1.xpose.msra.mxu0 0.0
        %1826 = vmatprep.subr.mxu0 0.0
        %1827 = vmatpush1.xpose.msra.mxu0 0.0
        %1828 = vmatprep.subr.mxu0 0.0
        %1829 = vmatpush1.xpose.msra.mxu0 0.0
        %1830 = vmatprep.subr.mxu0 0.0
        %1831 = vmatpush1.xpose.msra.mxu0 0.0
        %1832 = vmatprep.subr.mxu0 0.0
        %1833 = vmatpush1.xpose.msra.mxu0 0.0
        %1834 = vmatprep.subr.mxu0 0.0
        %1835 = vmatpush1.xpose.msra.mxu0 0.0
        %1836 = vmatprep.subr.mxu0 0.0
        %1837 = vmatpush1.xpose.msra.mxu0 0.0
        %1838 = vmatprep.subr.mxu0 0.0
        %1839 = vmatpush1.xpose.msra.mxu0 0.0
        %1840 = vmatprep.subr.mxu0 0.0
        %1841 = vmatpush1.xpose.msra.mxu0 0.0
        %1842 = vmatprep.subr.mxu0 0.0
        %1843 = vmatpush1.xpose.msra.mxu0 0.0
        %1844 = vmatprep.subr.mxu0 0.0
        %1845 = vmatpush1.xpose.msra.mxu0 0.0
        %1846 = vmatprep.subr.mxu0 0.0
        %1847 = vmatpush1.xpose.msra.mxu0 0.0
        %1848 = vmatprep.subr.mxu0 0.0
        %1849 = vmatpush1.xpose.msra.mxu0 0.0
        %1850 = vmatprep.subr.mxu0 0.0
        %1851 = vmatpush1.xpose.msra.mxu0 0.0
        %1852 = vmatprep.subr.mxu0 0.0
        %1853 = vmatpush1.xpose.msra.mxu0 0.0
        %1854 = vmatprep.subr.mxu0 0.0
        %1855 = vmatpush1.xpose.msra.mxu0 0.0
        %1856 = vmatprep.subr.mxu0 0.0
        %1857 = vmatpush1.xpose.msra.mxu0 0.0
        %1858 = vmatprep.mubr.f32.mxu0 0.0
        %1859 = vmatmul.mubr.f32.gmra.mrb[0].mxu0 %v1372
        %v1860 = vpop.f32.mrb[0].mxu0
        %v1861 = vadd.f32 0.0, %v1860
        %v1862 = vpop.f32.mrb[0].mxu0
        %1863 = vdwg.mxu0
        %1864 = vmatprep.subr.mxu0 0.0
        %1865 = vmatpush1.xpose.msra.mxu0 %v769
        %1866 = vmatprep.subr.mxu0 0.0
        %1867 = vmatpush1.xpose.msra.mxu0 %v774
        %1868 = vmatprep.subr.mxu0 0.0
        %1869 = vmatpush1.xpose.msra.mxu0 %v779
        %1870 = vmatprep.subr.mxu0 0.0
        %1871 = vmatpush1.xpose.msra.mxu0 %v784
        %1872 = vmatprep.subr.mxu0 0.0
        %1873 = vmatpush1.xpose.msra.mxu0 %v789
        %1874 = vmatprep.subr.mxu0 0.0
        %1875 = vmatpush1.xpose.msra.mxu0 %v794
        %1876 = vmatprep.subr.mxu0 0.0
        %1877 = vmatpush1.xpose.msra.mxu0 %v799
        %1878 = vmatprep.subr.mxu0 0.0
        %1879 = vmatpush1.xpose.msra.mxu0 0.0
        %1880 = vmatprep.subr.mxu0 0.0
        %1881 = vmatpush1.xpose.msra.mxu0 0.0
        %1882 = vmatprep.subr.mxu0 0.0
        %1883 = vmatpush1.xpose.msra.mxu0 0.0
        %1884 = vmatprep.subr.mxu0 0.0
        %1885 = vmatpush1.xpose.msra.mxu0 0.0
        %1886 = vmatprep.subr.mxu0 0.0
        %1887 = vmatpush1.xpose.msra.mxu0 0.0
        %1888 = vmatprep.subr.mxu0 0.0
        %1889 = vmatpush1.xpose.msra.mxu0 0.0
        %1890 = vmatprep.subr.mxu0 0.0
        %1891 = vmatpush1.xpose.msra.mxu0 0.0
        %1892 = vmatprep.subr.mxu0 0.0
        %1893 = vmatpush1.xpose.msra.mxu0 0.0
        %1894 = vmatprep.subr.mxu0 0.0
        %1895 = vmatpush1.xpose.msra.mxu0 0.0
        %1896 = vmatprep.subr.mxu0 0.0
        %1897 = vmatpush1.xpose.msra.mxu0 0.0
        %1898 = vmatprep.subr.mxu0 0.0
        %1899 = vmatpush1.xpose.msra.mxu0 0.0
        %1900 = vmatprep.subr.mxu0 0.0
        %1901 = vmatpush1.xpose.msra.mxu0 0.0
        %1902 = vmatprep.subr.mxu0 0.0
        %1903 = vmatpush1.xpose.msra.mxu0 0.0
        %1904 = vmatprep.subr.mxu0 0.0
        %1905 = vmatpush1.xpose.msra.mxu0 0.0
        %1906 = vmatprep.subr.mxu0 0.0
        %1907 = vmatpush1.xpose.msra.mxu0 0.0
        %1908 = vmatprep.subr.mxu0 0.0
        %1909 = vmatpush1.xpose.msra.mxu0 0.0
        %1910 = vmatprep.subr.mxu0 0.0
        %1911 = vmatpush1.xpose.msra.mxu0 0.0
        %1912 = vmatprep.subr.mxu0 0.0
        %1913 = vmatpush1.xpose.msra.mxu0 0.0
        %1914 = vmatprep.subr.mxu0 0.0
        %1915 = vmatpush1.xpose.msra.mxu0 0.0
        %1916 = vmatprep.subr.mxu0 0.0
        %1917 = vmatpush1.xpose.msra.mxu0 0.0
        %1918 = vmatprep.subr.mxu0 0.0
        %1919 = vmatpush1.xpose.msra.mxu0 0.0
        %1920 = vmatprep.subr.mxu0 0.0
        %1921 = vmatpush1.xpose.msra.mxu0 0.0
        %1922 = vmatprep.subr.mxu0 0.0
        %1923 = vmatpush1.xpose.msra.mxu0 0.0
        %1924 = vmatprep.subr.mxu0 0.0
        %1925 = vmatpush1.xpose.msra.mxu0 0.0
        %1926 = vmatprep.subr.mxu0 0.0
        %1927 = vmatpush1.xpose.msra.mxu0 0.0
        %1928 = vmatprep.mubr.f32.mxu0 0.0
        %1929 = vmatmul.mubr.f32.gmra.mrb[0].mxu0 %v1373
        %v1930 = vpop.f32.mrb[0].mxu0
        %v1931 = vadd.f32 0.0, %v1930
        %v1932 = vpop.f32.mrb[0].mxu0
        %1933 = vdwg.mxu0
        %vm1934 = vcmp.lt.s32.totalorder %v1265, 50
        %v1935 = vsel %vm1934, %v1441, -1e+30
        %v1936 = vsel %vm1934, %v1511, -1e+30
        %v1937 = vsel %vm1934, %v1581, -1e+30
        %v1938 = vsel %vm1934, %v1651, -1e+30
        %v1939 = vsel %vm1934, %v1721, -1e+30
        %v1940 = vsel %vm1934, %v1791, -1e+30
        %v1941 = vsel %vm1934, %v1861, -1e+30
        %v1942 = vsel %vm1934, %v1931, -1e+30
        %vm1943 = vcmask 453632
        %v1944 = vsel %vm1943, %v1935, -inf
        %1945 = vmax.xlane.f32.xlu0 %v1944
        %v1946 = vpop.xlane.xlu0 %1945
        %v1947 = vsel %vm1943, %v1936, -inf
        %1948 = vmax.xlane.f32.xlu0 %v1947
        %v1949 = vpop.xlane.xlu0 %1948
        %v1950 = vsel %vm1943, %v1937, -inf
        %1951 = vmax.xlane.f32.xlu0 %v1950
        %v1952 = vpop.xlane.xlu0 %1951
        %v1953 = vsel %vm1943, %v1938, -inf
        %1954 = vmax.xlane.f32.xlu0 %v1953
        %v1955 = vpop.xlane.xlu0 %1954
        %v1956 = vsel %vm1943, %v1939, -inf
        %1957 = vmax.xlane.f32.xlu0 %v1956
        %v1958 = vpop.xlane.xlu0 %1957
        %v1959 = vsel %vm1943, %v1940, -inf
        %1960 = vmax.xlane.f32.xlu0 %v1959
        %v1961 = vpop.xlane.xlu0 %1960
        %v1962 = vsel %vm1943, %v1941, -inf
        %1963 = vmax.xlane.f32.xlu0 %v1962
        %v1964 = vpop.xlane.xlu0 %1963
        %v1965 = vsel %vm1943, %v1942, -inf
        %1966 = vmax.xlane.f32.xlu0 %v1965
        %v1967 = vpop.xlane.xlu0 %1966
        %v1968 = vsub.f32 %v1935, %v1946
        %v1969 = vsub.f32 %v1936, %v1949
        %v1970 = vsub.f32 %v1937, %v1952
        %v1971 = vsub.f32 %v1938, %v1955
        %v1972 = vsub.f32 %v1939, %v1958
        %v1973 = vsub.f32 %v1940, %v1961
        %v1974 = vsub.f32 %v1941, %v1964
        %v1975 = vsub.f32 %v1942, %v1967
        %v1976 = vmul.f32 %v1968, 1.442695
        %v1977 = vpow.pop %v1976
        %v1978 = vmul.f32 %v1969, 1.442695
        %v1979 = vpow.pop %v1978
        %v1980 = vmul.f32 %v1970, 1.442695
        %v1981 = vpow.pop %v1980
        %v1982 = vmul.f32 %v1971, 1.442695
        %v1983 = vpow.pop %v1982
        %v1984 = vmul.f32 %v1972, 1.442695
        %v1985 = vpow.pop %v1984
        %v1986 = vmul.f32 %v1973, 1.442695
        %v1987 = vpow.pop %v1986
        %v1988 = vmul.f32 %v1974, 1.442695
        %v1989 = vpow.pop %v1988
        %v1990 = vmul.f32 %v1975, 1.442695
        %v1991 = vpow.pop %v1990
        %v1992 = vsel %vm1943, %v1977, 0.0
        %1993 = vadd.xlane.f32.xlu0 %v1992
        %v1994 = vpop.xlane.xlu0 %1993
        %v1995 = vsel %vm1943, %v1979, 0.0
        %1996 = vadd.xlane.f32.xlu0 %v1995
        %v1997 = vpop.xlane.xlu0 %1996
        %v1998 = vsel %vm1943, %v1981, 0.0
        %1999 = vadd.xlane.f32.xlu0 %v1998
        %v2000 = vpop.xlane.xlu0 %1999
        %v2001 = vsel %vm1943, %v1983, 0.0
        %2002 = vadd.xlane.f32.xlu0 %v2001
        %v2003 = vpop.xlane.xlu0 %2002
        %v2004 = vsel %vm1943, %v1985, 0.0
        %2005 = vadd.xlane.f32.xlu0 %v2004
        %v2006 = vpop.xlane.xlu0 %2005
        %v2007 = vsel %vm1943, %v1987, 0.0
        %2008 = vadd.xlane.f32.xlu0 %v2007
        %v2009 = vpop.xlane.xlu0 %2008
        %v2010 = vsel %vm1943, %v1989, 0.0
        %2011 = vadd.xlane.f32.xlu0 %v2010
        %v2012 = vpop.xlane.xlu0 %2011
        %v2013 = vsel %vm1943, %v1991, 0.0
        %2014 = vadd.xlane.f32.xlu0 %v2013
        %v2015 = vpop.xlane.xlu0 %2014
        %v2016 = vrcp.pop %v1994
        %v2017 = vrcp.pop %v1997
        %v2018 = vrcp.pop %v2000
        %v2019 = vrcp.pop %v2003
        %v2020 = vrcp.pop %v2006
        %v2021 = vrcp.pop %v2009
        %v2022 = vrcp.pop %v2012
        %v2023 = vrcp.pop %v2015
        %v2024 = vmul.f32 %v1977, %v2016
        %v2025 = vmul.f32 %v1979, %v2017
        %v2026 = vmul.f32 %v1981, %v2018
        %v2027 = vmul.f32 %v1983, %v2019
        %v2028 = vmul.f32 %v1985, %v2020
        %v2029 = vmul.f32 %v1987, %v2021
        %v2030 = vmul.f32 %v1989, %v2022
        %v2031 = vmul.f32 %v1991, %v2023
        %vm2032 = vcmask 457728
        %v2034 = vsel %vm2032, %v2024, 0
        %2036 = vmatprep.subr.mxu0 0.0
        %2037 = vmatpush1.msra.mxu0 %v892
        %2038 = vmatprep.subr.mxu0 0.0
        %2039 = vmatpush1.msra.mxu0 %v897
        %2040 = vmatprep.subr.mxu0 0.0
        %2041 = vmatpush1.msra.mxu0 %v902
        %2042 = vmatprep.subr.mxu0 0.0
        %2043 = vmatpush1.msra.mxu0 %v907
        %2044 = vmatprep.subr.mxu0 0.0
        %2045 = vmatpush1.msra.mxu0 %v912
        %2046 = vmatprep.subr.mxu0 0.0
        %2047 = vmatpush1.msra.mxu0 %v917
        %2048 = vmatprep.subr.mxu0 0.0
        %2049 = vmatpush1.msra.mxu0 %v922
        %2050 = vmatprep.subr.mxu0 0.0
        %2051 = vmatpush1.msra.mxu0 0.0
        %2052 = vmatprep.subr.mxu0 0.0
        %2053 = vmatpush1.msra.mxu0 0.0
        %2054 = vmatprep.subr.mxu0 0.0
        %2055 = vmatpush1.msra.mxu0 0.0
        %2056 = vmatprep.subr.mxu0 0.0
        %2057 = vmatpush1.msra.mxu0 0.0
        %2058 = vmatprep.subr.mxu0 0.0
        %2059 = vmatpush1.msra.mxu0 0.0
        %2060 = vmatprep.subr.mxu0 0.0
        %2061 = vmatpush1.msra.mxu0 0.0
        %2062 = vmatprep.subr.mxu0 0.0
        %2063 = vmatpush1.msra.mxu0 0.0
        %2064 = vmatprep.subr.mxu0 0.0
        %2065 = vmatpush1.msra.mxu0 0.0
        %2066 = vmatprep.subr.mxu0 0.0
        %2067 = vmatpush1.msra.mxu0 0.0
        %2068 = vmatprep.subr.mxu0 0.0
        %2069 = vmatpush1.msra.mxu0 0.0
        %2070 = vmatprep.subr.mxu0 0.0
        %2071 = vmatpush1.msra.mxu0 0.0
        %2072 = vmatprep.subr.mxu0 0.0
        %2073 = vmatpush1.msra.mxu0 0.0
        %2074 = vmatprep.subr.mxu0 0.0
        %2075 = vmatpush1.msra.mxu0 0.0
        %2076 = vmatprep.subr.mxu0 0.0
        %2077 = vmatpush1.msra.mxu0 0.0
        %2078 = vmatprep.subr.mxu0 0.0
        %2079 = vmatpush1.msra.mxu0 0.0
        %2080 = vmatprep.subr.mxu0 0.0
        %2081 = vmatpush1.msra.mxu0 0.0
        %2082 = vmatprep.subr.mxu0 0.0
        %2083 = vmatpush1.msra.mxu0 0.0
        %2084 = vmatprep.subr.mxu0 0.0
        %2085 = vmatpush1.msra.mxu0 0.0
        %2086 = vmatprep.subr.mxu0 0.0
        %2087 = vmatpush1.msra.mxu0 0.0
        %2088 = vmatprep.subr.mxu0 0.0
        %2089 = vmatpush1.msra.mxu0 0.0
        %2090 = vmatprep.subr.mxu0 0.0
        %2091 = vmatpush1.msra.mxu0 0.0
        %2092 = vmatprep.subr.mxu0 0.0
        %2093 = vmatpush1.msra.mxu0 0.0
        %2094 = vmatprep.subr.mxu0 0.0
        %2095 = vmatpush1.msra.mxu0 0.0
        %2096 = vmatprep.subr.mxu0 0.0
        %2097 = vmatpush1.msra.mxu0 0.0
        %2098 = vmatprep.subr.mxu0 0.0
        %2099 = vmatpush1.msra.mxu0 0.0
        %2100 = vmatprep.mubr.f32.mxu0 0.0
        %2101 = vmatmul.mubr.f32.gmra.mrb[0].mxu0 %v2034
        %v2102 = vpop.f32.mrb[0].mxu0
        %v2103 = vadd.f32 0.0, %v2102
        %v2104 = vpop.f32.mrb[0].mxu0
        %2105 = vdwg.mxu0
        %v2107 = vsel %vm2032, %v2025, 0
        %2109 = vmatprep.subr.mxu0 0.0
        %2110 = vmatpush1.msra.mxu0 %v927
        %2111 = vmatprep.subr.mxu0 0.0
        %2112 = vmatpush1.msra.mxu0 %v932
        %2113 = vmatprep.subr.mxu0 0.0
        %2114 = vmatpush1.msra.mxu0 %v937
        %2115 = vmatprep.subr.mxu0 0.0
        %2116 = vmatpush1.msra.mxu0 %v942
        %2117 = vmatprep.subr.mxu0 0.0
        %2118 = vmatpush1.msra.mxu0 %v947
        %2119 = vmatprep.subr.mxu0 0.0
        %2120 = vmatpush1.msra.mxu0 %v952
        %2121 = vmatprep.subr.mxu0 0.0
        %2122 = vmatpush1.msra.mxu0 %v957
        %2123 = vmatprep.subr.mxu0 0.0
        %2124 = vmatpush1.msra.mxu0 0.0
        %2125 = vmatprep.subr.mxu0 0.0
        %2126 = vmatpush1.msra.mxu0 0.0
        %2127 = vmatprep.subr.mxu0 0.0
        %2128 = vmatpush1.msra.mxu0 0.0
        %2129 = vmatprep.subr.mxu0 0.0
        %2130 = vmatpush1.msra.mxu0 0.0
        %2131 = vmatprep.subr.mxu0 0.0
        %2132 = vmatpush1.msra.mxu0 0.0
        %2133 = vmatprep.subr.mxu0 0.0
        %2134 = vmatpush1.msra.mxu0 0.0
        %2135 = vmatprep.subr.mxu0 0.0
        %2136 = vmatpush1.msra.mxu0 0.0
        %2137 = vmatprep.subr.mxu0 0.0
        %2138 = vmatpush1.msra.mxu0 0.0
        %2139 = vmatprep.subr.mxu0 0.0
        %2140 = vmatpush1.msra.mxu0 0.0
        %2141 = vmatprep.subr.mxu0 0.0
        %2142 = vmatpush1.msra.mxu0 0.0
        %2143 = vmatprep.subr.mxu0 0.0
        %2144 = vmatpush1.msra.mxu0 0.0
        %2145 = vmatprep.subr.mxu0 0.0
        %2146 = vmatpush1.msra.mxu0 0.0
        %2147 = vmatprep.subr.mxu0 0.0
        %2148 = vmatpush1.msra.mxu0 0.0
        %2149 = vmatprep.subr.mxu0 0.0
        %2150 = vmatpush1.msra.mxu0 0.0
        %2151 = vmatprep.subr.mxu0 0.0
        %2152 = vmatpush1.msra.mxu0 0.0
        %2153 = vmatprep.subr.mxu0 0.0
        %2154 = vmatpush1.msra.mxu0 0.0
        %2155 = vmatprep.subr.mxu0 0.0
        %2156 = vmatpush1.msra.mxu0 0.0
        %2157 = vmatprep.subr.mxu0 0.0
        %2158 = vmatpush1.msra.mxu0 0.0
        %2159 = vmatprep.subr.mxu0 0.0
        %2160 = vmatpush1.msra.mxu0 0.0
        %2161 = vmatprep.subr.mxu0 0.0
        %2162 = vmatpush1.msra.mxu0 0.0
        %2163 = vmatprep.subr.mxu0 0.0
        %2164 = vmatpush1.msra.mxu0 0.0
        %2165 = vmatprep.subr.mxu0 0.0
        %2166 = vmatpush1.msra.mxu0 0.0
        %2167 = vmatprep.subr.mxu0 0.0
        %2168 = vmatpush1.msra.mxu0 0.0
        %2169 = vmatprep.subr.mxu0 0.0
        %2170 = vmatpush1.msra.mxu0 0.0
        %2171 = vmatprep.subr.mxu0 0.0
        %2172 = vmatpush1.msra.mxu0 0.0
        %2173 = vmatprep.mubr.f32.mxu0 0.0
        %2174 = vmatmul.mubr.f32.gmra.mrb[0].mxu0 %v2107
        %v2175 = vpop.f32.mrb[0].mxu0
        %v2176 = vadd.f32 0.0, %v2175
        %v2177 = vpop.f32.mrb[0].mxu0
        %2178 = vdwg.mxu0
        %v2180 = vsel %vm2032, %v2026, 0
        %2182 = vmatprep.subr.mxu0 0.0
        %2183 = vmatpush1.msra.mxu0 %v962
        %2184 = vmatprep.subr.mxu0 0.0
        %2185 = vmatpush1.msra.mxu0 %v967
        %2186 = vmatprep.subr.mxu0 0.0
        %2187 = vmatpush1.msra.mxu0 %v972
        %2188 = vmatprep.subr.mxu0 0.0
        %2189 = vmatpush1.msra.mxu0 %v977
        %2190 = vmatprep.subr.mxu0 0.0
        %2191 = vmatpush1.msra.mxu0 %v982
        %2192 = vmatprep.subr.mxu0 0.0
        %2193 = vmatpush1.msra.mxu0 %v987
        %2194 = vmatprep.subr.mxu0 0.0
        %2195 = vmatpush1.msra.mxu0 %v992
        %2196 = vmatprep.subr.mxu0 0.0
        %2197 = vmatpush1.msra.mxu0 0.0
        %2198 = vmatprep.subr.mxu0 0.0
        %2199 = vmatpush1.msra.mxu0 0.0
        %2200 = vmatprep.subr.mxu0 0.0
        %2201 = vmatpush1.msra.mxu0 0.0
        %2202 = vmatprep.subr.mxu0 0.0
        %2203 = vmatpush1.msra.mxu0 0.0
        %2204 = vmatprep.subr.mxu0 0.0
        %2205 = vmatpush1.msra.mxu0 0.0
        %2206 = vmatprep.subr.mxu0 0.0
        %2207 = vmatpush1.msra.mxu0 0.0
        %2208 = vmatprep.subr.mxu0 0.0
        %2209 = vmatpush1.msra.mxu0 0.0
        %2210 = vmatprep.subr.mxu0 0.0
        %2211 = vmatpush1.msra.mxu0 0.0
        %2212 = vmatprep.subr.mxu0 0.0
        %2213 = vmatpush1.msra.mxu0 0.0
        %2214 = vmatprep.subr.mxu0 0.0
        %2215 = vmatpush1.msra.mxu0 0.0
        %2216 = vmatprep.subr.mxu0 0.0
        %2217 = vmatpush1.msra.mxu0 0.0
        %2218 = vmatprep.subr.mxu0 0.0
        %2219 = vmatpush1.msra.mxu0 0.0
        %2220 = vmatprep.subr.mxu0 0.0
        %2221 = vmatpush1.msra.mxu0 0.0
        %2222 = vmatprep.subr.mxu0 0.0
        %2223 = vmatpush1.msra.mxu0 0.0
        %2224 = vmatprep.subr.mxu0 0.0
        %2225 = vmatpush1.msra.mxu0 0.0
        %2226 = vmatprep.subr.mxu0 0.0
        %2227 = vmatpush1.msra.mxu0 0.0
        %2228 = vmatprep.subr.mxu0 0.0
        %2229 = vmatpush1.msra.mxu0 0.0
        %2230 = vmatprep.subr.mxu0 0.0
        %2231 = vmatpush1.msra.mxu0 0.0
        %2232 = vmatprep.subr.mxu0 0.0
        %2233 = vmatpush1.msra.mxu0 0.0
        %2234 = vmatprep.subr.mxu0 0.0
        %2235 = vmatpush1.msra.mxu0 0.0
        %2236 = vmatprep.subr.mxu0 0.0
        %2237 = vmatpush1.msra.mxu0 0.0
        %2238 = vmatprep.subr.mxu0 0.0
        %2239 = vmatpush1.msra.mxu0 0.0
        %2240 = vmatprep.subr.mxu0 0.0
        %2241 = vmatpush1.msra.mxu0 0.0
        %2242 = vmatprep.subr.mxu0 0.0
        %2243 = vmatpush1.msra.mxu0 0.0
        %2244 = vmatprep.subr.mxu0 0.0
        %2245 = vmatpush1.msra.mxu0 0.0
        %2246 = vmatprep.mubr.f32.mxu0 0.0
        %2247 = vmatmul.mubr.f32.gmra.mrb[0].mxu0 %v2180
        %v2248 = vpop.f32.mrb[0].mxu0
        %v2249 = vadd.f32 0.0, %v2248
        %v2250 = vpop.f32.mrb[0].mxu0
        %2251 = vdwg.mxu0
        %v2253 = vsel %vm2032, %v2027, 0
        %2255 = vmatprep.subr.mxu0 0.0
        %2256 = vmatpush1.msra.mxu0 %v997
        %2257 = vmatprep.subr.mxu0 0.0
        %2258 = vmatpush1.msra.mxu0 %v1002
        %2259 = vmatprep.subr.mxu0 0.0
        %2260 = vmatpush1.msra.mxu0 %v1007
        %2261 = vmatprep.subr.mxu0 0.0
        %2262 = vmatpush1.msra.mxu0 %v1012
        %2263 = vmatprep.subr.mxu0 0.0
        %2264 = vmatpush1.msra.mxu0 %v1017
        %2265 = vmatprep.subr.mxu0 0.0
        %2266 = vmatpush1.msra.mxu0 %v1022
        %2267 = vmatprep.subr.mxu0 0.0
        %2268 = vmatpush1.msra.mxu0 %v1027
        %2269 = vmatprep.subr.mxu0 0.0
        %2270 = vmatpush1.msra.mxu0 0.0
        %2271 = vmatprep.subr.mxu0 0.0
        %2272 = vmatpush1.msra.mxu0 0.0
        %2273 = vmatprep.subr.mxu0 0.0
        %2274 = vmatpush1.msra.mxu0 0.0
        %2275 = vmatprep.subr.mxu0 0.0
        %2276 = vmatpush1.msra.mxu0 0.0
        %2277 = vmatprep.subr.mxu0 0.0
        %2278 = vmatpush1.msra.mxu0 0.0
        %2279 = vmatprep.subr.mxu0 0.0
        %2280 = vmatpush1.msra.mxu0 0.0
        %2281 = vmatprep.subr.mxu0 0.0
        %2282 = vmatpush1.msra.mxu0 0.0
        %2283 = vmatprep.subr.mxu0 0.0
        %2284 = vmatpush1.msra.mxu0 0.0
        %2285 = vmatprep.subr.mxu0 0.0
        %2286 = vmatpush1.msra.mxu0 0.0
        %2287 = vmatprep.subr.mxu0 0.0
        %2288 = vmatpush1.msra.mxu0 0.0
        %2289 = vmatprep.subr.mxu0 0.0
        %2290 = vmatpush1.msra.mxu0 0.0
        %2291 = vmatprep.subr.mxu0 0.0
        %2292 = vmatpush1.msra.mxu0 0.0
        %2293 = vmatprep.subr.mxu0 0.0
        %2294 = vmatpush1.msra.mxu0 0.0
        %2295 = vmatprep.subr.mxu0 0.0
        %2296 = vmatpush1.msra.mxu0 0.0
        %2297 = vmatprep.subr.mxu0 0.0
        %2298 = vmatpush1.msra.mxu0 0.0
        %2299 = vmatprep.subr.mxu0 0.0
        %2300 = vmatpush1.msra.mxu0 0.0
        %2301 = vmatprep.subr.mxu0 0.0
        %2302 = vmatpush1.msra.mxu0 0.0
        %2303 = vmatprep.subr.mxu0 0.0
        %2304 = vmatpush1.msra.mxu0 0.0
        %2305 = vmatprep.subr.mxu0 0.0
        %2306 = vmatpush1.msra.mxu0 0.0
        %2307 = vmatprep.subr.mxu0 0.0
        %2308 = vmatpush1.msra.mxu0 0.0
        %2309 = vmatprep.subr.mxu0 0.0
        %2310 = vmatpush1.msra.mxu0 0.0
        %2311 = vmatprep.subr.mxu0 0.0
        %2312 = vmatpush1.msra.mxu0 0.0
        %2313 = vmatprep.subr.mxu0 0.0
        %2314 = vmatpush1.msra.mxu0 0.0
        %2315 = vmatprep.subr.mxu0 0.0
        %2316 = vmatpush1.msra.mxu0 0.0
        %2317 = vmatprep.subr.mxu0 0.0
        %2318 = vmatpush1.msra.mxu0 0.0
        %2319 = vmatprep.mubr.f32.mxu0 0.0
        %2320 = vmatmul.mubr.f32.gmra.mrb[0].mxu0 %v2253
        %v2321 = vpop.f32.mrb[0].mxu0
        %v2322 = vadd.f32 0.0, %v2321
        %v2323 = vpop.f32.mrb[0].mxu0
        %2324 = vdwg.mxu0
        %v2326 = vsel %vm2032, %v2028, 0
        %2328 = vmatprep.subr.mxu0 0.0
        %2329 = vmatpush1.msra.mxu0 %v1032
        %2330 = vmatprep.subr.mxu0 0.0
        %2331 = vmatpush1.msra.mxu0 %v1037
        %2332 = vmatprep.subr.mxu0 0.0
        %2333 = vmatpush1.msra.mxu0 %v1042
        %2334 = vmatprep.subr.mxu0 0.0
        %2335 = vmatpush1.msra.mxu0 %v1047
        %2336 = vmatprep.subr.mxu0 0.0
        %2337 = vmatpush1.msra.mxu0 %v1052
        %2338 = vmatprep.subr.mxu0 0.0
        %2339 = vmatpush1.msra.mxu0 %v1057
        %2340 = vmatprep.subr.mxu0 0.0
        %2341 = vmatpush1.msra.mxu0 %v1062
        %2342 = vmatprep.subr.mxu0 0.0
        %2343 = vmatpush1.msra.mxu0 0.0
        %2344 = vmatprep.subr.mxu0 0.0
        %2345 = vmatpush1.msra.mxu0 0.0
        %2346 = vmatprep.subr.mxu0 0.0
        %2347 = vmatpush1.msra.mxu0 0.0
        %2348 = vmatprep.subr.mxu0 0.0
        %2349 = vmatpush1.msra.mxu0 0.0
        %2350 = vmatprep.subr.mxu0 0.0
        %2351 = vmatpush1.msra.mxu0 0.0
        %2352 = vmatprep.subr.mxu0 0.0
        %2353 = vmatpush1.msra.mxu0 0.0
        %2354 = vmatprep.subr.mxu0 0.0
        %2355 = vmatpush1.msra.mxu0 0.0
        %2356 = vmatprep.subr.mxu0 0.0
        %2357 = vmatpush1.msra.mxu0 0.0
        %2358 = vmatprep.subr.mxu0 0.0
        %2359 = vmatpush1.msra.mxu0 0.0
        %2360 = vmatprep.subr.mxu0 0.0
        %2361 = vmatpush1.msra.mxu0 0.0
        %2362 = vmatprep.subr.mxu0 0.0
        %2363 = vmatpush1.msra.mxu0 0.0
        %2364 = vmatprep.subr.mxu0 0.0
        %2365 = vmatpush1.msra.mxu0 0.0
        %2366 = vmatprep.subr.mxu0 0.0
        %2367 = vmatpush1.msra.mxu0 0.0
        %2368 = vmatprep.subr.mxu0 0.0
        %2369 = vmatpush1.msra.mxu0 0.0
        %2370 = vmatprep.subr.mxu0 0.0
        %2371 = vmatpush1.msra.mxu0 0.0
        %2372 = vmatprep.subr.mxu0 0.0
        %2373 = vmatpush1.msra.mxu0 0.0
        %2374 = vmatprep.subr.mxu0 0.0
        %2375 = vmatpush1.msra.mxu0 0.0
        %2376 = vmatprep.subr.mxu0 0.0
        %2377 = vmatpush1.msra.mxu0 0.0
        %2378 = vmatprep.subr.mxu0 0.0
        %2379 = vmatpush1.msra.mxu0 0.0
        %2380 = vmatprep.subr.mxu0 0.0
        %2381 = vmatpush1.msra.mxu0 0.0
        %2382 = vmatprep.subr.mxu0 0.0
        %2383 = vmatpush1.msra.mxu0 0.0
        %2384 = vmatprep.subr.mxu0 0.0
        %2385 = vmatpush1.msra.mxu0 0.0
        %2386 = vmatprep.subr.mxu0 0.0
        %2387 = vmatpush1.msra.mxu0 0.0
        %2388 = vmatprep.subr.mxu0 0.0
        %2389 = vmatpush1.msra.mxu0 0.0
        %2390 = vmatprep.subr.mxu0 0.0
        %2391 = vmatpush1.msra.mxu0 0.0
        %2392 = vmatprep.mubr.f32.mxu0 0.0
        %2393 = vmatmul.mubr.f32.gmra.mrb[0].mxu0 %v2326
        %v2394 = vpop.f32.mrb[0].mxu0
        %v2395 = vadd.f32 0.0, %v2394
        %v2396 = vpop.f32.mrb[0].mxu0
        %2397 = vdwg.mxu0
        %v2399 = vsel %vm2032, %v2029, 0
        %2401 = vmatprep.subr.mxu0 0.0
        %2402 = vmatpush1.msra.mxu0 %v1067
        %2403 = vmatprep.subr.mxu0 0.0
        %2404 = vmatpush1.msra.mxu0 %v1072
        %2405 = vmatprep.subr.mxu0 0.0
        %2406 = vmatpush1.msra.mxu0 %v1077
        %2407 = vmatprep.subr.mxu0 0.0
        %2408 = vmatpush1.msra.mxu0 %v1082
        %2409 = vmatprep.subr.mxu0 0.0
        %2410 = vmatpush1.msra.mxu0 %v1087
        %2411 = vmatprep.subr.mxu0 0.0
        %2412 = vmatpush1.msra.mxu0 %v1092
        %2413 = vmatprep.subr.mxu0 0.0
        %2414 = vmatpush1.msra.mxu0 %v1097
        %2415 = vmatprep.subr.mxu0 0.0
        %2416 = vmatpush1.msra.mxu0 0.0
        %2417 = vmatprep.subr.mxu0 0.0
        %2418 = vmatpush1.msra.mxu0 0.0
        %2419 = vmatprep.subr.mxu0 0.0
        %2420 = vmatpush1.msra.mxu0 0.0
        %2421 = vmatprep.subr.mxu0 0.0
        %2422 = vmatpush1.msra.mxu0 0.0
        %2423 = vmatprep.subr.mxu0 0.0
        %2424 = vmatpush1.msra.mxu0 0.0
        %2425 = vmatprep.subr.mxu0 0.0
        %2426 = vmatpush1.msra.mxu0 0.0
        %2427 = vmatprep.subr.mxu0 0.0
        %2428 = vmatpush1.msra.mxu0 0.0
        %2429 = vmatprep.subr.mxu0 0.0
        %2430 = vmatpush1.msra.mxu0 0.0
        %2431 = vmatprep.subr.mxu0 0.0
        %2432 = vmatpush1.msra.mxu0 0.0
        %2433 = vmatprep.subr.mxu0 0.0
        %2434 = vmatpush1.msra.mxu0 0.0
        %2435 = vmatprep.subr.mxu0 0.0
        %2436 = vmatpush1.msra.mxu0 0.0
        %2437 = vmatprep.subr.mxu0 0.0
        %2438 = vmatpush1.msra.mxu0 0.0
        %2439 = vmatprep.subr.mxu0 0.0
        %2440 = vmatpush1.msra.mxu0 0.0
        %2441 = vmatprep.subr.mxu0 0.0
        %2442 = vmatpush1.msra.mxu0 0.0
        %2443 = vmatprep.subr.mxu0 0.0
        %2444 = vmatpush1.msra.mxu0 0.0
        %2445 = vmatprep.subr.mxu0 0.0
        %2446 = vmatpush1.msra.mxu0 0.0
        %2447 = vmatprep.subr.mxu0 0.0
        %2448 = vmatpush1.msra.mxu0 0.0
        %2449 = vmatprep.subr.mxu0 0.0
        %2450 = vmatpush1.msra.mxu0 0.0
        %2451 = vmatprep.subr.mxu0 0.0
        %2452 = vmatpush1.msra.mxu0 0.0
        %2453 = vmatprep.subr.mxu0 0.0
        %2454 = vmatpush1.msra.mxu0 0.0
        %2455 = vmatprep.subr.mxu0 0.0
        %2456 = vmatpush1.msra.mxu0 0.0
        %2457 = vmatprep.subr.mxu0 0.0
        %2458 = vmatpush1.msra.mxu0 0.0
        %2459 = vmatprep.subr.mxu0 0.0
        %2460 = vmatpush1.msra.mxu0 0.0
        %2461 = vmatprep.subr.mxu0 0.0
        %2462 = vmatpush1.msra.mxu0 0.0
        %2463 = vmatprep.subr.mxu0 0.0
        %2464 = vmatpush1.msra.mxu0 0.0
        %2465 = vmatprep.mubr.f32.mxu0 0.0
        %2466 = vmatmul.mubr.f32.gmra.mrb[0].mxu0 %v2399
        %v2467 = vpop.f32.mrb[0].mxu0
        %v2468 = vadd.f32 0.0, %v2467
        %v2469 = vpop.f32.mrb[0].mxu0
        %2470 = vdwg.mxu0
        %v2472 = vsel %vm2032, %v2030, 0
        %2474 = vmatprep.subr.mxu0 0.0
        %2475 = vmatpush1.msra.mxu0 %v1102
        %2476 = vmatprep.subr.mxu0 0.0
        %2477 = vmatpush1.msra.mxu0 %v1107
        %2478 = vmatprep.subr.mxu0 0.0
        %2479 = vmatpush1.msra.mxu0 %v1112
        %2480 = vmatprep.subr.mxu0 0.0
        %2481 = vmatpush1.msra.mxu0 %v1117
        %2482 = vmatprep.subr.mxu0 0.0
        %2483 = vmatpush1.msra.mxu0 %v1122
        %2484 = vmatprep.subr.mxu0 0.0
        %2485 = vmatpush1.msra.mxu0 %v1127
        %2486 = vmatprep.subr.mxu0 0.0
        %2487 = vmatpush1.msra.mxu0 %v1132
        %2488 = vmatprep.subr.mxu0 0.0
        %2489 = vmatpush1.msra.mxu0 0.0
        %2490 = vmatprep.subr.mxu0 0.0
        %2491 = vmatpush1.msra.mxu0 0.0
        %2492 = vmatprep.subr.mxu0 0.0
        %2493 = vmatpush1.msra.mxu0 0.0
        %2494 = vmatprep.subr.mxu0 0.0
        %2495 = vmatpush1.msra.mxu0 0.0
        %2496 = vmatprep.subr.mxu0 0.0
        %2497 = vmatpush1.msra.mxu0 0.0
        %2498 = vmatprep.subr.mxu0 0.0
        %2499 = vmatpush1.msra.mxu0 0.0
        %2500 = vmatprep.subr.mxu0 0.0
        %2501 = vmatpush1.msra.mxu0 0.0
        %2502 = vmatprep.subr.mxu0 0.0
        %2503 = vmatpush1.msra.mxu0 0.0
        %2504 = vmatprep.subr.mxu0 0.0
        %2505 = vmatpush1.msra.mxu0 0.0
        %2506 = vmatprep.subr.mxu0 0.0
        %2507 = vmatpush1.msra.mxu0 0.0
        %2508 = vmatprep.subr.mxu0 0.0
        %2509 = vmatpush1.msra.mxu0 0.0
        %2510 = vmatprep.subr.mxu0 0.0
        %2511 = vmatpush1.msra.mxu0 0.0
        %2512 = vmatprep.subr.mxu0 0.0
        %2513 = vmatpush1.msra.mxu0 0.0
        %2514 = vmatprep.subr.mxu0 0.0
        %2515 = vmatpush1.msra.mxu0 0.0
        %2516 = vmatprep.subr.mxu0 0.0
        %2517 = vmatpush1.msra.mxu0 0.0
        %2518 = vmatprep.subr.mxu0 0.0
        %2519 = vmatpush1.msra.mxu0 0.0
        %2520 = vmatprep.subr.mxu0 0.0
        %2521 = vmatpush1.msra.mxu0 0.0
        %2522 = vmatprep.subr.mxu0 0.0
        %2523 = vmatpush1.msra.mxu0 0.0
        %2524 = vmatprep.subr.mxu0 0.0
        %2525 = vmatpush1.msra.mxu0 0.0
        %2526 = vmatprep.subr.mxu0 0.0
        %2527 = vmatpush1.msra.mxu0 0.0
        %2528 = vmatprep.subr.mxu0 0.0
        %2529 = vmatpush1.msra.mxu0 0.0
        %2530 = vmatprep.subr.mxu0 0.0
        %2531 = vmatpush1.msra.mxu0 0.0
        %2532 = vmatprep.subr.mxu0 0.0
        %2533 = vmatpush1.msra.mxu0 0.0
        %2534 = vmatprep.subr.mxu0 0.0
        %2535 = vmatpush1.msra.mxu0 0.0
        %2536 = vmatprep.subr.mxu0 0.0
        %2537 = vmatpush1.msra.mxu0 0.0
        %2538 = vmatprep.mubr.f32.mxu0 0.0
        %2539 = vmatmul.mubr.f32.gmra.mrb[0].mxu0 %v2472
        %v2540 = vpop.f32.mrb[0].mxu0
        %v2541 = vadd.f32 0.0, %v2540
        %v2542 = vpop.f32.mrb[0].mxu0
        %2543 = vdwg.mxu0
        %v2545 = vsel %vm2032, %v2031, 0
        %2547 = vmatprep.subr.mxu0 0.0
        %2548 = vmatpush1.msra.mxu0 %v1137
        %2549 = vmatprep.subr.mxu0 0.0
        %2550 = vmatpush1.msra.mxu0 %v1142
        %2551 = vmatprep.subr.mxu0 0.0
        %2552 = vmatpush1.msra.mxu0 %v1147
        %2553 = vmatprep.subr.mxu0 0.0
        %2554 = vmatpush1.msra.mxu0 %v1152
        %2555 = vmatprep.subr.mxu0 0.0
        %2556 = vmatpush1.msra.mxu0 %v1157
        %2557 = vmatprep.subr.mxu0 0.0
        %2558 = vmatpush1.msra.mxu0 %v1162
        %2559 = vmatprep.subr.mxu0 0.0
        %2560 = vmatpush1.msra.mxu0 %v1167
        %2561 = vmatprep.subr.mxu0 0.0
        %2562 = vmatpush1.msra.mxu0 0.0
        %2563 = vmatprep.subr.mxu0 0.0
        %2564 = vmatpush1.msra.mxu0 0.0
        %2565 = vmatprep.subr.mxu0 0.0
        %2566 = vmatpush1.msra.mxu0 0.0
        %2567 = vmatprep.subr.mxu0 0.0
        %2568 = vmatpush1.msra.mxu0 0.0
        %2569 = vmatprep.subr.mxu0 0.0
        %2570 = vmatpush1.msra.mxu0 0.0
        %2571 = vmatprep.subr.mxu0 0.0
        %2572 = vmatpush1.msra.mxu0 0.0
        %2573 = vmatprep.subr.mxu0 0.0
        %2574 = vmatpush1.msra.mxu0 0.0
        %2575 = vmatprep.subr.mxu0 0.0
        %2576 = vmatpush1.msra.mxu0 0.0
        %2577 = vmatprep.subr.mxu0 0.0
        %2578 = vmatpush1.msra.mxu0 0.0
        %2579 = vmatprep.subr.mxu0 0.0
        %2580 = vmatpush1.msra.mxu0 0.0
        %2581 = vmatprep.subr.mxu0 0.0
        %2582 = vmatpush1.msra.mxu0 0.0
        %2583 = vmatprep.subr.mxu0 0.0
        %2584 = vmatpush1.msra.mxu0 0.0
        %2585 = vmatprep.subr.mxu0 0.0
        %2586 = vmatpush1.msra.mxu0 0.0
        %2587 = vmatprep.subr.mxu0 0.0
        %2588 = vmatpush1.msra.mxu0 0.0
        %2589 = vmatprep.subr.mxu0 0.0
        %2590 = vmatpush1.msra.mxu0 0.0
        %2591 = vmatprep.subr.mxu0 0.0
        %2592 = vmatpush1.msra.mxu0 0.0
        %2593 = vmatprep.subr.mxu0 0.0
        %2594 = vmatpush1.msra.mxu0 0.0
        %2595 = vmatprep.subr.mxu0 0.0
        %2596 = vmatpush1.msra.mxu0 0.0
        %2597 = vmatprep.subr.mxu0 0.0
        %2598 = vmatpush1.msra.mxu0 0.0
        %2599 = vmatprep.subr.mxu0 0.0
        %2600 = vmatpush1.msra.mxu0 0.0
        %2601 = vmatprep.subr.mxu0 0.0
        %2602 = vmatpush1.msra.mxu0 0.0
        %2603 = vmatprep.subr.mxu0 0.0
        %2604 = vmatpush1.msra.mxu0 0.0
        %2605 = vmatprep.subr.mxu0 0.0
        %2606 = vmatpush1.msra.mxu0 0.0
        %2607 = vmatprep.subr.mxu0 0.0
        %2608 = vmatpush1.msra.mxu0 0.0
        %2609 = vmatprep.subr.mxu0 0.0
        %2610 = vmatpush1.msra.mxu0 0.0
        %2611 = vmatprep.mubr.f32.mxu0 0.0
        %2612 = vmatmul.mubr.f32.gmra.mrb[0].mxu0 %v2545
        %v2613 = vpop.f32.mrb[0].mxu0
        %v2614 = vadd.f32 0.0, %v2613
        %v2615 = vpop.f32.mrb[0].mxu0
        %2616 = vdwg.mxu0
        %v2617 = vmul.f32 %v2103, %v1275
        %v2618 = vmul.f32 %v2176, %v1275
        %v2619 = vmul.f32 %v2249, %v1275
        %v2620 = vmul.f32 %v2322, %v1275
        %v2621 = vmul.f32 %v2395, %v1275
        %v2622 = vmul.f32 %v2468, %v1275
        %v2623 = vmul.f32 %v2541, %v1275
        %v2624 = vmul.f32 %v2614, %v1275
        %vm2625 = vcmask 1043456
        %v2626 = vsel %vm2625, %v2617, 0.0
        %v2627 = vrot.slane %v2626, 4
        %v2628 = vadd.f32 %v2626, %v2627
        %v2629 = vrot.slane %v2628, 2
        %v2630 = vadd.f32 %v2628, %v2629
        %v2631 = vrot.slane %v2630, 1
        %v2632 = vadd.f32 %v2630, %v2631
        %v2633 = vsel %vm2625, %v2618, 0.0
        %v2634 = vrot.slane %v2633, 4
        %v2635 = vadd.f32 %v2633, %v2634
        %v2636 = vrot.slane %v2635, 2
        %v2637 = vadd.f32 %v2635, %v2636
        %v2638 = vrot.slane %v2637, 1
        %v2639 = vadd.f32 %v2637, %v2638
        %v2640 = vsel %vm2625, %v2619, 0.0
        %v2641 = vrot.slane %v2640, 4
        %v2642 = vadd.f32 %v2640, %v2641
        %v2643 = vrot.slane %v2642, 2
        %v2644 = vadd.f32 %v2642, %v2643
        %v2645 = vrot.slane %v2644, 1
        %v2646 = vadd.f32 %v2644, %v2645
        %v2647 = vsel %vm2625, %v2620, 0.0
        %v2648 = vrot.slane %v2647, 4
        %v2649 = vadd.f32 %v2647, %v2648
        %v2650 = vrot.slane %v2649, 2
        %v2651 = vadd.f32 %v2649, %v2650
        %v2652 = vrot.slane %v2651, 1
        %v2653 = vadd.f32 %v2651, %v2652
        %v2654 = vsel %vm2625, %v2621, 0.0
        %v2655 = vrot.slane %v2654, 4
        %v2656 = vadd.f32 %v2654, %v2655
        %v2657 = vrot.slane %v2656, 2
        %v2658 = vadd.f32 %v2656, %v2657
        %v2659 = vrot.slane %v2658, 1
        %v2660 = vadd.f32 %v2658, %v2659
        %v2661 = vsel %vm2625, %v2622, 0.0
        %v2662 = vrot.slane %v2661, 4
        %v2663 = vadd.f32 %v2661, %v2662
        %v2664 = vrot.slane %v2663, 2
        %v2665 = vadd.f32 %v2663, %v2664
        %v2666 = vrot.slane %v2665, 1
        %v2667 = vadd.f32 %v2665, %v2666
        %v2668 = vsel %vm2625, %v2623, 0.0
        %v2669 = vrot.slane %v2668, 4
        %v2670 = vadd.f32 %v2668, %v2669
        %v2671 = vrot.slane %v2670, 2
        %v2672 = vadd.f32 %v2670, %v2671
        %v2673 = vrot.slane %v2672, 1
        %v2674 = vadd.f32 %v2672, %v2673
        %v2675 = vsel %vm2625, %v2624, 0.0
        %v2676 = vrot.slane %v2675, 4
        %v2677 = vadd.f32 %v2675, %v2676
        %v2678 = vrot.slane %v2677, 2
        %v2679 = vadd.f32 %v2677, %v2678
        %v2680 = vrot.slane %v2679, 1
        %v2681 = vadd.f32 %v2679, %v2680
        %v2682 = vld [vmem:[%s8] sm:$0xff]
        %v2683 = vld [vmem:[%s8 + $0x8] sm:$0xff]
        %v2684 = vld [vmem:[%s8 + $0x10] sm:$0xff]
        %v2685 = vld [vmem:[%s8 + $0x18] sm:$0xff]
        %v2686 = vld [vmem:[%s8 + $0x20] sm:$0xff]
        %v2687 = vld [vmem:[%s8 + $0x28] sm:$0xff]
        %v2688 = vld [vmem:[%s8 + $0x30] sm:$0xff]
        %v2689 = vld [vmem:[%s8 + $0x38] sm:$0xff]
        %v2690 = vld [vmem:[%s8 + $0x40] sm:$0xff]
        %v2691 = vld [vmem:[%s8 + $0x48] sm:$0xff]
        %v2692 = vld [vmem:[%s8 + $0x50] sm:$0xff]
        %v2693 = vld [vmem:[%s8 + $0x58] sm:$0xff]
        %v2694 = vld [vmem:[%s8 + $0x60] sm:$0xff]
        %v2695 = vld [vmem:[%s8 + $0x68] sm:$0xff]
        %v2696 = vld [vmem:[%s8 + $0x70] sm:$0xff]
        %v2697 = vld [vmem:[%s8 + $0x78] sm:$0xff]
        %v2698 = vld [vmem:[%s8 + $0x80] sm:$0xff]
        %v2699 = vld [vmem:[%s8 + $0x88] sm:$0xff]
        %v2700 = vld [vmem:[%s8 + $0x90] sm:$0xff]
        %v2701 = vld [vmem:[%s8 + $0x98] sm:$0xff]
        %v2702 = vld [vmem:[%s8 + $0xa0] sm:$0xff]
        %v2703 = vld [vmem:[%s8 + $0xa8] sm:$0xff]
        %v2704 = vld [vmem:[%s8 + $0xb0] sm:$0xff]
        %v2705 = vld [vmem:[%s8 + $0xb8] sm:$0xff]
        %v2706 = vld [vmem:[%s8 + $0xc0] sm:$0xff]
        %v2707 = vld [vmem:[%s8 + $0xc8] sm:$0xff]
        %v2708 = vld [vmem:[%s8 + $0xd0] sm:$0xff]
        %v2709 = vld [vmem:[%s8 + $0xd8] sm:$0xff]
        %v2710 = vld [vmem:[%s8 + $0xe0] sm:$0xff]
        %v2711 = vld [vmem:[%s8 + $0xe8] sm:$0xff]
        %v2712 = vld [vmem:[%s8 + $0xf0] sm:$0xff]
        %v2713 = vld [vmem:[%s8 + $0xf8] sm:$0xff]
        %v2714 = vld [vmem:[%s9] sm:$0x3]
        %v2716 = vlaneseq
        %v2717 = vshrl.u32 %v2716, 7
        %v2718 = vsub.s32 0, %v2717
        %v2719 = vrot.slane %v2714, %v2718
        %v2720 = vlaneseq
        %v2721 = vshrl.u32 %v2720, 7
        %v2722 = vsub.s32 1, %v2721
        %v2723 = vrot.slane %v2714, %v2722
        %vm2734 = vcmask 1041409
        %v2735 = vsel %vm2734, %v2639, %v2632
        %vm2736 = vcmask 1042434
        %v2737 = vsel %vm2736, %v2646, %v2735
        %vm2738 = vcmask 1043459
        %v2739 = vsel %vm2738, %v2653, %v2737
        %vm2740 = vcmask 1044484
        %v2741 = vsel %vm2740, %v2660, %v2739
        %vm2742 = vcmask 1045509
        %v2743 = vsel %vm2742, %v2667, %v2741
        %vm2744 = vcmask 1046534
        %v2745 = vsel %vm2744, %v2674, %v2743
        %vm2746 = vcmask 1047559
        %v2747 = vsel %vm2746, %v2681, %v2745
        %2749 = vmatprep.subr.mxu0 %v2683
        %2750 = vmatpush1.msra.mxu0 %v2682
        %2751 = vmatprep.subr.mxu0 %v2685
        %2752 = vmatpush1.msra.mxu0 %v2684
        %2753 = vmatprep.subr.mxu0 %v2687
        %2754 = vmatpush1.msra.mxu0 %v2686
        %2755 = vmatprep.subr.mxu0 %v2689
        %2756 = vmatpush1.msra.mxu0 %v2688
        %2757 = vmatprep.subr.mxu0 %v2691
        %2758 = vmatpush1.msra.mxu0 %v2690
        %2759 = vmatprep.subr.mxu0 %v2693
        %2760 = vmatpush1.msra.mxu0 %v2692
        %2761 = vmatprep.subr.mxu0 %v2695
        %2762 = vmatpush1.msra.mxu0 %v2694
        %2763 = vmatprep.subr.mxu0 %v2697
        %2764 = vmatpush1.msra.mxu0 %v2696
        %2765 = vmatprep.subr.mxu0 %v2699
        %2766 = vmatpush1.msra.mxu0 %v2698
        %2767 = vmatprep.subr.mxu0 %v2701
        %2768 = vmatpush1.msra.mxu0 %v2700
        %2769 = vmatprep.subr.mxu0 %v2703
        %2770 = vmatpush1.msra.mxu0 %v2702
        %2771 = vmatprep.subr.mxu0 %v2705
        %2772 = vmatpush1.msra.mxu0 %v2704
        %2773 = vmatprep.subr.mxu0 %v2707
        %2774 = vmatpush1.msra.mxu0 %v2706
        %2775 = vmatprep.subr.mxu0 %v2709
        %2776 = vmatpush1.msra.mxu0 %v2708
        %2777 = vmatprep.subr.mxu0 %v2711
        %2778 = vmatpush1.msra.mxu0 %v2710
        %2779 = vmatprep.subr.mxu0 %v2713
        %2780 = vmatpush1.msra.mxu0 %v2712
        %2781 = vmatprep.subr.mxu0 0.0
        %2782 = vmatpush1.msra.mxu0 0.0
        %2783 = vmatprep.subr.mxu0 0.0
        %2784 = vmatpush1.msra.mxu0 0.0
        %2785 = vmatprep.subr.mxu0 0.0
        %2786 = vmatpush1.msra.mxu0 0.0
        %2787 = vmatprep.subr.mxu0 0.0
        %2788 = vmatpush1.msra.mxu0 0.0
        %2789 = vmatprep.subr.mxu0 0.0
        %2790 = vmatpush1.msra.mxu0 0.0
        %2791 = vmatprep.subr.mxu0 0.0
        %2792 = vmatpush1.msra.mxu0 0.0
        %2793 = vmatprep.subr.mxu0 0.0
        %2794 = vmatpush1.msra.mxu0 0.0
        %2795 = vmatprep.subr.mxu0 0.0
        %2796 = vmatpush1.msra.mxu0 0.0
        %2797 = vmatprep.subr.mxu0 0.0
        %2798 = vmatpush1.msra.mxu0 0.0
        %2799 = vmatprep.subr.mxu0 0.0
        %2800 = vmatpush1.msra.mxu0 0.0
        %2801 = vmatprep.subr.mxu0 0.0
        %2802 = vmatpush1.msra.mxu0 0.0
        %2803 = vmatprep.subr.mxu0 0.0
        %2804 = vmatpush1.msra.mxu0 0.0
        %2805 = vmatprep.subr.mxu0 0.0
        %2806 = vmatpush1.msra.mxu0 0.0
        %2807 = vmatprep.subr.mxu0 0.0
        %2808 = vmatpush1.msra.mxu0 0.0
        %2809 = vmatprep.subr.mxu0 0.0
        %2810 = vmatpush1.msra.mxu0 0.0
        %2811 = vmatprep.subr.mxu0 0.0
        %2812 = vmatpush1.msra.mxu0 0.0
        %2813 = vmatprep.mubr.f32.mxu0 0.0
        %2814 = vmatmul.mubr.f32.gmra.mrb[0].mxu0 %v2747
        %v2815 = vpop.f32.mrb[0].mxu0
        %v2816 = vadd.f32 %v2719, %v2815
        %v2817 = vpop.f32.mrb[0].mxu0
        %v2818 = vadd.f32 %v2723, %v2817
        %2819 = vdwg.mxu0
        %2820 = vst [vmem:[%s366] sm:$0xff] %v2816
        %2821 = vst [vmem:[%s366 + $0x8] sm:$0xff] %v2818
        %s2822 = sand.u32 %s252, 1
        %s2823 = scalar_lea.sflag [#allocation3], %s2822
        %s2824 = sand.u32 %s252, 1
        %s2825 = smul.addr %s2824, 16
        %s2826 = scalar_lea.vmem [#allocation2], %s2825
        // Predicated region
        $region61: #{attention_pool_2d.1} parent=59 // pred_check
          %p2827 = pneg %p262
        $region62: #{attention_pool_2d.1} parent=59 // pred_check_branch
          %2829 = sbr.rel (%p2827) target = $region64
        $region63: #{attention_pool_2d.1} parent=59 // pred_region
          %s2831 = ssub.s32 256, 256
          %2832 = vsyncadd %s2823, %s2831
          %s2833 = smul.addr %s24, 2
          %s2834 = smul.addr %s2833, 128
          %s2835 = scalar_lea.hbm %s10, %s2834
          %s2837 = sshll.u32 %s2826, 4
          %s2838 = int_to_ptr.vmem [resolvable:$true] %s2837
          %2840 = dma.vmem_to_hbm [thread:$0]  %s2838, 256, %s2835, %s2823
        $region64: #{attention_pool_2d.1} parent=59 // pred_fallthru
          _
      $region60: #{attention_pool_2d.1} parent=5 // pred_fallthru
        _
      %p2841 = scmp.le.s32.totalorder 2, %s19
      // Predicated region
      $region65: #{attention_pool_2d.1} parent=5 // pred_check
        %p2842 = pneg %p2841
      $region66: #{attention_pool_2d.1} parent=5 // pred_check_branch
        %2844 = sbr.rel (%p2842) target = $region68
      $region67: #{attention_pool_2d.1} parent=5 // pred_region
        %s2845 = ssub.s32 %s19, 2
        // Predicated region
        $region69: #{attention_pool_2d.1} parent=67 // pred_check
          %p2846 = pneg %p268
        $region70: #{attention_pool_2d.1} parent=67 // pred_check_branch
          %2848 = sbr.rel (%p2846) target = $region72
        $region71: #{attention_pool_2d.1} parent=67 // pred_region
          %s2849 = sand.u32 %s253, 1
          %s2850 = scalar_lea.sflag [#allocation3], %s2849
          %s2851 = sand.u32 %s253, 1
          %s2852 = smul.addr %s2851, 16
          %s2853 = scalar_lea.vmem [#allocation2], %s2852
          %2854 = dma.done %s2850, 256
        $region72: #{attention_pool_2d.1} parent=67 // pred_fallthru
          _
      $region68: #{attention_pool_2d.1} parent=5 // pred_fallthru
        _
    $region6: #{attention_pool_2d.1} parent=1 // loop_footer
      %s23 = sadd.s32 1, %s19
    $region7: #{attention_pool_2d.1} parent=1 // loop_footer_branch
      %18 = sbr.rel target = $region3
    $region8: #{attention_pool_2d.1} parent=1 // loop_exit
      _
    %2855 = vsyncpa [#allocation3], 1
    %s2856 = scalar_lea.sflag [#allocation3], 1
    %2857 = vsyncpa %s2856, 1

</llo_original>
